<compile_context>
chip_gen: v6e
topology: v6e:2x2x1
jax: 0.10.0
libtpu: 0.0.40
codegen_flags: <defaults>
</compile_context>

<pallas_src>
import functools

import jax
import jax.numpy as jnp
from jax.experimental import pallas as pl
from jax.experimental.pallas import tpu as pltpu


# ---------------------------------------------------------------------------
# Fused decoder-block kernel (one batch element per grid step)
# ---------------------------------------------------------------------------
def _decoder_block_kernel(
        x_ref, ev_ref, ek_ref, tbias_ref, sbias_ref,
        wq1_ref, wk1_ref, wv1_ref, wo1_ref, bo1_ref, ng_ref, nb_ref,
        wq2_ref, wk2_ref, wv2_ref, wo2_ref, bo2_ref,
        g1_ref, be1_ref, w1_ref, b1_ref, w2_ref, b2_ref, g2_ref, be2_ref,
        o_ref, *, nhead, d_head):
    f32 = jnp.float32
    bf16 = jnp.bfloat16

    def layernorm(x, g, b, eps=1e-5):
        # fused single-pass variance: E[x^2] - mean^2 (matches PyTorch biased var)
        mu = jnp.mean(x, axis=-1, keepdims=True)
        ms = jnp.mean(x * x, axis=-1, keepdims=True)
        var = ms - mu * mu
        return (x - mu) * jax.lax.rsqrt(var + eps) * g + b

    def attention(qb, kb, vb, bias, wq_r, wk_r, wv_r, wo_r, bo_r):
        # qb/kb/vb: (S*, E) bf16 (casts hoisted by the caller).
        # bias: additive mask bias broadcastable to (Sq, Sk); 1/sqrt(E) already
        # folded into wq and into the bias host-side.
        wq = wq_r[...]          # (D, D) bf16, pre-transposed, scale folded in
        wk = wk_r[...]          # (D, D)
        wv = wv_r[...]          # (D, D)
        wo = wo_r[...]          # (E, E) bf16 = fc_out.weight.T
        acc = None
        # nhead is small -> static unroll is fine; at production sizes move heads
        # onto a grid axis / batched (nhead, S, D) layout (see TODO at top).
        for h in range(nhead):
            lo = h * d_head
            hi = lo + d_head
            # per-head projections with the head-shared (D, D) weight
            qh = jnp.dot(qb[:, lo:hi], wq,
                         preferred_element_type=f32).astype(bf16)
            kh = jnp.dot(kb[:, lo:hi], wk,
                         preferred_element_type=f32).astype(bf16)
            vh = jnp.dot(vb[:, lo:hi], wv,
                         preferred_element_type=f32).astype(bf16)
            # scaled scores + additive mask bias (scale/mask folded host-side)
            s = jax.lax.dot_general(qh, kh, (((1,), (1,)), ((), ())),
                                    preferred_element_type=f32) + bias
            mx = jnp.max(s, axis=-1, keepdims=True)
            ex = jnp.exp(s - mx)
            att = ex * pl.reciprocal(jnp.sum(ex, axis=-1, keepdims=True),
                                     approx=True)
            ctx = jnp.dot(att.astype(bf16), vh, preferred_element_type=f32)
            # accumulate the output projection per head (no lane-axis concat)
            upd = jnp.dot(ctx.astype(bf16), wo[lo:hi, :],
                          preferred_element_type=f32)
            acc = upd if acc is None else acc + upd
        return acc + bo_r[...]

    x = x_ref[0]              # (Sq, E) f32
    enc_v = ev_ref[0]         # (Sk, E)
    enc_k = ek_ref[0]         # (Sk, E)
    tbias = tbias_ref[...]    # (Sq, Sq) additive bias, batch-invariant
    sbias = sbias_ref[0]      # (1, Sk)  additive key-padding bias row

    # masked self-attention + residual + LayerNorm   (dropout -> identity, eval)
    xb = x.astype(bf16)       # single cast shared by q / k / v
    attn1 = attention(xb, xb, xb, tbias,
                      wq1_ref, wk1_ref, wv1_ref, wo1_ref, bo1_ref)
    dec_q = layernorm(attn1 + x, ng_ref[...], nb_ref[...])

    # cross-attention: queries = dec_q, keys/values from the encoder output
    attn2 = attention(dec_q.astype(bf16), enc_k.astype(bf16), enc_v.astype(bf16),
                      sbias, wq2_ref, wk2_ref, wv2_ref, wo2_ref, bo2_ref)
    x1 = layernorm(attn2 + dec_q, g1_ref[...], be1_ref[...])

    # feed-forward (bf16 matmuls, f32 accumulation) + residual + LayerNorm
    h = jnp.maximum(
        jnp.dot(x1.astype(bf16), w1_ref[...],
                preferred_element_type=f32) + b1_ref[...], 0.0)
    y = jnp.dot(h.astype(bf16), w2_ref[...],
                preferred_element_type=f32) + b2_ref[...]
    o_ref[0] = layernorm(y + x1, g2_ref[...], be2_ref[...])


# ---------------------------------------------------------------------------
# Wrapper: host-side weight/mask preprocessing + single pallas_call
# ---------------------------------------------------------------------------
def decoder_block(params, x, enc_value, enc_key, src_mask, tgt_mask, nhead):
    N, Sq, E = x.shape
    Sk = enc_value.shape[1]
    D = E // nhead
    Hdim = params["tb"]["w1"].shape[0]
    bf = jnp.bfloat16
    inv_scale = 1.0 / jnp.sqrt(jnp.float32(E))   # PyTorch scales by sqrt(emb), not sqrt(D)

    a1, a2, tb = params["attn1"], params["attn2"], params["tb"]

    # Head-shared (D, D) projection weights, pre-transposed so y = x @ w;
    # 1/sqrt(E) folded into wq.  fc_out weight pre-transposed to (E, E).
    wq1 = (a1["wq"].T * inv_scale).astype(bf)
    wk1 = a1["wk"].T.astype(bf)
    wv1 = a1["wv"].T.astype(bf)
    wo1 = a1["wo"].T.astype(bf)
    bo1 = a1["bo"].reshape(1, E)

    wq2 = (a2["wq"].T * inv_scale).astype(bf)
    wk2 = a2["wk"].T.astype(bf)
    wv2 = a2["wv"].T.astype(bf)
    wo2 = a2["wo"].T.astype(bf)
    bo2 = a2["bo"].reshape(1, E)

    w1_t = tb["w1"].T.astype(bf)          # (E, Hdim)
    w2_t = tb["w2"].T.astype(bf)          # (Hdim, E)

    # Masks -> compact additive, pre-scaled biases (PyTorch: masked_fill(-1e20),
    # then divide energies by sqrt(E)).
    # TODO(synk): tgt_mask is assumed batch/head-invariant (the standard causal mask)
    # and src_mask a query-invariant key-padding mask; fully general per-batch/query
    # masks would need the full (N, Sq, Sk) bias blocks back.
    neg = jnp.float32(-1e20) * inv_scale
    zero = jnp.float32(0.0)
    tgt_bias = jnp.where(tgt_mask.reshape(-1, Sq, Sq)[0] == 0, neg, zero)        # (Sq, Sq)
    src_bias = jnp.where(src_mask.reshape(N, -1, Sk)[:, 0, :] == 0, neg, zero)   # (N, Sk)
    src_bias = src_bias.reshape(N, 1, Sk)

    kern = functools.partial(_decoder_block_kernel, nhead=nhead, d_head=D)

    # per-batch activation / mask blocks (double-buffered across the batch grid)
    act_q = pl.BlockSpec((1, Sq, E), lambda n: (n, 0, 0))
    act_k = pl.BlockSpec((1, Sk, E), lambda n: (n, 0, 0))
    sbias_spec = pl.BlockSpec((1, 1, Sk), lambda n: (n, 0, 0))

    # grid-invariant weights / biases / tgt mask: fetched once, single-buffered
    def const_spec(shape):
        return pl.BlockSpec(shape, lambda n, _s=shape: tuple(0 for _ in _s),
                            pipeline_mode=pl.Buffered(1))

    return pl.pallas_call(
        kern,
        out_shape=jax.ShapeDtypeStruct((N, Sq, E), jnp.float32),
        grid=(N,),
        in_specs=[
            act_q, act_k, act_k, const_spec((Sq, Sq)), sbias_spec,
            const_spec((D, D)), const_spec((D, D)), const_spec((D, D)),
            const_spec((E, E)), const_spec((1, E)),
            const_spec((1, E)), const_spec((1, E)),
            const_spec((D, D)), const_spec((D, D)), const_spec((D, D)),
            const_spec((E, E)), const_spec((1, E)),
            const_spec((1, E)), const_spec((1, E)),
            const_spec((E, Hdim)), const_spec((1, Hdim)),
            const_spec((Hdim, E)), const_spec((1, E)),
            const_spec((1, E)), const_spec((1, E)),
        ],
        out_specs=pl.BlockSpec((1, Sq, E), lambda n: (n, 0, 0)),
        compiler_params=pltpu.CompilerParams(
            dimension_semantics=("parallel",),
            vmem_limit_bytes=32 * 1024 * 1024),
    )(x, enc_value, enc_key, tgt_bias, src_bias,
      wq1, wk1, wv1, wo1, bo1,
      params["norm_g"].reshape(1, E), params["norm_b"].reshape(1, E),
      wq2, wk2, wv2, wo2, bo2,
      tb["ln1_g"].reshape(1, E), tb["ln1_b"].reshape(1, E),
      w1_t, tb["b1"].reshape(1, Hdim),
      w2_t, tb["b2"].reshape(1, E),
      tb["ln2_g"].reshape(1, E), tb["ln2_b"].reshape(1, E))


# ---------------------------------------------------------------------------
# Parameter construction (deterministic, matches the PyTorch module shapes)
# ---------------------------------------------------------------------------
def init_params(key, emb, nhead, forward_expansion):
    D = emb // nhead
    Hdim = forward_expansion * emb
    ks = jax.random.split(key, 16)
    s = 0.1

    def attn_params(k0, k1, k2, k3, k4):
        return {
            "wv": jax.random.normal(k0, (D, D), jnp.float32) * s,
            "wk": jax.random.normal(k1, (D, D), jnp.float32) * s,
            "wq": jax.random.normal(k2, (D, D), jnp.float32) * s,
            "wo": jax.random.normal(k3, (emb, emb), jnp.float32) * s,
            "bo": jax.random.normal(k4, (emb,), jnp.float32) * s,
        }

    return {
        "attn1": attn_params(*ks[0:5]),           # DecoderBlock.attention
        "norm_g": jnp.ones((emb,), jnp.float32),  # DecoderBlock.norm
        "norm_b": jnp.zeros((emb,), jnp.float32),
        "attn2": attn_params(*ks[5:10]),          # TransformerBlock.attention
        "tb": {
            "ln1_g": jnp.ones((emb,), jnp.float32),
            "ln1_b": jnp.zeros((emb,), jnp.float32),
            "w1": jax.random.normal(ks[10], (Hdim, emb), jnp.float32) * s,
            "b1": jax.random.normal(ks[11], (Hdim,), jnp.float32) * s,
            "w2": jax.random.normal(ks[12], (emb, Hdim), jnp.float32) * s,
            "b2": jax.random.normal(ks[13], (emb,), jnp.float32) * s,
            "ln2_g": jnp.ones((emb,), jnp.float32),
            "ln2_b": jnp.zeros((emb,), jnp.float32),
        },
    }


if __name__ == "__main__":
    N, S, E = 2, 8, 32
    NHEAD = 4
    FWD_EXP = 4

    key = jax.random.PRNGKey(0)
    kx, kv, kk, kp = jax.random.split(key, 4)

    x = jax.random.normal(kx, (N, S, E), jnp.float32)
    enc_value = jax.random.normal(kv, (N, S, E), jnp.float32)
    enc_key = jax.random.normal(kk, (N, S, E), jnp.float32)

    # causal target mask (shared across batch/heads); src mask is a key-padding
    # mask that hides the last key position of batch 1 (query-invariant).
    tgt_mask = jnp.tril(jnp.ones((S, S), jnp.float32))[None, None].repeat(N, axis=0)
    src_mask = jnp.ones((N, 1, S, S), jnp.float32)
    src_mask = src_mask.at[1, 0, :, -1].set(0.0)

    params = init_params(kp, E, NHEAD, FWD_EXP)

    fwd = jax.jit(functools.partial(decoder_block, nhead=NHEAD))
    out = fwd(params, x, enc_value, enc_key, src_mask, tgt_mask)
    out = jax.block_until_ready(out)

    assert out.shape == (N, S, E) and out.dtype == jnp.float32
    assert bool(jnp.all(jnp.isfinite(out)))
    print("KERNEL_OK")
</pallas_src>

<mosaic_0001>
module attributes {stable_mosaic.version = 11 : i64} {
  func.func @_decoder_block_kernel(%arg0: i32, %arg1: memref<1x8x32xf32, #tpu.memory_space<vmem>>, %arg2: memref<1x8x32xf32, #tpu.memory_space<vmem>>, %arg3: memref<1x8x32xf32, #tpu.memory_space<vmem>>, %arg4: memref<8x8xf32, #tpu.memory_space<vmem>>, %arg5: memref<1x1x8xf32, #tpu.memory_space<vmem>>, %arg6: memref<8x8xbf16, #tpu.memory_space<vmem>>, %arg7: memref<8x8xbf16, #tpu.memory_space<vmem>>, %arg8: memref<8x8xbf16, #tpu.memory_space<vmem>>, %arg9: memref<32x32xbf16, #tpu.memory_space<vmem>>, %arg10: memref<1x32xf32, #tpu.memory_space<vmem>>, %arg11: memref<1x32xf32, #tpu.memory_space<vmem>>, %arg12: memref<1x32xf32, #tpu.memory_space<vmem>>, %arg13: memref<8x8xbf16, #tpu.memory_space<vmem>>, %arg14: memref<8x8xbf16, #tpu.memory_space<vmem>>, %arg15: memref<8x8xbf16, #tpu.memory_space<vmem>>, %arg16: memref<32x32xbf16, #tpu.memory_space<vmem>>, %arg17: memref<1x32xf32, #tpu.memory_space<vmem>>, %arg18: memref<1x32xf32, #tpu.memory_space<vmem>>, %arg19: memref<1x32xf32, #tpu.memory_space<vmem>>, %arg20: memref<32x128xbf16, #tpu.memory_space<vmem>>, %arg21: memref<1x128xf32, #tpu.memory_space<vmem>>, %arg22: memref<128x32xbf16, #tpu.memory_space<vmem>>, %arg23: memref<1x32xf32, #tpu.memory_space<vmem>>, %arg24: memref<1x32xf32, #tpu.memory_space<vmem>>, %arg25: memref<1x32xf32, #tpu.memory_space<vmem>>, %arg26: memref<1x8x32xf32, #tpu.memory_space<vmem>>) attributes {dimension_semantics = [#tpu.dimension_semantics<parallel>], iteration_bounds = array<i64: 2>, scalar_prefetch = 0 : i64, scratch_operands = 0 : i64, tpu.core_type = #tpu.core_type<tc>, window_params = [{transform_indices = @transform_0, window_bounds = array<i64: 1, 8, 32>}, {transform_indices = @transform_1, window_bounds = array<i64: 1, 8, 32>}, {transform_indices = @transform_2, window_bounds = array<i64: 1, 8, 32>}, {pipeline_mode = #tpu.pipeline_mode<synchronous>, transform_indices = @transform_3, window_bounds = array<i64: 8, 8>}, {transform_indices = @transform_4, window_bounds = array<i64: 1, 1, 8>}, {pipeline_mode = #tpu.pipeline_mode<synchronous>, transform_indices = @transform_5, window_bounds = array<i64: 8, 8>}, {pipeline_mode = #tpu.pipeline_mode<synchronous>, transform_indices = @transform_6, window_bounds = array<i64: 8, 8>}, {pipeline_mode = #tpu.pipeline_mode<synchronous>, transform_indices = @transform_7, window_bounds = array<i64: 8, 8>}, {pipeline_mode = #tpu.pipeline_mode<synchronous>, transform_indices = @transform_8, window_bounds = array<i64: 32, 32>}, {pipeline_mode = #tpu.pipeline_mode<synchronous>, transform_indices = @transform_9, window_bounds = array<i64: 1, 32>}, {pipeline_mode = #tpu.pipeline_mode<synchronous>, transform_indices = @transform_10, window_bounds = array<i64: 1, 32>}, {pipeline_mode = #tpu.pipeline_mode<synchronous>, transform_indices = @transform_11, window_bounds = array<i64: 1, 32>}, {pipeline_mode = #tpu.pipeline_mode<synchronous>, transform_indices = @transform_12, window_bounds = array<i64: 8, 8>}, {pipeline_mode = #tpu.pipeline_mode<synchronous>, transform_indices = @transform_13, window_bounds = array<i64: 8, 8>}, {pipeline_mode = #tpu.pipeline_mode<synchronous>, transform_indices = @transform_14, window_bounds = array<i64: 8, 8>}, {pipeline_mode = #tpu.pipeline_mode<synchronous>, transform_indices = @transform_15, window_bounds = array<i64: 32, 32>}, {pipeline_mode = #tpu.pipeline_mode<synchronous>, transform_indices = @transform_16, window_bounds = array<i64: 1, 32>}, {pipeline_mode = #tpu.pipeline_mode<synchronous>, transform_indices = @transform_17, window_bounds = array<i64: 1, 32>}, {pipeline_mode = #tpu.pipeline_mode<synchronous>, transform_indices = @transform_18, window_bounds = array<i64: 1, 32>}, {pipeline_mode = #tpu.pipeline_mode<synchronous>, transform_indices = @transform_19, window_bounds = array<i64: 32, 128>}, {pipeline_mode = #tpu.pipeline_mode<synchronous>, transform_indices = @transform_20, window_bounds = array<i64: 1, 128>}, {pipeline_mode = #tpu.pipeline_mode<synchronous>, transform_indices = @transform_21, window_bounds = array<i64: 128, 32>}, {pipeline_mode = #tpu.pipeline_mode<synchronous>, transform_indices = @transform_22, window_bounds = array<i64: 1, 32>}, {pipeline_mode = #tpu.pipeline_mode<synchronous>, transform_indices = @transform_23, window_bounds = array<i64: 1, 32>}, {pipeline_mode = #tpu.pipeline_mode<synchronous>, transform_indices = @transform_24, window_bounds = array<i64: 1, 32>}, {transform_indices = @transform_25, window_bounds = array<i64: 1, 8, 32>}]} {
    %c0 = arith.constant 0 : index
    %c0_0 = arith.constant 0 : index
    %c0_1 = arith.constant 0 : index
    %0 = vector.load %arg1[%c0, %c0_0, %c0_1] : memref<1x8x32xf32, #tpu.memory_space<vmem>>, vector<1x8x32xf32>
    %1 = vector.shape_cast %0 : vector<1x8x32xf32> to vector<8x32xf32>
    %c0_2 = arith.constant 0 : index
    %c0_3 = arith.constant 0 : index
    %c0_4 = arith.constant 0 : index
    %2 = vector.load %arg2[%c0_2, %c0_3, %c0_4] : memref<1x8x32xf32, #tpu.memory_space<vmem>>, vector<1x8x32xf32>
    %3 = vector.shape_cast %2 : vector<1x8x32xf32> to vector<8x32xf32>
    %c0_5 = arith.constant 0 : index
    %c0_6 = arith.constant 0 : index
    %c0_7 = arith.constant 0 : index
    %4 = vector.load %arg3[%c0_5, %c0_6, %c0_7] : memref<1x8x32xf32, #tpu.memory_space<vmem>>, vector<1x8x32xf32>
    %5 = vector.shape_cast %4 : vector<1x8x32xf32> to vector<8x32xf32>
    %c0_8 = arith.constant 0 : index
    %c0_9 = arith.constant 0 : index
    %6 = vector.load %arg4[%c0_8, %c0_9] : memref<8x8xf32, #tpu.memory_space<vmem>>, vector<8x8xf32>
    %c0_10 = arith.constant 0 : index
    %c0_11 = arith.constant 0 : index
    %c0_12 = arith.constant 0 : index
    %7 = vector.load %arg5[%c0_10, %c0_11, %c0_12] : memref<1x1x8xf32, #tpu.memory_space<vmem>>, vector<1x1x8xf32>
    %8 = vector.shape_cast %7 : vector<1x1x8xf32> to vector<1x8xf32>
    %9 = arith.truncf %1 : vector<8x32xf32> to vector<8x32xbf16>
    %c0_13 = arith.constant 0 : index
    %c0_14 = arith.constant 0 : index
    %10 = vector.load %arg6[%c0_13, %c0_14] : memref<8x8xbf16, #tpu.memory_space<vmem>>, vector<8x8xbf16>
    %c0_15 = arith.constant 0 : index
    %c0_16 = arith.constant 0 : index
    %11 = vector.load %arg7[%c0_15, %c0_16] : memref<8x8xbf16, #tpu.memory_space<vmem>>, vector<8x8xbf16>
    %c0_17 = arith.constant 0 : index
    %c0_18 = arith.constant 0 : index
    %12 = vector.load %arg8[%c0_17, %c0_18] : memref<8x8xbf16, #tpu.memory_space<vmem>>, vector<8x8xbf16>
    %c0_19 = arith.constant 0 : index
    %c0_20 = arith.constant 0 : index
    %13 = vector.load %arg9[%c0_19, %c0_20] : memref<32x32xbf16, #tpu.memory_space<vmem>>, vector<32x32xbf16>
    %14 = vector.extract_strided_slice %9 {offsets = [0, 0], sizes = [8, 8], strides = [1, 1]} : vector<8x32xbf16> to vector<8x8xbf16>
    %cst = arith.constant dense<0.000000e+00> : vector<8x8xf32>
    %15 = tpu.matmul %14, %10, %cst {dimension_numbers = #tpu.dot_dimension_numbers<[1], [0], [0], [1], [0, 0, 1, 1], [], []>} : vector<8x8xbf16>, vector<8x8xbf16>, vector<8x8xf32> -> vector<8x8xf32>
    %16 = arith.truncf %15 : vector<8x8xf32> to vector<8x8xbf16>
    %17 = vector.extract_strided_slice %9 {offsets = [0, 0], sizes = [8, 8], strides = [1, 1]} : vector<8x32xbf16> to vector<8x8xbf16>
    %cst_21 = arith.constant dense<0.000000e+00> : vector<8x8xf32>
    %18 = tpu.matmul %17, %11, %cst_21 {dimension_numbers = #tpu.dot_dimension_numbers<[1], [0], [0], [1], [0, 0, 1, 1], [], []>} : vector<8x8xbf16>, vector<8x8xbf16>, vector<8x8xf32> -> vector<8x8xf32>
    %19 = arith.truncf %18 : vector<8x8xf32> to vector<8x8xbf16>
    %20 = vector.extract_strided_slice %9 {offsets = [0, 0], sizes = [8, 8], strides = [1, 1]} : vector<8x32xbf16> to vector<8x8xbf16>
    %cst_22 = arith.constant dense<0.000000e+00> : vector<8x8xf32>
    %21 = tpu.matmul %20, %12, %cst_22 {dimension_numbers = #tpu.dot_dimension_numbers<[1], [0], [0], [1], [0, 0, 1, 1], [], []>} : vector<8x8xbf16>, vector<8x8xbf16>, vector<8x8xf32> -> vector<8x8xf32>
    %22 = arith.truncf %21 : vector<8x8xf32> to vector<8x8xbf16>
    %cst_23 = arith.constant dense<0.000000e+00> : vector<8x8xf32>
    %23 = tpu.matmul %16, %19, %cst_23 {dimension_numbers = #tpu.dot_dimension_numbers<[1], [1], [0], [0], [0, 0, 1, 0], [], []>} : vector<8x8xbf16>, vector<8x8xbf16>, vector<8x8xf32> -> vector<8x8xf32>
    %24 = arith.addf %23, %6 : vector<8x8xf32>
    %cst_24 = arith.constant dense<0xFF800000> : vector<8xf32>
    %25 = vector.multi_reduction <maximumf>, %24, %cst_24 [1] : vector<8x8xf32> to vector<8xf32>
    %26 = vector.shape_cast %25 : vector<8xf32> to vector<8x1xf32>
    %27 = vector.broadcast %26 : vector<8x1xf32> to vector<8x8xf32>
    %28 = arith.subf %24, %27 : vector<8x8xf32>
    %29 = math.exp %28 : vector<8x8xf32>
    %cst_25 = arith.constant dense<0.000000e+00> : vector<8xf32>
    %30 = vector.multi_reduction <add>, %29, %cst_25 [1] : vector<8x8xf32> to vector<8xf32>
    %31 = vector.shape_cast %30 : vector<8xf32> to vector<8x1xf32>
    %32 = tpu.reciprocal %31 {approx = true} : vector<8x1xf32> -> vector<8x1xf32>
    %33 = vector.broadcast %32 : vector<8x1xf32> to vector<8x8xf32>
    %34 = arith.mulf %29, %33 : vector<8x8xf32>
    %35 = arith.truncf %34 : vector<8x8xf32> to vector<8x8xbf16>
    %cst_26 = arith.constant dense<0.000000e+00> : vector<8x8xf32>
    %36 = tpu.matmul %35, %22, %cst_26 {dimension_numbers = #tpu.dot_dimension_numbers<[1], [0], [0], [1], [0, 0, 1, 1], [], []>} : vector<8x8xbf16>, vector<8x8xbf16>, vector<8x8xf32> -> vector<8x8xf32>
    %37 = arith.truncf %36 : vector<8x8xf32> to vector<8x8xbf16>
    %38 = vector.extract_strided_slice %13 {offsets = [0, 0], sizes = [8, 32], strides = [1, 1]} : vector<32x32xbf16> to vector<8x32xbf16>
    %cst_27 = arith.constant dense<0.000000e+00> : vector<8x32xf32>
    %39 = tpu.matmul %37, %38, %cst_27 {dimension_numbers = #tpu.dot_dimension_numbers<[1], [0], [0], [1], [0, 0, 1, 1], [], []>} : vector<8x8xbf16>, vector<8x32xbf16>, vector<8x32xf32> -> vector<8x32xf32>
    %40 = vector.extract_strided_slice %9 {offsets = [0, 8], sizes = [8, 8], strides = [1, 1]} : vector<8x32xbf16> to vector<8x8xbf16>
    %cst_28 = arith.constant dense<0.000000e+00> : vector<8x8xf32>
    %41 = tpu.matmul %40, %10, %cst_28 {dimension_numbers = #tpu.dot_dimension_numbers<[1], [0], [0], [1], [0, 0, 1, 1], [], []>} : vector<8x8xbf16>, vector<8x8xbf16>, vector<8x8xf32> -> vector<8x8xf32>
    %42 = arith.truncf %41 : vector<8x8xf32> to vector<8x8xbf16>
    %43 = vector.extract_strided_slice %9 {offsets = [0, 8], sizes = [8, 8], strides = [1, 1]} : vector<8x32xbf16> to vector<8x8xbf16>
    %cst_29 = arith.constant dense<0.000000e+00> : vector<8x8xf32>
    %44 = tpu.matmul %43, %11, %cst_29 {dimension_numbers = #tpu.dot_dimension_numbers<[1], [0], [0], [1], [0, 0, 1, 1], [], []>} : vector<8x8xbf16>, vector<8x8xbf16>, vector<8x8xf32> -> vector<8x8xf32>
    %45 = arith.truncf %44 : vector<8x8xf32> to vector<8x8xbf16>
    %46 = vector.extract_strided_slice %9 {offsets = [0, 8], sizes = [8, 8], strides = [1, 1]} : vector<8x32xbf16> to vector<8x8xbf16>
    %cst_30 = arith.constant dense<0.000000e+00> : vector<8x8xf32>
    %47 = tpu.matmul %46, %12, %cst_30 {dimension_numbers = #tpu.dot_dimension_numbers<[1], [0], [0], [1], [0, 0, 1, 1], [], []>} : vector<8x8xbf16>, vector<8x8xbf16>, vector<8x8xf32> -> vector<8x8xf32>
    %48 = arith.truncf %47 : vector<8x8xf32> to vector<8x8xbf16>
    %cst_31 = arith.constant dense<0.000000e+00> : vector<8x8xf32>
    %49 = tpu.matmul %42, %45, %cst_31 {dimension_numbers = #tpu.dot_dimension_numbers<[1], [1], [0], [0], [0, 0, 1, 0], [], []>} : vector<8x8xbf16>, vector<8x8xbf16>, vector<8x8xf32> -> vector<8x8xf32>
    %50 = arith.addf %49, %6 : vector<8x8xf32>
    %cst_32 = arith.constant dense<0xFF800000> : vector<8xf32>
    %51 = vector.multi_reduction <maximumf>, %50, %cst_32 [1] : vector<8x8xf32> to vector<8xf32>
    %52 = vector.shape_cast %51 : vector<8xf32> to vector<8x1xf32>
    %53 = vector.broadcast %52 : vector<8x1xf32> to vector<8x8xf32>
    %54 = arith.subf %50, %53 : vector<8x8xf32>
    %55 = math.exp %54 : vector<8x8xf32>
    %cst_33 = arith.constant dense<0.000000e+00> : vector<8xf32>
    %56 = vector.multi_reduction <add>, %55, %cst_33 [1] : vector<8x8xf32> to vector<8xf32>
    %57 = vector.shape_cast %56 : vector<8xf32> to vector<8x1xf32>
    %58 = tpu.reciprocal %57 {approx = true} : vector<8x1xf32> -> vector<8x1xf32>
    %59 = vector.broadcast %58 : vector<8x1xf32> to vector<8x8xf32>
    %60 = arith.mulf %55, %59 : vector<8x8xf32>
    %61 = arith.truncf %60 : vector<8x8xf32> to vector<8x8xbf16>
    %cst_34 = arith.constant dense<0.000000e+00> : vector<8x8xf32>
    %62 = tpu.matmul %61, %48, %cst_34 {dimension_numbers = #tpu.dot_dimension_numbers<[1], [0], [0], [1], [0, 0, 1, 1], [], []>} : vector<8x8xbf16>, vector<8x8xbf16>, vector<8x8xf32> -> vector<8x8xf32>
    %63 = arith.truncf %62 : vector<8x8xf32> to vector<8x8xbf16>
    %64 = vector.extract_strided_slice %13 {offsets = [8, 0], sizes = [8, 32], strides = [1, 1]} : vector<32x32xbf16> to vector<8x32xbf16>
    %cst_35 = arith.constant dense<0.000000e+00> : vector<8x32xf32>
    %65 = tpu.matmul %63, %64, %cst_35 {dimension_numbers = #tpu.dot_dimension_numbers<[1], [0], [0], [1], [0, 0, 1, 1], [], []>} : vector<8x8xbf16>, vector<8x32xbf16>, vector<8x32xf32> -> vector<8x32xf32>
    %66 = arith.addf %39, %65 : vector<8x32xf32>
    %67 = vector.extract_strided_slice %9 {offsets = [0, 16], sizes = [8, 8], strides = [1, 1]} : vector<8x32xbf16> to vector<8x8xbf16>
    %cst_36 = arith.constant dense<0.000000e+00> : vector<8x8xf32>
    %68 = tpu.matmul %67, %10, %cst_36 {dimension_numbers = #tpu.dot_dimension_numbers<[1], [0], [0], [1], [0, 0, 1, 1], [], []>} : vector<8x8xbf16>, vector<8x8xbf16>, vector<8x8xf32> -> vector<8x8xf32>
    %69 = arith.truncf %68 : vector<8x8xf32> to vector<8x8xbf16>
    %70 = vector.extract_strided_slice %9 {offsets = [0, 16], sizes = [8, 8], strides = [1, 1]} : vector<8x32xbf16> to vector<8x8xbf16>
    %cst_37 = arith.constant dense<0.000000e+00> : vector<8x8xf32>
    %71 = tpu.matmul %70, %11, %cst_37 {dimension_numbers = #tpu.dot_dimension_numbers<[1], [0], [0], [1], [0, 0, 1, 1], [], []>} : vector<8x8xbf16>, vector<8x8xbf16>, vector<8x8xf32> -> vector<8x8xf32>
    %72 = arith.truncf %71 : vector<8x8xf32> to vector<8x8xbf16>
    %73 = vector.extract_strided_slice %9 {offsets = [0, 16], sizes = [8, 8], strides = [1, 1]} : vector<8x32xbf16> to vector<8x8xbf16>
    %cst_38 = arith.constant dense<0.000000e+00> : vector<8x8xf32>
    %74 = tpu.matmul %73, %12, %cst_38 {dimension_numbers = #tpu.dot_dimension_numbers<[1], [0], [0], [1], [0, 0, 1, 1], [], []>} : vector<8x8xbf16>, vector<8x8xbf16>, vector<8x8xf32> -> vector<8x8xf32>
    %75 = arith.truncf %74 : vector<8x8xf32> to vector<8x8xbf16>
    %cst_39 = arith.constant dense<0.000000e+00> : vector<8x8xf32>
    %76 = tpu.matmul %69, %72, %cst_39 {dimension_numbers = #tpu.dot_dimension_numbers<[1], [1], [0], [0], [0, 0, 1, 0], [], []>} : vector<8x8xbf16>, vector<8x8xbf16>, vector<8x8xf32> -> vector<8x8xf32>
    %77 = arith.addf %76, %6 : vector<8x8xf32>
    %cst_40 = arith.constant dense<0xFF800000> : vector<8xf32>
    %78 = vector.multi_reduction <maximumf>, %77, %cst_40 [1] : vector<8x8xf32> to vector<8xf32>
    %79 = vector.shape_cast %78 : vector<8xf32> to vector<8x1xf32>
    %80 = vector.broadcast %79 : vector<8x1xf32> to vector<8x8xf32>
    %81 = arith.subf %77, %80 : vector<8x8xf32>
    %82 = math.exp %81 : vector<8x8xf32>
    %cst_41 = arith.constant dense<0.000000e+00> : vector<8xf32>
    %83 = vector.multi_reduction <add>, %82, %cst_41 [1] : vector<8x8xf32> to vector<8xf32>
    %84 = vector.shape_cast %83 : vector<8xf32> to vector<8x1xf32>
    %85 = tpu.reciprocal %84 {approx = true} : vector<8x1xf32> -> vector<8x1xf32>
    %86 = vector.broadcast %85 : vector<8x1xf32> to vector<8x8xf32>
    %87 = arith.mulf %82, %86 : vector<8x8xf32>
    %88 = arith.truncf %87 : vector<8x8xf32> to vector<8x8xbf16>
    %cst_42 = arith.constant dense<0.000000e+00> : vector<8x8xf32>
    %89 = tpu.matmul %88, %75, %cst_42 {dimension_numbers = #tpu.dot_dimension_numbers<[1], [0], [0], [1], [0, 0, 1, 1], [], []>} : vector<8x8xbf16>, vector<8x8xbf16>, vector<8x8xf32> -> vector<8x8xf32>
    %90 = arith.truncf %89 : vector<8x8xf32> to vector<8x8xbf16>
    %91 = vector.extract_strided_slice %13 {offsets = [16, 0], sizes = [8, 32], strides = [1, 1]} : vector<32x32xbf16> to vector<8x32xbf16>
    %cst_43 = arith.constant dense<0.000000e+00> : vector<8x32xf32>
    %92 = tpu.matmul %90, %91, %cst_43 {dimension_numbers = #tpu.dot_dimension_numbers<[1], [0], [0], [1], [0, 0, 1, 1], [], []>} : vector<8x8xbf16>, vector<8x32xbf16>, vector<8x32xf32> -> vector<8x32xf32>
    %93 = arith.addf %66, %92 : vector<8x32xf32>
    %94 = vector.extract_strided_slice %9 {offsets = [0, 24], sizes = [8, 8], strides = [1, 1]} : vector<8x32xbf16> to vector<8x8xbf16>
    %cst_44 = arith.constant dense<0.000000e+00> : vector<8x8xf32>
    %95 = tpu.matmul %94, %10, %cst_44 {dimension_numbers = #tpu.dot_dimension_numbers<[1], [0], [0], [1], [0, 0, 1, 1], [], []>} : vector<8x8xbf16>, vector<8x8xbf16>, vector<8x8xf32> -> vector<8x8xf32>
    %96 = arith.truncf %95 : vector<8x8xf32> to vector<8x8xbf16>
    %97 = vector.extract_strided_slice %9 {offsets = [0, 24], sizes = [8, 8], strides = [1, 1]} : vector<8x32xbf16> to vector<8x8xbf16>
    %cst_45 = arith.constant dense<0.000000e+00> : vector<8x8xf32>
    %98 = tpu.matmul %97, %11, %cst_45 {dimension_numbers = #tpu.dot_dimension_numbers<[1], [0], [0], [1], [0, 0, 1, 1], [], []>} : vector<8x8xbf16>, vector<8x8xbf16>, vector<8x8xf32> -> vector<8x8xf32>
    %99 = arith.truncf %98 : vector<8x8xf32> to vector<8x8xbf16>
    %100 = vector.extract_strided_slice %9 {offsets = [0, 24], sizes = [8, 8], strides = [1, 1]} : vector<8x32xbf16> to vector<8x8xbf16>
    %cst_46 = arith.constant dense<0.000000e+00> : vector<8x8xf32>
    %101 = tpu.matmul %100, %12, %cst_46 {dimension_numbers = #tpu.dot_dimension_numbers<[1], [0], [0], [1], [0, 0, 1, 1], [], []>} : vector<8x8xbf16>, vector<8x8xbf16>, vector<8x8xf32> -> vector<8x8xf32>
    %102 = arith.truncf %101 : vector<8x8xf32> to vector<8x8xbf16>
    %cst_47 = arith.constant dense<0.000000e+00> : vector<8x8xf32>
    %103 = tpu.matmul %96, %99, %cst_47 {dimension_numbers = #tpu.dot_dimension_numbers<[1], [1], [0], [0], [0, 0, 1, 0], [], []>} : vector<8x8xbf16>, vector<8x8xbf16>, vector<8x8xf32> -> vector<8x8xf32>
    %104 = arith.addf %103, %6 : vector<8x8xf32>
    %cst_48 = arith.constant dense<0xFF800000> : vector<8xf32>
    %105 = vector.multi_reduction <maximumf>, %104, %cst_48 [1] : vector<8x8xf32> to vector<8xf32>
    %106 = vector.shape_cast %105 : vector<8xf32> to vector<8x1xf32>
    %107 = vector.broadcast %106 : vector<8x1xf32> to vector<8x8xf32>
    %108 = arith.subf %104, %107 : vector<8x8xf32>
    %109 = math.exp %108 : vector<8x8xf32>
    %cst_49 = arith.constant dense<0.000000e+00> : vector<8xf32>
    %110 = vector.multi_reduction <add>, %109, %cst_49 [1] : vector<8x8xf32> to vector<8xf32>
    %111 = vector.shape_cast %110 : vector<8xf32> to vector<8x1xf32>
    %112 = tpu.reciprocal %111 {approx = true} : vector<8x1xf32> -> vector<8x1xf32>
    %113 = vector.broadcast %112 : vector<8x1xf32> to vector<8x8xf32>
    %114 = arith.mulf %109, %113 : vector<8x8xf32>
    %115 = arith.truncf %114 : vector<8x8xf32> to vector<8x8xbf16>
    %cst_50 = arith.constant dense<0.000000e+00> : vector<8x8xf32>
    %116 = tpu.matmul %115, %102, %cst_50 {dimension_numbers = #tpu.dot_dimension_numbers<[1], [0], [0], [1], [0, 0, 1, 1], [], []>} : vector<8x8xbf16>, vector<8x8xbf16>, vector<8x8xf32> -> vector<8x8xf32>
    %117 = arith.truncf %116 : vector<8x8xf32> to vector<8x8xbf16>
    %118 = vector.extract_strided_slice %13 {offsets = [24, 0], sizes = [8, 32], strides = [1, 1]} : vector<32x32xbf16> to vector<8x32xbf16>
    %cst_51 = arith.constant dense<0.000000e+00> : vector<8x32xf32>
    %119 = tpu.matmul %117, %118, %cst_51 {dimension_numbers = #tpu.dot_dimension_numbers<[1], [0], [0], [1], [0, 0, 1, 1], [], []>} : vector<8x8xbf16>, vector<8x32xbf16>, vector<8x32xf32> -> vector<8x32xf32>
    %120 = arith.addf %93, %119 : vector<8x32xf32>
    %c0_52 = arith.constant 0 : index
    %c0_53 = arith.constant 0 : index
    %121 = vector.load %arg10[%c0_52, %c0_53] : memref<1x32xf32, #tpu.memory_space<vmem>>, vector<1x32xf32>
    %122 = vector.broadcast %121 : vector<1x32xf32> to vector<8x32xf32>
    %123 = arith.addf %120, %122 : vector<8x32xf32>
    %124 = arith.addf %123, %1 : vector<8x32xf32>
    %c0_54 = arith.constant 0 : index
    %c0_55 = arith.constant 0 : index
    %125 = vector.load %arg11[%c0_54, %c0_55] : memref<1x32xf32, #tpu.memory_space<vmem>>, vector<1x32xf32>
    %c0_56 = arith.constant 0 : index
    %c0_57 = arith.constant 0 : index
    %126 = vector.load %arg12[%c0_56, %c0_57] : memref<1x32xf32, #tpu.memory_space<vmem>>, vector<1x32xf32>
    %cst_58 = arith.constant dense<0.000000e+00> : vector<8xf32>
    %127 = vector.multi_reduction <add>, %124, %cst_58 [1] : vector<8x32xf32> to vector<8xf32>
    %128 = vector.shape_cast %127 : vector<8xf32> to vector<8x1xf32>
    %cst_59 = arith.constant 3.200000e+01 : f32
    %129 = vector.broadcast %cst_59 : f32 to vector<8x1xf32>
    %130 = arith.divf %128, %129 : vector<8x1xf32>
    %131 = arith.mulf %124, %124 : vector<8x32xf32>
    %cst_60 = arith.constant dense<0.000000e+00> : vector<8xf32>
    %132 = vector.multi_reduction <add>, %131, %cst_60 [1] : vector<8x32xf32> to vector<8xf32>
    %133 = vector.shape_cast %132 : vector<8xf32> to vector<8x1xf32>
    %cst_61 = arith.constant 3.200000e+01 : f32
    %134 = vector.broadcast %cst_61 : f32 to vector<8x1xf32>
    %135 = arith.divf %133, %134 : vector<8x1xf32>
    %136 = arith.mulf %130, %130 : vector<8x1xf32>
    %137 = arith.subf %135, %136 : vector<8x1xf32>
    %138 = vector.broadcast %130 : vector<8x1xf32> to vector<8x32xf32>
    %139 = arith.subf %124, %138 : vector<8x32xf32>
    %cst_62 = arith.constant 9.99999974E-6 : f32
    %140 = vector.broadcast %cst_62 : f32 to vector<8x1xf32>
    %141 = arith.addf %137, %140 : vector<8x1xf32>
    %142 = math.rsqrt %141 : vector<8x1xf32>
    %143 = vector.broadcast %142 : vector<8x1xf32> to vector<8x32xf32>
    %144 = arith.mulf %139, %143 : vector<8x32xf32>
    %145 = vector.broadcast %125 : vector<1x32xf32> to vector<8x32xf32>
    %146 = arith.mulf %144, %145 : vector<8x32xf32>
    %147 = vector.broadcast %126 : vector<1x32xf32> to vector<8x32xf32>
    %148 = arith.addf %146, %147 : vector<8x32xf32>
    %149 = arith.truncf %148 : vector<8x32xf32> to vector<8x32xbf16>
    %150 = arith.truncf %5 : vector<8x32xf32> to vector<8x32xbf16>
    %151 = arith.truncf %3 : vector<8x32xf32> to vector<8x32xbf16>
    %c0_63 = arith.constant 0 : index
    %c0_64 = arith.constant 0 : index
    %152 = vector.load %arg13[%c0_63, %c0_64] : memref<8x8xbf16, #tpu.memory_space<vmem>>, vector<8x8xbf16>
    %c0_65 = arith.constant 0 : index
    %c0_66 = arith.constant 0 : index
    %153 = vector.load %arg14[%c0_65, %c0_66] : memref<8x8xbf16, #tpu.memory_space<vmem>>, vector<8x8xbf16>
    %c0_67 = arith.constant 0 : index
    %c0_68 = arith.constant 0 : index
    %154 = vector.load %arg15[%c0_67, %c0_68] : memref<8x8xbf16, #tpu.memory_space<vmem>>, vector<8x8xbf16>
    %c0_69 = arith.constant 0 : index
    %c0_70 = arith.constant 0 : index
    %155 = vector.load %arg16[%c0_69, %c0_70] : memref<32x32xbf16, #tpu.memory_space<vmem>>, vector<32x32xbf16>
    %156 = vector.extract_strided_slice %149 {offsets = [0, 0], sizes = [8, 8], strides = [1, 1]} : vector<8x32xbf16> to vector<8x8xbf16>
    %cst_71 = arith.constant dense<0.000000e+00> : vector<8x8xf32>
    %157 = tpu.matmul %156, %152, %cst_71 {dimension_numbers = #tpu.dot_dimension_numbers<[1], [0], [0], [1], [0, 0, 1, 1], [], []>} : vector<8x8xbf16>, vector<8x8xbf16>, vector<8x8xf32> -> vector<8x8xf32>
    %158 = arith.truncf %157 : vector<8x8xf32> to vector<8x8xbf16>
    %159 = vector.extract_strided_slice %150 {offsets = [0, 0], sizes = [8, 8], strides = [1, 1]} : vector<8x32xbf16> to vector<8x8xbf16>
    %cst_72 = arith.constant dense<0.000000e+00> : vector<8x8xf32>
    %160 = tpu.matmul %159, %153, %cst_72 {dimension_numbers = #tpu.dot_dimension_numbers<[1], [0], [0], [1], [0, 0, 1, 1], [], []>} : vector<8x8xbf16>, vector<8x8xbf16>, vector<8x8xf32> -> vector<8x8xf32>
    %161 = arith.truncf %160 : vector<8x8xf32> to vector<8x8xbf16>
    %162 = vector.extract_strided_slice %151 {offsets = [0, 0], sizes = [8, 8], strides = [1, 1]} : vector<8x32xbf16> to vector<8x8xbf16>
    %cst_73 = arith.constant dense<0.000000e+00> : vector<8x8xf32>
    %163 = tpu.matmul %162, %154, %cst_73 {dimension_numbers = #tpu.dot_dimension_numbers<[1], [0], [0], [1], [0, 0, 1, 1], [], []>} : vector<8x8xbf16>, vector<8x8xbf16>, vector<8x8xf32> -> vector<8x8xf32>
    %164 = arith.truncf %163 : vector<8x8xf32> to vector<8x8xbf16>
    %cst_74 = arith.constant dense<0.000000e+00> : vector<8x8xf32>
    %165 = tpu.matmul %158, %161, %cst_74 {dimension_numbers = #tpu.dot_dimension_numbers<[1], [1], [0], [0], [0, 0, 1, 0], [], []>} : vector<8x8xbf16>, vector<8x8xbf16>, vector<8x8xf32> -> vector<8x8xf32>
    %166 = vector.broadcast %8 : vector<1x8xf32> to vector<8x8xf32>
    %167 = arith.addf %165, %166 : vector<8x8xf32>
    %cst_75 = arith.constant dense<0xFF800000> : vector<8xf32>
    %168 = vector.multi_reduction <maximumf>, %167, %cst_75 [1] : vector<8x8xf32> to vector<8xf32>
    %169 = vector.shape_cast %168 : vector<8xf32> to vector<8x1xf32>
    %170 = vector.broadcast %169 : vector<8x1xf32> to vector<8x8xf32>
    %171 = arith.subf %167, %170 : vector<8x8xf32>
    %172 = math.exp %171 : vector<8x8xf32>
    %cst_76 = arith.constant dense<0.000000e+00> : vector<8xf32>
    %173 = vector.multi_reduction <add>, %172, %cst_76 [1] : vector<8x8xf32> to vector<8xf32>
    %174 = vector.shape_cast %173 : vector<8xf32> to vector<8x1xf32>
    %175 = tpu.reciprocal %174 {approx = true} : vector<8x1xf32> -> vector<8x1xf32>
    %176 = vector.broadcast %175 : vector<8x1xf32> to vector<8x8xf32>
    %177 = arith.mulf %172, %176 : vector<8x8xf32>
    %178 = arith.truncf %177 : vector<8x8xf32> to vector<8x8xbf16>
    %cst_77 = arith.constant dense<0.000000e+00> : vector<8x8xf32>
    %179 = tpu.matmul %178, %164, %cst_77 {dimension_numbers = #tpu.dot_dimension_numbers<[1], [0], [0], [1], [0, 0, 1, 1], [], []>} : vector<8x8xbf16>, vector<8x8xbf16>, vector<8x8xf32> -> vector<8x8xf32>
    %180 = arith.truncf %179 : vector<8x8xf32> to vector<8x8xbf16>
    %181 = vector.extract_strided_slice %155 {offsets = [0, 0], sizes = [8, 32], strides = [1, 1]} : vector<32x32xbf16> to vector<8x32xbf16>
    %cst_78 = arith.constant dense<0.000000e+00> : vector<8x32xf32>
    %182 = tpu.matmul %180, %181, %cst_78 {dimension_numbers = #tpu.dot_dimension_numbers<[1], [0], [0], [1], [0, 0, 1, 1], [], []>} : vector<8x8xbf16>, vector<8x32xbf16>, vector<8x32xf32> -> vector<8x32xf32>
    %183 = vector.extract_strided_slice %149 {offsets = [0, 8], sizes = [8, 8], strides = [1, 1]} : vector<8x32xbf16> to vector<8x8xbf16>
    %cst_79 = arith.constant dense<0.000000e+00> : vector<8x8xf32>
    %184 = tpu.matmul %183, %152, %cst_79 {dimension_numbers = #tpu.dot_dimension_numbers<[1], [0], [0], [1], [0, 0, 1, 1], [], []>} : vector<8x8xbf16>, vector<8x8xbf16>, vector<8x8xf32> -> vector<8x8xf32>
    %185 = arith.truncf %184 : vector<8x8xf32> to vector<8x8xbf16>
    %186 = vector.extract_strided_slice %150 {offsets = [0, 8], sizes = [8, 8], strides = [1, 1]} : vector<8x32xbf16> to vector<8x8xbf16>
    %cst_80 = arith.constant dense<0.000000e+00> : vector<8x8xf32>
    %187 = tpu.matmul %186, %153, %cst_80 {dimension_numbers = #tpu.dot_dimension_numbers<[1], [0], [0], [1], [0, 0, 1, 1], [], []>} : vector<8x8xbf16>, vector<8x8xbf16>, vector<8x8xf32> -> vector<8x8xf32>
    %188 = arith.truncf %187 : vector<8x8xf32> to vector<8x8xbf16>
    %189 = vector.extract_strided_slice %151 {offsets = [0, 8], sizes = [8, 8], strides = [1, 1]} : vector<8x32xbf16> to vector<8x8xbf16>
    %cst_81 = arith.constant dense<0.000000e+00> : vector<8x8xf32>
    %190 = tpu.matmul %189, %154, %cst_81 {dimension_numbers = #tpu.dot_dimension_numbers<[1], [0], [0], [1], [0, 0, 1, 1], [], []>} : vector<8x8xbf16>, vector<8x8xbf16>, vector<8x8xf32> -> vector<8x8xf32>
    %191 = arith.truncf %190 : vector<8x8xf32> to vector<8x8xbf16>
    %cst_82 = arith.constant dense<0.000000e+00> : vector<8x8xf32>
    %192 = tpu.matmul %185, %188, %cst_82 {dimension_numbers = #tpu.dot_dimension_numbers<[1], [1], [0], [0], [0, 0, 1, 0], [], []>} : vector<8x8xbf16>, vector<8x8xbf16>, vector<8x8xf32> -> vector<8x8xf32>
    %193 = vector.broadcast %8 : vector<1x8xf32> to vector<8x8xf32>
    %194 = arith.addf %192, %193 : vector<8x8xf32>
    %cst_83 = arith.constant dense<0xFF800000> : vector<8xf32>
    %195 = vector.multi_reduction <maximumf>, %194, %cst_83 [1] : vector<8x8xf32> to vector<8xf32>
    %196 = vector.shape_cast %195 : vector<8xf32> to vector<8x1xf32>
    %197 = vector.broadcast %196 : vector<8x1xf32> to vector<8x8xf32>
    %198 = arith.subf %194, %197 : vector<8x8xf32>
    %199 = math.exp %198 : vector<8x8xf32>
    %cst_84 = arith.constant dense<0.000000e+00> : vector<8xf32>
    %200 = vector.multi_reduction <add>, %199, %cst_84 [1] : vector<8x8xf32> to vector<8xf32>
    %201 = vector.shape_cast %200 : vector<8xf32> to vector<8x1xf32>
    %202 = tpu.reciprocal %201 {approx = true} : vector<8x1xf32> -> vector<8x1xf32>
    %203 = vector.broadcast %202 : vector<8x1xf32> to vector<8x8xf32>
    %204 = arith.mulf %199, %203 : vector<8x8xf32>
    %205 = arith.truncf %204 : vector<8x8xf32> to vector<8x8xbf16>
    %cst_85 = arith.constant dense<0.000000e+00> : vector<8x8xf32>
    %206 = tpu.matmul %205, %191, %cst_85 {dimension_numbers = #tpu.dot_dimension_numbers<[1], [0], [0], [1], [0, 0, 1, 1], [], []>} : vector<8x8xbf16>, vector<8x8xbf16>, vector<8x8xf32> -> vector<8x8xf32>
    %207 = arith.truncf %206 : vector<8x8xf32> to vector<8x8xbf16>
    %208 = vector.extract_strided_slice %155 {offsets = [8, 0], sizes = [8, 32], strides = [1, 1]} : vector<32x32xbf16> to vector<8x32xbf16>
    %cst_86 = arith.constant dense<0.000000e+00> : vector<8x32xf32>
    %209 = tpu.matmul %207, %208, %cst_86 {dimension_numbers = #tpu.dot_dimension_numbers<[1], [0], [0], [1], [0, 0, 1, 1], [], []>} : vector<8x8xbf16>, vector<8x32xbf16>, vector<8x32xf32> -> vector<8x32xf32>
    %210 = arith.addf %182, %209 : vector<8x32xf32>
    %211 = vector.extract_strided_slice %149 {offsets = [0, 16], sizes = [8, 8], strides = [1, 1]} : vector<8x32xbf16> to vector<8x8xbf16>
    %cst_87 = arith.constant dense<0.000000e+00> : vector<8x8xf32>
    %212 = tpu.matmul %211, %152, %cst_87 {dimension_numbers = #tpu.dot_dimension_numbers<[1], [0], [0], [1], [0, 0, 1, 1], [], []>} : vector<8x8xbf16>, vector<8x8xbf16>, vector<8x8xf32> -> vector<8x8xf32>
    %213 = arith.truncf %212 : vector<8x8xf32> to vector<8x8xbf16>
    %214 = vector.extract_strided_slice %150 {offsets = [0, 16], sizes = [8, 8], strides = [1, 1]} : vector<8x32xbf16> to vector<8x8xbf16>
    %cst_88 = arith.constant dense<0.000000e+00> : vector<8x8xf32>
    %215 = tpu.matmul %214, %153, %cst_88 {dimension_numbers = #tpu.dot_dimension_numbers<[1], [0], [0], [1], [0, 0, 1, 1], [], []>} : vector<8x8xbf16>, vector<8x8xbf16>, vector<8x8xf32> -> vector<8x8xf32>
    %216 = arith.truncf %215 : vector<8x8xf32> to vector<8x8xbf16>
    %217 = vector.extract_strided_slice %151 {offsets = [0, 16], sizes = [8, 8], strides = [1, 1]} : vector<8x32xbf16> to vector<8x8xbf16>
    %cst_89 = arith.constant dense<0.000000e+00> : vector<8x8xf32>
    %218 = tpu.matmul %217, %154, %cst_89 {dimension_numbers = #tpu.dot_dimension_numbers<[1], [0], [0], [1], [0, 0, 1, 1], [], []>} : vector<8x8xbf16>, vector<8x8xbf16>, vector<8x8xf32> -> vector<8x8xf32>
    %219 = arith.truncf %218 : vector<8x8xf32> to vector<8x8xbf16>
    %cst_90 = arith.constant dense<0.000000e+00> : vector<8x8xf32>
    %220 = tpu.matmul %213, %216, %cst_90 {dimension_numbers = #tpu.dot_dimension_numbers<[1], [1], [0], [0], [0, 0, 1, 0], [], []>} : vector<8x8xbf16>, vector<8x8xbf16>, vector<8x8xf32> -> vector<8x8xf32>
    %221 = vector.broadcast %8 : vector<1x8xf32> to vector<8x8xf32>
    %222 = arith.addf %220, %221 : vector<8x8xf32>
    %cst_91 = arith.constant dense<0xFF800000> : vector<8xf32>
    %223 = vector.multi_reduction <maximumf>, %222, %cst_91 [1] : vector<8x8xf32> to vector<8xf32>
    %224 = vector.shape_cast %223 : vector<8xf32> to vector<8x1xf32>
    %225 = vector.broadcast %224 : vector<8x1xf32> to vector<8x8xf32>
    %226 = arith.subf %222, %225 : vector<8x8xf32>
    %227 = math.exp %226 : vector<8x8xf32>
    %cst_92 = arith.constant dense<0.000000e+00> : vector<8xf32>
    %228 = vector.multi_reduction <add>, %227, %cst_92 [1] : vector<8x8xf32> to vector<8xf32>
    %229 = vector.shape_cast %228 : vector<8xf32> to vector<8x1xf32>
    %230 = tpu.reciprocal %229 {approx = true} : vector<8x1xf32> -> vector<8x1xf32>
    %231 = vector.broadcast %230 : vector<8x1xf32> to vector<8x8xf32>
    %232 = arith.mulf %227, %231 : vector<8x8xf32>
    %233 = arith.truncf %232 : vector<8x8xf32> to vector<8x8xbf16>
    %cst_93 = arith.constant dense<0.000000e+00> : vector<8x8xf32>
    %234 = tpu.matmul %233, %219, %cst_93 {dimension_numbers = #tpu.dot_dimension_numbers<[1], [0], [0], [1], [0, 0, 1, 1], [], []>} : vector<8x8xbf16>, vector<8x8xbf16>, vector<8x8xf32> -> vector<8x8xf32>
    %235 = arith.truncf %234 : vector<8x8xf32> to vector<8x8xbf16>
    %236 = vector.extract_strided_slice %155 {offsets = [16, 0], sizes = [8, 32], strides = [1, 1]} : vector<32x32xbf16> to vector<8x32xbf16>
    %cst_94 = arith.constant dense<0.000000e+00> : vector<8x32xf32>
    %237 = tpu.matmul %235, %236, %cst_94 {dimension_numbers = #tpu.dot_dimension_numbers<[1], [0], [0], [1], [0, 0, 1, 1], [], []>} : vector<8x8xbf16>, vector<8x32xbf16>, vector<8x32xf32> -> vector<8x32xf32>
    %238 = arith.addf %210, %237 : vector<8x32xf32>
    %239 = vector.extract_strided_slice %149 {offsets = [0, 24], sizes = [8, 8], strides = [1, 1]} : vector<8x32xbf16> to vector<8x8xbf16>
    %cst_95 = arith.constant dense<0.000000e+00> : vector<8x8xf32>
    %240 = tpu.matmul %239, %152, %cst_95 {dimension_numbers = #tpu.dot_dimension_numbers<[1], [0], [0], [1], [0, 0, 1, 1], [], []>} : vector<8x8xbf16>, vector<8x8xbf16>, vector<8x8xf32> -> vector<8x8xf32>
    %241 = arith.truncf %240 : vector<8x8xf32> to vector<8x8xbf16>
    %242 = vector.extract_strided_slice %150 {offsets = [0, 24], sizes = [8, 8], strides = [1, 1]} : vector<8x32xbf16> to vector<8x8xbf16>
    %cst_96 = arith.constant dense<0.000000e+00> : vector<8x8xf32>
    %243 = tpu.matmul %242, %153, %cst_96 {dimension_numbers = #tpu.dot_dimension_numbers<[1], [0], [0], [1], [0, 0, 1, 1], [], []>} : vector<8x8xbf16>, vector<8x8xbf16>, vector<8x8xf32> -> vector<8x8xf32>
    %244 = arith.truncf %243 : vector<8x8xf32> to vector<8x8xbf16>
    %245 = vector.extract_strided_slice %151 {offsets = [0, 24], sizes = [8, 8], strides = [1, 1]} : vector<8x32xbf16> to vector<8x8xbf16>
    %cst_97 = arith.constant dense<0.000000e+00> : vector<8x8xf32>
    %246 = tpu.matmul %245, %154, %cst_97 {dimension_numbers = #tpu.dot_dimension_numbers<[1], [0], [0], [1], [0, 0, 1, 1], [], []>} : vector<8x8xbf16>, vector<8x8xbf16>, vector<8x8xf32> -> vector<8x8xf32>
    %247 = arith.truncf %246 : vector<8x8xf32> to vector<8x8xbf16>
    %cst_98 = arith.constant dense<0.000000e+00> : vector<8x8xf32>
    %248 = tpu.matmul %241, %244, %cst_98 {dimension_numbers = #tpu.dot_dimension_numbers<[1], [1], [0], [0], [0, 0, 1, 0], [], []>} : vector<8x8xbf16>, vector<8x8xbf16>, vector<8x8xf32> -> vector<8x8xf32>
    %249 = vector.broadcast %8 : vector<1x8xf32> to vector<8x8xf32>
    %250 = arith.addf %248, %249 : vector<8x8xf32>
    %cst_99 = arith.constant dense<0xFF800000> : vector<8xf32>
    %251 = vector.multi_reduction <maximumf>, %250, %cst_99 [1] : vector<8x8xf32> to vector<8xf32>
    %252 = vector.shape_cast %251 : vector<8xf32> to vector<8x1xf32>
    %253 = vector.broadcast %252 : vector<8x1xf32> to vector<8x8xf32>
    %254 = arith.subf %250, %253 : vector<8x8xf32>
    %255 = math.exp %254 : vector<8x8xf32>
    %cst_100 = arith.constant dense<0.000000e+00> : vector<8xf32>
    %256 = vector.multi_reduction <add>, %255, %cst_100 [1] : vector<8x8xf32> to vector<8xf32>
    %257 = vector.shape_cast %256 : vector<8xf32> to vector<8x1xf32>
    %258 = tpu.reciprocal %257 {approx = true} : vector<8x1xf32> -> vector<8x1xf32>
    %259 = vector.broadcast %258 : vector<8x1xf32> to vector<8x8xf32>
    %260 = arith.mulf %255, %259 : vector<8x8xf32>
    %261 = arith.truncf %260 : vector<8x8xf32> to vector<8x8xbf16>
    %cst_101 = arith.constant dense<0.000000e+00> : vector<8x8xf32>
    %262 = tpu.matmul %261, %247, %cst_101 {dimension_numbers = #tpu.dot_dimension_numbers<[1], [0], [0], [1], [0, 0, 1, 1], [], []>} : vector<8x8xbf16>, vector<8x8xbf16>, vector<8x8xf32> -> vector<8x8xf32>
    %263 = arith.truncf %262 : vector<8x8xf32> to vector<8x8xbf16>
    %264 = vector.extract_strided_slice %155 {offsets = [24, 0], sizes = [8, 32], strides = [1, 1]} : vector<32x32xbf16> to vector<8x32xbf16>
    %cst_102 = arith.constant dense<0.000000e+00> : vector<8x32xf32>
    %265 = tpu.matmul %263, %264, %cst_102 {dimension_numbers = #tpu.dot_dimension_numbers<[1], [0], [0], [1], [0, 0, 1, 1], [], []>} : vector<8x8xbf16>, vector<8x32xbf16>, vector<8x32xf32> -> vector<8x32xf32>
    %266 = arith.addf %238, %265 : vector<8x32xf32>
    %c0_103 = arith.constant 0 : index
    %c0_104 = arith.constant 0 : index
    %267 = vector.load %arg17[%c0_103, %c0_104] : memref<1x32xf32, #tpu.memory_space<vmem>>, vector<1x32xf32>
    %268 = vector.broadcast %267 : vector<1x32xf32> to vector<8x32xf32>
    %269 = arith.addf %266, %268 : vector<8x32xf32>
    %270 = arith.addf %269, %148 : vector<8x32xf32>
    %c0_105 = arith.constant 0 : index
    %c0_106 = arith.constant 0 : index
    %271 = vector.load %arg18[%c0_105, %c0_106] : memref<1x32xf32, #tpu.memory_space<vmem>>, vector<1x32xf32>
    %c0_107 = arith.constant 0 : index
    %c0_108 = arith.constant 0 : index
    %272 = vector.load %arg19[%c0_107, %c0_108] : memref<1x32xf32, #tpu.memory_space<vmem>>, vector<1x32xf32>
    %cst_109 = arith.constant dense<0.000000e+00> : vector<8xf32>
    %273 = vector.multi_reduction <add>, %270, %cst_109 [1] : vector<8x32xf32> to vector<8xf32>
    %274 = vector.shape_cast %273 : vector<8xf32> to vector<8x1xf32>
    %cst_110 = arith.constant 3.200000e+01 : f32
    %275 = vector.broadcast %cst_110 : f32 to vector<8x1xf32>
    %276 = arith.divf %274, %275 : vector<8x1xf32>
    %277 = arith.mulf %270, %270 : vector<8x32xf32>
    %cst_111 = arith.constant dense<0.000000e+00> : vector<8xf32>
    %278 = vector.multi_reduction <add>, %277, %cst_111 [1] : vector<8x32xf32> to vector<8xf32>
    %279 = vector.shape_cast %278 : vector<8xf32> to vector<8x1xf32>
    %cst_112 = arith.constant 3.200000e+01 : f32
    %280 = vector.broadcast %cst_112 : f32 to vector<8x1xf32>
    %281 = arith.divf %279, %280 : vector<8x1xf32>
    %282 = arith.mulf %276, %276 : vector<8x1xf32>
    %283 = arith.subf %281, %282 : vector<8x1xf32>
    %284 = vector.broadcast %276 : vector<8x1xf32> to vector<8x32xf32>
    %285 = arith.subf %270, %284 : vector<8x32xf32>
    %cst_113 = arith.constant 9.99999974E-6 : f32
    %286 = vector.broadcast %cst_113 : f32 to vector<8x1xf32>
    %287 = arith.addf %283, %286 : vector<8x1xf32>
    %288 = math.rsqrt %287 : vector<8x1xf32>
    %289 = vector.broadcast %288 : vector<8x1xf32> to vector<8x32xf32>
    %290 = arith.mulf %285, %289 : vector<8x32xf32>
    %291 = vector.broadcast %271 : vector<1x32xf32> to vector<8x32xf32>
    %292 = arith.mulf %290, %291 : vector<8x32xf32>
    %293 = vector.broadcast %272 : vector<1x32xf32> to vector<8x32xf32>
    %294 = arith.addf %292, %293 : vector<8x32xf32>
    %295 = arith.truncf %294 : vector<8x32xf32> to vector<8x32xbf16>
    %c0_114 = arith.constant 0 : index
    %c0_115 = arith.constant 0 : index
    %296 = vector.load %arg20[%c0_114, %c0_115] : memref<32x128xbf16, #tpu.memory_space<vmem>>, vector<32x128xbf16>
    %cst_116 = arith.constant dense<0.000000e+00> : vector<8x128xf32>
    %297 = tpu.matmul %295, %296, %cst_116 {dimension_numbers = #tpu.dot_dimension_numbers<[1], [0], [0], [1], [0, 0, 1, 1], [], []>} : vector<8x32xbf16>, vector<32x128xbf16>, vector<8x128xf32> -> vector<8x128xf32>
    %c0_117 = arith.constant 0 : index
    %c0_118 = arith.constant 0 : index
    %298 = vector.load %arg21[%c0_117, %c0_118] : memref<1x128xf32, #tpu.memory_space<vmem>>, vector<1x128xf32>
    %299 = vector.broadcast %298 : vector<1x128xf32> to vector<8x128xf32>
    %300 = arith.addf %297, %299 : vector<8x128xf32>
    %cst_119 = arith.constant 0.000000e+00 : f32
    %301 = vector.broadcast %cst_119 : f32 to vector<8x128xf32>
    %302 = arith.maximumf %300, %301 : vector<8x128xf32>
    %303 = arith.truncf %302 : vector<8x128xf32> to vector<8x128xbf16>
    %c0_120 = arith.constant 0 : index
    %c0_121 = arith.constant 0 : index
    %304 = vector.load %arg22[%c0_120, %c0_121] : memref<128x32xbf16, #tpu.memory_space<vmem>>, vector<128x32xbf16>
    %cst_122 = arith.constant dense<0.000000e+00> : vector<8x32xf32>
    %305 = tpu.matmul %303, %304, %cst_122 {dimension_numbers = #tpu.dot_dimension_numbers<[1], [0], [0], [1], [0, 0, 1, 1], [], []>} : vector<8x128xbf16>, vector<128x32xbf16>, vector<8x32xf32> -> vector<8x32xf32>
    %c0_123 = arith.constant 0 : index
    %c0_124 = arith.constant 0 : index
    %306 = vector.load %arg23[%c0_123, %c0_124] : memref<1x32xf32, #tpu.memory_space<vmem>>, vector<1x32xf32>
    %307 = vector.broadcast %306 : vector<1x32xf32> to vector<8x32xf32>
    %308 = arith.addf %305, %307 : vector<8x32xf32>
    %309 = arith.addf %308, %294 : vector<8x32xf32>
    %c0_125 = arith.constant 0 : index
    %c0_126 = arith.constant 0 : index
    %310 = vector.load %arg24[%c0_125, %c0_126] : memref<1x32xf32, #tpu.memory_space<vmem>>, vector<1x32xf32>
    %c0_127 = arith.constant 0 : index
    %c0_128 = arith.constant 0 : index
    %311 = vector.load %arg25[%c0_127, %c0_128] : memref<1x32xf32, #tpu.memory_space<vmem>>, vector<1x32xf32>
    %cst_129 = arith.constant dense<0.000000e+00> : vector<8xf32>
    %312 = vector.multi_reduction <add>, %309, %cst_129 [1] : vector<8x32xf32> to vector<8xf32>
    %313 = vector.shape_cast %312 : vector<8xf32> to vector<8x1xf32>
    %cst_130 = arith.constant 3.200000e+01 : f32
    %314 = vector.broadcast %cst_130 : f32 to vector<8x1xf32>
    %315 = arith.divf %313, %314 : vector<8x1xf32>
    %316 = arith.mulf %309, %309 : vector<8x32xf32>
    %cst_131 = arith.constant dense<0.000000e+00> : vector<8xf32>
    %317 = vector.multi_reduction <add>, %316, %cst_131 [1] : vector<8x32xf32> to vector<8xf32>
    %318 = vector.shape_cast %317 : vector<8xf32> to vector<8x1xf32>
    %cst_132 = arith.constant 3.200000e+01 : f32
    %319 = vector.broadcast %cst_132 : f32 to vector<8x1xf32>
    %320 = arith.divf %318, %319 : vector<8x1xf32>
    %321 = arith.mulf %315, %315 : vector<8x1xf32>
    %322 = arith.subf %320, %321 : vector<8x1xf32>
    %323 = vector.broadcast %315 : vector<8x1xf32> to vector<8x32xf32>
    %324 = arith.subf %309, %323 : vector<8x32xf32>
    %cst_133 = arith.constant 9.99999974E-6 : f32
    %325 = vector.broadcast %cst_133 : f32 to vector<8x1xf32>
    %326 = arith.addf %322, %325 : vector<8x1xf32>
    %327 = math.rsqrt %326 : vector<8x1xf32>
    %328 = vector.broadcast %327 : vector<8x1xf32> to vector<8x32xf32>
    %329 = arith.mulf %324, %328 : vector<8x32xf32>
    %330 = vector.broadcast %310 : vector<1x32xf32> to vector<8x32xf32>
    %331 = arith.mulf %329, %330 : vector<8x32xf32>
    %332 = vector.broadcast %311 : vector<1x32xf32> to vector<8x32xf32>
    %333 = arith.addf %331, %332 : vector<8x32xf32>
    %c0_134 = arith.constant 0 : index
    %c0_135 = arith.constant 0 : index
    %c0_136 = arith.constant 0 : index
    %334 = vector.load %arg26[%c0_134, %c0_135, %c0_136] : memref<1x8x32xf32, #tpu.memory_space<vmem>>, vector<1x8x32xf32>
    %335 = vector.shape_cast %334 : vector<1x8x32xf32> to vector<8x32xf32>
    %336 = vector.shape_cast %333 : vector<8x32xf32> to vector<1x8x32xf32>
    tpu.vector_store %arg26[%c0_134, %c0_135, %c0_136], %336 {strides = array<i32>} : memref<1x8x32xf32, #tpu.memory_space<vmem>>, vector<1x8x32xf32>,
    return
  }
  func.func @transform_0(%arg0: i32) -> (i32, i32, i32) {
    %c0_i32 = arith.constant 0 : i32
    %c0_i32_0 = arith.constant 0 : i32
    %c0_i32_1 = arith.constant 0 : i32
    return %arg0, %c0_i32, %c0_i32_0 : i32, i32, i32
  }
  func.func @transform_1(%arg0: i32) -> (i32, i32, i32) {
    %c0_i32 = arith.constant 0 : i32
    %c0_i32_0 = arith.constant 0 : i32
    %c0_i32_1 = arith.constant 0 : i32
    return %arg0, %c0_i32, %c0_i32_0 : i32, i32, i32
  }
  func.func @transform_2(%arg0: i32) -> (i32, i32, i32) {
    %c0_i32 = arith.constant 0 : i32
    %c0_i32_0 = arith.constant 0 : i32
    %c0_i32_1 = arith.constant 0 : i32
    return %arg0, %c0_i32, %c0_i32_0 : i32, i32, i32
  }
  func.func @transform_3(%arg0: i32) -> (i32, i32) {
    %c0_i32 = arith.constant 0 : i32
    %c0_i32_0 = arith.constant 0 : i32
    %c0_i32_1 = arith.constant 0 : i32
    return %c0_i32, %c0_i32_0 : i32, i32
  }
  func.func @transform_4(%arg0: i32) -> (i32, i32, i32) {
    %c0_i32 = arith.constant 0 : i32
    %c0_i32_0 = arith.constant 0 : i32
    %c0_i32_1 = arith.constant 0 : i32
    return %arg0, %c0_i32, %c0_i32_0 : i32, i32, i32
  }
  func.func @transform_5(%arg0: i32) -> (i32, i32) {
    %c0_i32 = arith.constant 0 : i32
    %c0_i32_0 = arith.constant 0 : i32
    %c0_i32_1 = arith.constant 0 : i32
    return %c0_i32, %c0_i32_0 : i32, i32
  }
  func.func @transform_6(%arg0: i32) -> (i32, i32) {
    %c0_i32 = arith.constant 0 : i32
    %c0_i32_0 = arith.constant 0 : i32
    %c0_i32_1 = arith.constant 0 : i32
    return %c0_i32, %c0_i32_0 : i32, i32
  }
  func.func @transform_7(%arg0: i32) -> (i32, i32) {
    %c0_i32 = arith.constant 0 : i32
    %c0_i32_0 = arith.constant 0 : i32
    %c0_i32_1 = arith.constant 0 : i32
    return %c0_i32, %c0_i32_0 : i32, i32
  }
  func.func @transform_8(%arg0: i32) -> (i32, i32) {
    %c0_i32 = arith.constant 0 : i32
    %c0_i32_0 = arith.constant 0 : i32
    %c0_i32_1 = arith.constant 0 : i32
    return %c0_i32, %c0_i32_0 : i32, i32
  }
  func.func @transform_9(%arg0: i32) -> (i32, i32) {
    %c0_i32 = arith.constant 0 : i32
    %c0_i32_0 = arith.constant 0 : i32
    %c0_i32_1 = arith.constant 0 : i32
    return %c0_i32, %c0_i32_0 : i32, i32
  }
  func.func @transform_10(%arg0: i32) -> (i32, i32) {
    %c0_i32 = arith.constant 0 : i32
    %c0_i32_0 = arith.constant 0 : i32
    %c0_i32_1 = arith.constant 0 : i32
    return %c0_i32, %c0_i32_0 : i32, i32
  }
  func.func @transform_11(%arg0: i32) -> (i32, i32) {
    %c0_i32 = arith.constant 0 : i32
    %c0_i32_0 = arith.constant 0 : i32
    %c0_i32_1 = arith.constant 0 : i32
    return %c0_i32, %c0_i32_0 : i32, i32
  }
  func.func @transform_12(%arg0: i32) -> (i32, i32) {
    %c0_i32 = arith.constant 0 : i32
    %c0_i32_0 = arith.constant 0 : i32
    %c0_i32_1 = arith.constant 0 : i32
    return %c0_i32, %c0_i32_0 : i32, i32
  }
  func.func @transform_13(%arg0: i32) -> (i32, i32) {
    %c0_i32 = arith.constant 0 : i32
    %c0_i32_0 = arith.constant 0 : i32
    %c0_i32_1 = arith.constant 0 : i32
    return %c0_i32, %c0_i32_0 : i32, i32
  }
  func.func @transform_14(%arg0: i32) -> (i32, i32) {
    %c0_i32 = arith.constant 0 : i32
    %c0_i32_0 = arith.constant 0 : i32
    %c0_i32_1 = arith.constant 0 : i32
    return %c0_i32, %c0_i32_0 : i32, i32
  }
  func.func @transform_15(%arg0: i32) -> (i32, i32) {
    %c0_i32 = arith.constant 0 : i32
    %c0_i32_0 = arith.constant 0 : i32
    %c0_i32_1 = arith.constant 0 : i32
    return %c0_i32, %c0_i32_0 : i32, i32
  }
  func.func @transform_16(%arg0: i32) -> (i32, i32) {
    %c0_i32 = arith.constant 0 : i32
    %c0_i32_0 = arith.constant 0 : i32
    %c0_i32_1 = arith.constant 0 : i32
    return %c0_i32, %c0_i32_0 : i32, i32
  }
  func.func @transform_17(%arg0: i32) -> (i32, i32) {
    %c0_i32 = arith.constant 0 : i32
    %c0_i32_0 = arith.constant 0 : i32
    %c0_i32_1 = arith.constant 0 : i32
    return %c0_i32, %c0_i32_0 : i32, i32
  }
  func.func @transform_18(%arg0: i32) -> (i32, i32) {
    %c0_i32 = arith.constant 0 : i32
    %c0_i32_0 = arith.constant 0 : i32
    %c0_i32_1 = arith.constant 0 : i32
    return %c0_i32, %c0_i32_0 : i32, i32
  }
  func.func @transform_19(%arg0: i32) -> (i32, i32) {
    %c0_i32 = arith.constant 0 : i32
    %c0_i32_0 = arith.constant 0 : i32
    %c0_i32_1 = arith.constant 0 : i32
    return %c0_i32, %c0_i32_0 : i32, i32
  }
  func.func @transform_20(%arg0: i32) -> (i32, i32) {
    %c0_i32 = arith.constant 0 : i32
    %c0_i32_0 = arith.constant 0 : i32
    %c0_i32_1 = arith.constant 0 : i32
    return %c0_i32, %c0_i32_0 : i32, i32
  }
  func.func @transform_21(%arg0: i32) -> (i32, i32) {
    %c0_i32 = arith.constant 0 : i32
    %c0_i32_0 = arith.constant 0 : i32
    %c0_i32_1 = arith.constant 0 : i32
    return %c0_i32, %c0_i32_0 : i32, i32
  }
  func.func @transform_22(%arg0: i32) -> (i32, i32) {
    %c0_i32 = arith.constant 0 : i32
    %c0_i32_0 = arith.constant 0 : i32
    %c0_i32_1 = arith.constant 0 : i32
    return %c0_i32, %c0_i32_0 : i32, i32
  }
  func.func @transform_23(%arg0: i32) -> (i32, i32) {
    %c0_i32 = arith.constant 0 : i32
    %c0_i32_0 = arith.constant 0 : i32
    %c0_i32_1 = arith.constant 0 : i32
    return %c0_i32, %c0_i32_0 : i32, i32
  }
  func.func @transform_24(%arg0: i32) -> (i32, i32) {
    %c0_i32 = arith.constant 0 : i32
    %c0_i32_0 = arith.constant 0 : i32
    %c0_i32_1 = arith.constant 0 : i32
    return %c0_i32, %c0_i32_0 : i32, i32
  }
  func.func @transform_25(%arg0: i32) -> (i32, i32, i32) {
    %c0_i32 = arith.constant 0 : i32
    %c0_i32_0 = arith.constant 0 : i32
    %c0_i32_1 = arith.constant 0 : i32
    return %arg0, %c0_i32, %c0_i32_0 : i32, i32, i32
  }
}

</mosaic_0001>

<llo_original>
// kernel: decoder_block.1
$region0: #{decoder_block.1}
  #allocation0 [shape = 'u32[]', space=smem, size = 0x4, offset = 0x4, fixed_abs, tag = 'smem constant byte address 0x4 - core index']
  #allocation1 [shape = 'u32[144,128]{1,0:T(1,128)}', space=vmem, size = 0x12000, scoped, tag = 'internal scratch']
  %s0 = inlined_call_operand.vmem [shape: f32[2,8,32], index: 0, kind: input, shape index: {}]
  %s1 = inlined_call_operand.vmem [shape: f32[2,8,32], index: 1, kind: input, shape index: {}]
  %s2 = inlined_call_operand.vmem [shape: f32[2,8,32], index: 2, kind: input, shape index: {}]
  %s3 = inlined_call_operand.vmem [shape: f32[8,8], index: 3, kind: input, shape index: {}]
  %s4 = inlined_call_operand.vmem [shape: f32[2,1,8], index: 4, kind: input, shape index: {}]
  %s5 = inlined_call_operand.vmem [shape: bf16[8,8], index: 5, kind: input, shape index: {}]
  %s6 = inlined_call_operand.vmem [shape: bf16[8,8], index: 6, kind: input, shape index: {}]
  %s7 = inlined_call_operand.vmem [shape: bf16[8,8], index: 7, kind: input, shape index: {}]
  %s8 = inlined_call_operand.vmem [shape: bf16[32,32], index: 8, kind: input, shape index: {}]
  %s9 = inlined_call_operand.vmem [shape: f32[1,32], index: 9, kind: input, shape index: {}]
  %s10 = inlined_call_operand.vmem [shape: f32[1,32], index: 10, kind: input, shape index: {}]
  %s11 = inlined_call_operand.vmem [shape: f32[1,32], index: 11, kind: input, shape index: {}]
  %s12 = inlined_call_operand.vmem [shape: bf16[8,8], index: 12, kind: input, shape index: {}]
  %s13 = inlined_call_operand.vmem [shape: bf16[8,8], index: 13, kind: input, shape index: {}]
  %s14 = inlined_call_operand.vmem [shape: bf16[8,8], index: 14, kind: input, shape index: {}]
  %s15 = inlined_call_operand.vmem [shape: bf16[32,32], index: 15, kind: input, shape index: {}]
  %s16 = inlined_call_operand.vmem [shape: f32[1,32], index: 16, kind: input, shape index: {}]
  %s17 = inlined_call_operand.vmem [shape: f32[1,32], index: 17, kind: input, shape index: {}]
  %s18 = inlined_call_operand.vmem [shape: f32[1,32], index: 18, kind: input, shape index: {}]
  %s19 = inlined_call_operand.vmem [shape: bf16[32,128], index: 19, kind: input, shape index: {}]
  %s20 = inlined_call_operand.vmem [shape: f32[1,128], index: 20, kind: input, shape index: {}]
  %s21 = inlined_call_operand.vmem [shape: bf16[128,32], index: 21, kind: input, shape index: {}]
  %s22 = inlined_call_operand.vmem [shape: f32[1,32], index: 22, kind: input, shape index: {}]
  %s23 = inlined_call_operand.vmem [shape: f32[1,32], index: 23, kind: input, shape index: {}]
  %s24 = inlined_call_operand.vmem [shape: f32[1,32], index: 24, kind: input, shape index: {}]
  %s25 = inlined_call_operand.hbm [shape: f32[2,8,32], index: 25, kind: output, shape index: {}]
  %s26 = sld [smem:[#allocation0]]
  $region133: #{decoder_block.1} parent=0
    _
  %s28 = ssub.s32 1, %s26
  %s29 = scalar_select 0, %s28, %s26
  $region1: #{decoder_block.1} parent=0
    #allocation2 [shape = 'u8[8192]{0}', space=vmem, size = 0x2000, scoped, tag = 'output window, operand 0']
    #allocation3 [shape = 's32[2]{0}', space=sflag, size = 0x8, scoped, tag = 'scoped memory for decoder_block.1']
    %30 = vsyncpa [#allocation3], 0
    %s31 = scalar_lea.sflag [#allocation3], 1
    %32 = vsyncpa %s31, 0
    loop: start=0, step=1, limit=4
    $region2: #{decoder_block.1} parent=1 // loop_pre_header
      _
    $region3: #{decoder_block.1} parent=1 // loop_header
      %s34 = sphi 0, %s38
      %p35 = scmp.ge.s32.totalorder %s34, 4
      %s44 = sphi 0, %s46
      %s47 = sphi 0, %s44
      %s48 = sphi 0, %s47
      %s64 = sphi 0, %s48
      %s70 = sphi 0, %s72
      %s73 = sphi 0, %s70
      %s74 = sphi 0, %s73
      %s90 = sphi 0, %s74
      %s96 = sphi 0, %s98
      %s99 = sphi 0, %s96
      %s100 = sphi 0, %s99
      %s116 = sphi 0, %s100
      %s120 = sphi 0, %s120
      %s122 = sphi 0, %s120
      %s123 = sphi 0, %s122
      %s137 = sphi 0, %s123
      %s143 = sphi 0, %s145
      %s146 = sphi 0, %s143
      %s147 = sphi 0, %s146
      %s163 = sphi 0, %s147
      %s167 = sphi 0, %s167
      %s169 = sphi 0, %s167
      %s170 = sphi 0, %s169
      %s184 = sphi 0, %s170
      %s188 = sphi 0, %s188
      %s190 = sphi 0, %s188
      %s191 = sphi 0, %s190
      %s205 = sphi 0, %s191
      %s209 = sphi 0, %s209
      %s211 = sphi 0, %s209
      %s212 = sphi 0, %s211
      %s226 = sphi 0, %s212
      %s230 = sphi 0, %s230
      %s232 = sphi 0, %s230
      %s233 = sphi 0, %s232
      %s247 = sphi 0, %s233
      %s251 = sphi 0, %s251
      %s253 = sphi 0, %s251
      %s254 = sphi 0, %s253
      %s268 = sphi 0, %s254
      %s272 = sphi 0, %s272
      %s274 = sphi 0, %s272
      %s275 = sphi 0, %s274
      %s289 = sphi 0, %s275
      %s293 = sphi 0, %s293
      %s295 = sphi 0, %s293
      %s296 = sphi 0, %s295
      %s310 = sphi 0, %s296
      %s314 = sphi 0, %s314
      %s316 = sphi 0, %s314
      %s317 = sphi 0, %s316
      %s331 = sphi 0, %s317
      %s335 = sphi 0, %s335
      %s337 = sphi 0, %s335
      %s338 = sphi 0, %s337
      %s352 = sphi 0, %s338
      %s356 = sphi 0, %s356
      %s358 = sphi 0, %s356
      %s359 = sphi 0, %s358
      %s373 = sphi 0, %s359
      %s377 = sphi 0, %s377
      %s379 = sphi 0, %s377
      %s380 = sphi 0, %s379
      %s394 = sphi 0, %s380
      %s398 = sphi 0, %s398
      %s400 = sphi 0, %s398
      %s401 = sphi 0, %s400
      %s415 = sphi 0, %s401
      %s419 = sphi 0, %s419
      %s421 = sphi 0, %s419
      %s422 = sphi 0, %s421
      %s436 = sphi 0, %s422
      %s440 = sphi 0, %s440
      %s442 = sphi 0, %s440
      %s443 = sphi 0, %s442
      %s457 = sphi 0, %s443
      %s461 = sphi 0, %s461
      %s463 = sphi 0, %s461
      %s464 = sphi 0, %s463
      %s478 = sphi 0, %s464
      %s482 = sphi 0, %s482
      %s484 = sphi 0, %s482
      %s485 = sphi 0, %s484
      %s499 = sphi 0, %s485
      %s503 = sphi 0, %s503
      %s505 = sphi 0, %s503
      %s506 = sphi 0, %s505
      %s520 = sphi 0, %s506
      %s524 = sphi 0, %s524
      %s526 = sphi 0, %s524
      %s527 = sphi 0, %s526
      %s541 = sphi 0, %s527
      %s545 = sphi 0, %s545
      %s547 = sphi 0, %s545
      %s548 = sphi 0, %s547
      %s562 = sphi 0, %s548
      %s566 = sphi 0, %s566
      %s568 = sphi 0, %s566
      %s569 = sphi 0, %s568
      %s583 = sphi 0, %s569
      %s589 = sphi 0, %s591
      %s592 = sphi 0, %s589
      %s593 = sphi 0, %s592
      %s609 = sphi 0, %s593
    $region4: #{decoder_block.1} parent=1 // loop_header_branch
      %37 = sbr.rel (%p35) target = $region8
    $region5: #{decoder_block.1} parent=1 // loop_body
      %s39 = ssub.s32 %s34, 1
      %s40 = ssub.s32 %s34, 2
      %s41 = sadd.s32 %s34, 1
      %s42 = ssub.s32 %s34, %s41
      %p43 = scmp.eq.s32.totalorder %s42, 0
      %s45 = sadd.s32 %s44, 1
      %s46 = scalar_select %p43, %s44, %s45
      %p49 = pneg %p43
      %p50 = scmp.eq.s32.totalorder %s34, 1
      %p51 = por %p49, %p50
      %p52 = scmp.ne.s32.totalorder %s44, %s47
      %p53 = scmp.eq.s32.totalorder %s34, 0
      %p54 = por %p52, %p53
      %p55 = scmp.ne.s32.totalorder %s44, %s47
      %p56 = scmp.eq.s32.totalorder %s39, 1
      %p57 = por %p55, %p56
      %p58 = scmp.ne.s32.totalorder %s47, %s48
      %p59 = scmp.eq.s32.totalorder %s39, 0
      %p60 = por %p58, %p59
      %p61 = scmp.ne.s32.totalorder %s47, %s48
      %p62 = scmp.eq.s32.totalorder %s40, 1
      %p63 = por %p61, %p62
      %p65 = scmp.ne.s32.totalorder %s48, %s64
      %p66 = scmp.eq.s32.totalorder %s40, 0
      %p67 = por %p65, %p66
      %s68 = ssub.s32 %s34, %s41
      %p69 = scmp.eq.s32.totalorder %s68, 0
      %s71 = sadd.s32 %s70, 1
      %s72 = scalar_select %p69, %s70, %s71
      %p75 = pneg %p69
      %p76 = scmp.eq.s32.totalorder %s34, 1
      %p77 = por %p75, %p76
      %p78 = scmp.ne.s32.totalorder %s70, %s73
      %p79 = scmp.eq.s32.totalorder %s34, 0
      %p80 = por %p78, %p79
      %p81 = scmp.ne.s32.totalorder %s70, %s73
      %p82 = scmp.eq.s32.totalorder %s39, 1
      %p83 = por %p81, %p82
      %p84 = scmp.ne.s32.totalorder %s73, %s74
      %p85 = scmp.eq.s32.totalorder %s39, 0
      %p86 = por %p84, %p85
      %p87 = scmp.ne.s32.totalorder %s73, %s74
      %p88 = scmp.eq.s32.totalorder %s40, 1
      %p89 = por %p87, %p88
      %p91 = scmp.ne.s32.totalorder %s74, %s90
      %p92 = scmp.eq.s32.totalorder %s40, 0
      %p93 = por %p91, %p92
      %s94 = ssub.s32 %s34, %s41
      %p95 = scmp.eq.s32.totalorder %s94, 0
      %s97 = sadd.s32 %s96, 1
      %s98 = scalar_select %p95, %s96, %s97
      %p101 = pneg %p95
      %p102 = scmp.eq.s32.totalorder %s34, 1
      %p103 = por %p101, %p102
      %p104 = scmp.ne.s32.totalorder %s96, %s99
      %p105 = scmp.eq.s32.totalorder %s34, 0
      %p106 = por %p104, %p105
      %p107 = scmp.ne.s32.totalorder %s96, %s99
      %p108 = scmp.eq.s32.totalorder %s39, 1
      %p109 = por %p107, %p108
      %p110 = scmp.ne.s32.totalorder %s99, %s100
      %p111 = scmp.eq.s32.totalorder %s39, 0
      %p112 = por %p110, %p111
      %p113 = scmp.ne.s32.totalorder %s99, %s100
      %p114 = scmp.eq.s32.totalorder %s40, 1
      %p115 = por %p113, %p114
      %p117 = scmp.ne.s32.totalorder %s100, %s116
      %p118 = scmp.eq.s32.totalorder %s40, 0
      %p119 = por %p117, %p118
      %s121 = sadd.s32 %s120, 1
      %p124 = scmp.eq.s32.totalorder %s34, 1
      %p125 = scmp.ne.s32.totalorder %s120, %s122
      %p126 = scmp.eq.s32.totalorder %s34, 0
      %p127 = por %p125, %p126
      %p128 = scmp.ne.s32.totalorder %s120, %s122
      %p129 = scmp.eq.s32.totalorder %s39, 1
      %p130 = por %p128, %p129
      %p131 = scmp.ne.s32.totalorder %s122, %s123
      %p132 = scmp.eq.s32.totalorder %s39, 0
      %p133 = por %p131, %p132
      %p134 = scmp.ne.s32.totalorder %s122, %s123
      %p135 = scmp.eq.s32.totalorder %s40, 1
      %p136 = por %p134, %p135
      %p138 = scmp.ne.s32.totalorder %s123, %s137
      %p139 = scmp.eq.s32.totalorder %s40, 0
      %p140 = por %p138, %p139
      %s141 = ssub.s32 %s34, %s41
      %p142 = scmp.eq.s32.totalorder %s141, 0
      %s144 = sadd.s32 %s143, 1
      %s145 = scalar_select %p142, %s143, %s144
      %p148 = pneg %p142
      %p149 = scmp.eq.s32.totalorder %s34, 1
      %p150 = por %p148, %p149
      %p151 = scmp.ne.s32.totalorder %s143, %s146
      %p152 = scmp.eq.s32.totalorder %s34, 0
      %p153 = por %p151, %p152
      %p154 = scmp.ne.s32.totalorder %s143, %s146
      %p155 = scmp.eq.s32.totalorder %s39, 1
      %p156 = por %p154, %p155
      %p157 = scmp.ne.s32.totalorder %s146, %s147
      %p158 = scmp.eq.s32.totalorder %s39, 0
      %p159 = por %p157, %p158
      %p160 = scmp.ne.s32.totalorder %s146, %s147
      %p161 = scmp.eq.s32.totalorder %s40, 1
      %p162 = por %p160, %p161
      %p164 = scmp.ne.s32.totalorder %s147, %s163
      %p165 = scmp.eq.s32.totalorder %s40, 0
      %p166 = por %p164, %p165
      %s168 = sadd.s32 %s167, 1
      %p171 = scmp.eq.s32.totalorder %s34, 1
      %p172 = scmp.ne.s32.totalorder %s167, %s169
      %p173 = scmp.eq.s32.totalorder %s34, 0
      %p174 = por %p172, %p173
      %p175 = scmp.ne.s32.totalorder %s167, %s169
      %p176 = scmp.eq.s32.totalorder %s39, 1
      %p177 = por %p175, %p176
      %p178 = scmp.ne.s32.totalorder %s169, %s170
      %p179 = scmp.eq.s32.totalorder %s39, 0
      %p180 = por %p178, %p179
      %p181 = scmp.ne.s32.totalorder %s169, %s170
      %p182 = scmp.eq.s32.totalorder %s40, 1
      %p183 = por %p181, %p182
      %p185 = scmp.ne.s32.totalorder %s170, %s184
      %p186 = scmp.eq.s32.totalorder %s40, 0
      %p187 = por %p185, %p186
      %s189 = sadd.s32 %s188, 1
      %p192 = scmp.eq.s32.totalorder %s34, 1
      %p193 = scmp.ne.s32.totalorder %s188, %s190
      %p194 = scmp.eq.s32.totalorder %s34, 0
      %p195 = por %p193, %p194
      %p196 = scmp.ne.s32.totalorder %s188, %s190
      %p197 = scmp.eq.s32.totalorder %s39, 1
      %p198 = por %p196, %p197
      %p199 = scmp.ne.s32.totalorder %s190, %s191
      %p200 = scmp.eq.s32.totalorder %s39, 0
      %p201 = por %p199, %p200
      %p202 = scmp.ne.s32.totalorder %s190, %s191
      %p203 = scmp.eq.s32.totalorder %s40, 1
      %p204 = por %p202, %p203
      %p206 = scmp.ne.s32.totalorder %s191, %s205
      %p207 = scmp.eq.s32.totalorder %s40, 0
      %p208 = por %p206, %p207
      %s210 = sadd.s32 %s209, 1
      %p213 = scmp.eq.s32.totalorder %s34, 1
      %p214 = scmp.ne.s32.totalorder %s209, %s211
      %p215 = scmp.eq.s32.totalorder %s34, 0
      %p216 = por %p214, %p215
      %p217 = scmp.ne.s32.totalorder %s209, %s211
      %p218 = scmp.eq.s32.totalorder %s39, 1
      %p219 = por %p217, %p218
      %p220 = scmp.ne.s32.totalorder %s211, %s212
      %p221 = scmp.eq.s32.totalorder %s39, 0
      %p222 = por %p220, %p221
      %p223 = scmp.ne.s32.totalorder %s211, %s212
      %p224 = scmp.eq.s32.totalorder %s40, 1
      %p225 = por %p223, %p224
      %p227 = scmp.ne.s32.totalorder %s212, %s226
      %p228 = scmp.eq.s32.totalorder %s40, 0
      %p229 = por %p227, %p228
      %s231 = sadd.s32 %s230, 1
      %p234 = scmp.eq.s32.totalorder %s34, 1
      %p235 = scmp.ne.s32.totalorder %s230, %s232
      %p236 = scmp.eq.s32.totalorder %s34, 0
      %p237 = por %p235, %p236
      %p238 = scmp.ne.s32.totalorder %s230, %s232
      %p239 = scmp.eq.s32.totalorder %s39, 1
      %p240 = por %p238, %p239
      %p241 = scmp.ne.s32.totalorder %s232, %s233
      %p242 = scmp.eq.s32.totalorder %s39, 0
      %p243 = por %p241, %p242
      %p244 = scmp.ne.s32.totalorder %s232, %s233
      %p245 = scmp.eq.s32.totalorder %s40, 1
      %p246 = por %p244, %p245
      %p248 = scmp.ne.s32.totalorder %s233, %s247
      %p249 = scmp.eq.s32.totalorder %s40, 0
      %p250 = por %p248, %p249
      %s252 = sadd.s32 %s251, 1
      %p255 = scmp.eq.s32.totalorder %s34, 1
      %p256 = scmp.ne.s32.totalorder %s251, %s253
      %p257 = scmp.eq.s32.totalorder %s34, 0
      %p258 = por %p256, %p257
      %p259 = scmp.ne.s32.totalorder %s251, %s253
      %p260 = scmp.eq.s32.totalorder %s39, 1
      %p261 = por %p259, %p260
      %p262 = scmp.ne.s32.totalorder %s253, %s254
      %p263 = scmp.eq.s32.totalorder %s39, 0
      %p264 = por %p262, %p263
      %p265 = scmp.ne.s32.totalorder %s253, %s254
      %p266 = scmp.eq.s32.totalorder %s40, 1
      %p267 = por %p265, %p266
      %p269 = scmp.ne.s32.totalorder %s254, %s268
      %p270 = scmp.eq.s32.totalorder %s40, 0
      %p271 = por %p269, %p270
      %s273 = sadd.s32 %s272, 1
      %p276 = scmp.eq.s32.totalorder %s34, 1
      %p277 = scmp.ne.s32.totalorder %s272, %s274
      %p278 = scmp.eq.s32.totalorder %s34, 0
      %p279 = por %p277, %p278
      %p280 = scmp.ne.s32.totalorder %s272, %s274
      %p281 = scmp.eq.s32.totalorder %s39, 1
      %p282 = por %p280, %p281
      %p283 = scmp.ne.s32.totalorder %s274, %s275
      %p284 = scmp.eq.s32.totalorder %s39, 0
      %p285 = por %p283, %p284
      %p286 = scmp.ne.s32.totalorder %s274, %s275
      %p287 = scmp.eq.s32.totalorder %s40, 1
      %p288 = por %p286, %p287
      %p290 = scmp.ne.s32.totalorder %s275, %s289
      %p291 = scmp.eq.s32.totalorder %s40, 0
      %p292 = por %p290, %p291
      %s294 = sadd.s32 %s293, 1
      %p297 = scmp.eq.s32.totalorder %s34, 1
      %p298 = scmp.ne.s32.totalorder %s293, %s295
      %p299 = scmp.eq.s32.totalorder %s34, 0
      %p300 = por %p298, %p299
      %p301 = scmp.ne.s32.totalorder %s293, %s295
      %p302 = scmp.eq.s32.totalorder %s39, 1
      %p303 = por %p301, %p302
      %p304 = scmp.ne.s32.totalorder %s295, %s296
      %p305 = scmp.eq.s32.totalorder %s39, 0
      %p306 = por %p304, %p305
      %p307 = scmp.ne.s32.totalorder %s295, %s296
      %p308 = scmp.eq.s32.totalorder %s40, 1
      %p309 = por %p307, %p308
      %p311 = scmp.ne.s32.totalorder %s296, %s310
      %p312 = scmp.eq.s32.totalorder %s40, 0
      %p313 = por %p311, %p312
      %s315 = sadd.s32 %s314, 1
      %p318 = scmp.eq.s32.totalorder %s34, 1
      %p319 = scmp.ne.s32.totalorder %s314, %s316
      %p320 = scmp.eq.s32.totalorder %s34, 0
      %p321 = por %p319, %p320
      %p322 = scmp.ne.s32.totalorder %s314, %s316
      %p323 = scmp.eq.s32.totalorder %s39, 1
      %p324 = por %p322, %p323
      %p325 = scmp.ne.s32.totalorder %s316, %s317
      %p326 = scmp.eq.s32.totalorder %s39, 0
      %p327 = por %p325, %p326
      %p328 = scmp.ne.s32.totalorder %s316, %s317
      %p329 = scmp.eq.s32.totalorder %s40, 1
      %p330 = por %p328, %p329
      %p332 = scmp.ne.s32.totalorder %s317, %s331
      %p333 = scmp.eq.s32.totalorder %s40, 0
      %p334 = por %p332, %p333
      %s336 = sadd.s32 %s335, 1
      %p339 = scmp.eq.s32.totalorder %s34, 1
      %p340 = scmp.ne.s32.totalorder %s335, %s337
      %p341 = scmp.eq.s32.totalorder %s34, 0
      %p342 = por %p340, %p341
      %p343 = scmp.ne.s32.totalorder %s335, %s337
      %p344 = scmp.eq.s32.totalorder %s39, 1
      %p345 = por %p343, %p344
      %p346 = scmp.ne.s32.totalorder %s337, %s338
      %p347 = scmp.eq.s32.totalorder %s39, 0
      %p348 = por %p346, %p347
      %p349 = scmp.ne.s32.totalorder %s337, %s338
      %p350 = scmp.eq.s32.totalorder %s40, 1
      %p351 = por %p349, %p350
      %p353 = scmp.ne.s32.totalorder %s338, %s352
      %p354 = scmp.eq.s32.totalorder %s40, 0
      %p355 = por %p353, %p354
      %s357 = sadd.s32 %s356, 1
      %p360 = scmp.eq.s32.totalorder %s34, 1
      %p361 = scmp.ne.s32.totalorder %s356, %s358
      %p362 = scmp.eq.s32.totalorder %s34, 0
      %p363 = por %p361, %p362
      %p364 = scmp.ne.s32.totalorder %s356, %s358
      %p365 = scmp.eq.s32.totalorder %s39, 1
      %p366 = por %p364, %p365
      %p367 = scmp.ne.s32.totalorder %s358, %s359
      %p368 = scmp.eq.s32.totalorder %s39, 0
      %p369 = por %p367, %p368
      %p370 = scmp.ne.s32.totalorder %s358, %s359
      %p371 = scmp.eq.s32.totalorder %s40, 1
      %p372 = por %p370, %p371
      %p374 = scmp.ne.s32.totalorder %s359, %s373
      %p375 = scmp.eq.s32.totalorder %s40, 0
      %p376 = por %p374, %p375
      %s378 = sadd.s32 %s377, 1
      %p381 = scmp.eq.s32.totalorder %s34, 1
      %p382 = scmp.ne.s32.totalorder %s377, %s379
      %p383 = scmp.eq.s32.totalorder %s34, 0
      %p384 = por %p382, %p383
      %p385 = scmp.ne.s32.totalorder %s377, %s379
      %p386 = scmp.eq.s32.totalorder %s39, 1
      %p387 = por %p385, %p386
      %p388 = scmp.ne.s32.totalorder %s379, %s380
      %p389 = scmp.eq.s32.totalorder %s39, 0
      %p390 = por %p388, %p389
      %p391 = scmp.ne.s32.totalorder %s379, %s380
      %p392 = scmp.eq.s32.totalorder %s40, 1
      %p393 = por %p391, %p392
      %p395 = scmp.ne.s32.totalorder %s380, %s394
      %p396 = scmp.eq.s32.totalorder %s40, 0
      %p397 = por %p395, %p396
      %s399 = sadd.s32 %s398, 1
      %p402 = scmp.eq.s32.totalorder %s34, 1
      %p403 = scmp.ne.s32.totalorder %s398, %s400
      %p404 = scmp.eq.s32.totalorder %s34, 0
      %p405 = por %p403, %p404
      %p406 = scmp.ne.s32.totalorder %s398, %s400
      %p407 = scmp.eq.s32.totalorder %s39, 1
      %p408 = por %p406, %p407
      %p409 = scmp.ne.s32.totalorder %s400, %s401
      %p410 = scmp.eq.s32.totalorder %s39, 0
      %p411 = por %p409, %p410
      %p412 = scmp.ne.s32.totalorder %s400, %s401
      %p413 = scmp.eq.s32.totalorder %s40, 1
      %p414 = por %p412, %p413
      %p416 = scmp.ne.s32.totalorder %s401, %s415
      %p417 = scmp.eq.s32.totalorder %s40, 0
      %p418 = por %p416, %p417
      %s420 = sadd.s32 %s419, 1
      %p423 = scmp.eq.s32.totalorder %s34, 1
      %p424 = scmp.ne.s32.totalorder %s419, %s421
      %p425 = scmp.eq.s32.totalorder %s34, 0
      %p426 = por %p424, %p425
      %p427 = scmp.ne.s32.totalorder %s419, %s421
      %p428 = scmp.eq.s32.totalorder %s39, 1
      %p429 = por %p427, %p428
      %p430 = scmp.ne.s32.totalorder %s421, %s422
      %p431 = scmp.eq.s32.totalorder %s39, 0
      %p432 = por %p430, %p431
      %p433 = scmp.ne.s32.totalorder %s421, %s422
      %p434 = scmp.eq.s32.totalorder %s40, 1
      %p435 = por %p433, %p434
      %p437 = scmp.ne.s32.totalorder %s422, %s436
      %p438 = scmp.eq.s32.totalorder %s40, 0
      %p439 = por %p437, %p438
      %s441 = sadd.s32 %s440, 1
      %p444 = scmp.eq.s32.totalorder %s34, 1
      %p445 = scmp.ne.s32.totalorder %s440, %s442
      %p446 = scmp.eq.s32.totalorder %s34, 0
      %p447 = por %p445, %p446
      %p448 = scmp.ne.s32.totalorder %s440, %s442
      %p449 = scmp.eq.s32.totalorder %s39, 1
      %p450 = por %p448, %p449
      %p451 = scmp.ne.s32.totalorder %s442, %s443
      %p452 = scmp.eq.s32.totalorder %s39, 0
      %p453 = por %p451, %p452
      %p454 = scmp.ne.s32.totalorder %s442, %s443
      %p455 = scmp.eq.s32.totalorder %s40, 1
      %p456 = por %p454, %p455
      %p458 = scmp.ne.s32.totalorder %s443, %s457
      %p459 = scmp.eq.s32.totalorder %s40, 0
      %p460 = por %p458, %p459
      %s462 = sadd.s32 %s461, 1
      %p465 = scmp.eq.s32.totalorder %s34, 1
      %p466 = scmp.ne.s32.totalorder %s461, %s463
      %p467 = scmp.eq.s32.totalorder %s34, 0
      %p468 = por %p466, %p467
      %p469 = scmp.ne.s32.totalorder %s461, %s463
      %p470 = scmp.eq.s32.totalorder %s39, 1
      %p471 = por %p469, %p470
      %p472 = scmp.ne.s32.totalorder %s463, %s464
      %p473 = scmp.eq.s32.totalorder %s39, 0
      %p474 = por %p472, %p473
      %p475 = scmp.ne.s32.totalorder %s463, %s464
      %p476 = scmp.eq.s32.totalorder %s40, 1
      %p477 = por %p475, %p476
      %p479 = scmp.ne.s32.totalorder %s464, %s478
      %p480 = scmp.eq.s32.totalorder %s40, 0
      %p481 = por %p479, %p480
      %s483 = sadd.s32 %s482, 1
      %p486 = scmp.eq.s32.totalorder %s34, 1
      %p487 = scmp.ne.s32.totalorder %s482, %s484
      %p488 = scmp.eq.s32.totalorder %s34, 0
      %p489 = por %p487, %p488
      %p490 = scmp.ne.s32.totalorder %s482, %s484
      %p491 = scmp.eq.s32.totalorder %s39, 1
      %p492 = por %p490, %p491
      %p493 = scmp.ne.s32.totalorder %s484, %s485
      %p494 = scmp.eq.s32.totalorder %s39, 0
      %p495 = por %p493, %p494
      %p496 = scmp.ne.s32.totalorder %s484, %s485
      %p497 = scmp.eq.s32.totalorder %s40, 1
      %p498 = por %p496, %p497
      %p500 = scmp.ne.s32.totalorder %s485, %s499
      %p501 = scmp.eq.s32.totalorder %s40, 0
      %p502 = por %p500, %p501
      %s504 = sadd.s32 %s503, 1
      %p507 = scmp.eq.s32.totalorder %s34, 1
      %p508 = scmp.ne.s32.totalorder %s503, %s505
      %p509 = scmp.eq.s32.totalorder %s34, 0
      %p510 = por %p508, %p509
      %p511 = scmp.ne.s32.totalorder %s503, %s505
      %p512 = scmp.eq.s32.totalorder %s39, 1
      %p513 = por %p511, %p512
      %p514 = scmp.ne.s32.totalorder %s505, %s506
      %p515 = scmp.eq.s32.totalorder %s39, 0
      %p516 = por %p514, %p515
      %p517 = scmp.ne.s32.totalorder %s505, %s506
      %p518 = scmp.eq.s32.totalorder %s40, 1
      %p519 = por %p517, %p518
      %p521 = scmp.ne.s32.totalorder %s506, %s520
      %p522 = scmp.eq.s32.totalorder %s40, 0
      %p523 = por %p521, %p522
      %s525 = sadd.s32 %s524, 1
      %p528 = scmp.eq.s32.totalorder %s34, 1
      %p529 = scmp.ne.s32.totalorder %s524, %s526
      %p530 = scmp.eq.s32.totalorder %s34, 0
      %p531 = por %p529, %p530
      %p532 = scmp.ne.s32.totalorder %s524, %s526
      %p533 = scmp.eq.s32.totalorder %s39, 1
      %p534 = por %p532, %p533
      %p535 = scmp.ne.s32.totalorder %s526, %s527
      %p536 = scmp.eq.s32.totalorder %s39, 0
      %p537 = por %p535, %p536
      %p538 = scmp.ne.s32.totalorder %s526, %s527
      %p539 = scmp.eq.s32.totalorder %s40, 1
      %p540 = por %p538, %p539
      %p542 = scmp.ne.s32.totalorder %s527, %s541
      %p543 = scmp.eq.s32.totalorder %s40, 0
      %p544 = por %p542, %p543
      %s546 = sadd.s32 %s545, 1
      %p549 = scmp.eq.s32.totalorder %s34, 1
      %p550 = scmp.ne.s32.totalorder %s545, %s547
      %p551 = scmp.eq.s32.totalorder %s34, 0
      %p552 = por %p550, %p551
      %p553 = scmp.ne.s32.totalorder %s545, %s547
      %p554 = scmp.eq.s32.totalorder %s39, 1
      %p555 = por %p553, %p554
      %p556 = scmp.ne.s32.totalorder %s547, %s548
      %p557 = scmp.eq.s32.totalorder %s39, 0
      %p558 = por %p556, %p557
      %p559 = scmp.ne.s32.totalorder %s547, %s548
      %p560 = scmp.eq.s32.totalorder %s40, 1
      %p561 = por %p559, %p560
      %p563 = scmp.ne.s32.totalorder %s548, %s562
      %p564 = scmp.eq.s32.totalorder %s40, 0
      %p565 = por %p563, %p564
      %s567 = sadd.s32 %s566, 1
      %p570 = scmp.eq.s32.totalorder %s34, 1
      %p571 = scmp.ne.s32.totalorder %s566, %s568
      %p572 = scmp.eq.s32.totalorder %s34, 0
      %p573 = por %p571, %p572
      %p574 = scmp.ne.s32.totalorder %s566, %s568
      %p575 = scmp.eq.s32.totalorder %s39, 1
      %p576 = por %p574, %p575
      %p577 = scmp.ne.s32.totalorder %s568, %s569
      %p578 = scmp.eq.s32.totalorder %s39, 0
      %p579 = por %p577, %p578
      %p580 = scmp.ne.s32.totalorder %s568, %s569
      %p581 = scmp.eq.s32.totalorder %s40, 1
      %p582 = por %p580, %p581
      %p584 = scmp.ne.s32.totalorder %s569, %s583
      %p585 = scmp.eq.s32.totalorder %s40, 0
      %p586 = por %p584, %p585
      %s587 = ssub.s32 %s34, %s41
      %p588 = scmp.eq.s32.totalorder %s587, 0
      %s590 = sadd.s32 %s589, 1
      %s591 = scalar_select %p588, %s589, %s590
      %p594 = pneg %p588
      %p595 = scmp.eq.s32.totalorder %s34, 1
      %p596 = por %p594, %p595
      %p597 = scmp.ne.s32.totalorder %s589, %s592
      %p598 = scmp.eq.s32.totalorder %s34, 0
      %p599 = por %p597, %p598
      %p600 = scmp.ne.s32.totalorder %s589, %s592
      %p601 = scmp.eq.s32.totalorder %s39, 1
      %p602 = por %p600, %p601
      %p603 = scmp.ne.s32.totalorder %s592, %s593
      %p604 = scmp.eq.s32.totalorder %s39, 0
      %p605 = por %p603, %p604
      %p606 = scmp.ne.s32.totalorder %s592, %s593
      %p607 = scmp.eq.s32.totalorder %s40, 1
      %p608 = por %p606, %p607
      %p610 = scmp.ne.s32.totalorder %s593, %s609
      %p611 = scmp.eq.s32.totalorder %s40, 0
      %p612 = por %p610, %p611
      %p613 = scmp.le.s32.totalorder 1, %s34
      %p614 = scmp.lt.s32.totalorder %s34, 3
      %p615 = pnand %p613, %p614
      %p616 = pneg %p615
      // Predicated region
      $region9: #{decoder_block.1} parent=5 // pred_check
        _
      $region10: #{decoder_block.1} parent=5 // pred_check_branch
        %618 = sbr.rel (%p615) target = $region12
      $region11: #{decoder_block.1} parent=5 // pred_region
        %s619 = ssub.s32 %s34, 1
        // Predicated region
        $region13: #{decoder_block.1} parent=11 // pred_check
          %p620 = pneg %p133
        $region14: #{decoder_block.1} parent=11 // pred_check_branch
          %622 = sbr.rel (%p620) target = $region16
        $region15: #{decoder_block.1} parent=11 // pred_region
          _
        $region16: #{decoder_block.1} parent=11 // pred_fallthru
          _
        // Predicated region
        $region17: #{decoder_block.1} parent=11 // pred_check
          %p623 = pneg %p180
        $region18: #{decoder_block.1} parent=11 // pred_check_branch
          %625 = sbr.rel (%p623) target = $region20
        $region19: #{decoder_block.1} parent=11 // pred_region
          _
        $region20: #{decoder_block.1} parent=11 // pred_fallthru
          _
        // Predicated region
        $region21: #{decoder_block.1} parent=11 // pred_check
          %p626 = pneg %p201
        $region22: #{decoder_block.1} parent=11 // pred_check_branch
          %628 = sbr.rel (%p626) target = $region24
        $region23: #{decoder_block.1} parent=11 // pred_region
          _
        $region24: #{decoder_block.1} parent=11 // pred_fallthru
          _
        // Predicated region
        $region25: #{decoder_block.1} parent=11 // pred_check
          %p629 = pneg %p222
        $region26: #{decoder_block.1} parent=11 // pred_check_branch
          %631 = sbr.rel (%p629) target = $region28
        $region27: #{decoder_block.1} parent=11 // pred_region
          _
        $region28: #{decoder_block.1} parent=11 // pred_fallthru
          _
        // Predicated region
        $region29: #{decoder_block.1} parent=11 // pred_check
          %p632 = pneg %p243
        $region30: #{decoder_block.1} parent=11 // pred_check_branch
          %634 = sbr.rel (%p632) target = $region32
        $region31: #{decoder_block.1} parent=11 // pred_region
          _
        $region32: #{decoder_block.1} parent=11 // pred_fallthru
          _
        // Predicated region
        $region33: #{decoder_block.1} parent=11 // pred_check
          %p635 = pneg %p264
        $region34: #{decoder_block.1} parent=11 // pred_check_branch
          %637 = sbr.rel (%p635) target = $region36
        $region35: #{decoder_block.1} parent=11 // pred_region
          _
        $region36: #{decoder_block.1} parent=11 // pred_fallthru
          _
        // Predicated region
        $region37: #{decoder_block.1} parent=11 // pred_check
          %p638 = pneg %p285
        $region38: #{decoder_block.1} parent=11 // pred_check_branch
          %640 = sbr.rel (%p638) target = $region40
        $region39: #{decoder_block.1} parent=11 // pred_region
          _
        $region40: #{decoder_block.1} parent=11 // pred_fallthru
          _
        // Predicated region
        $region41: #{decoder_block.1} parent=11 // pred_check
          %p641 = pneg %p306
        $region42: #{decoder_block.1} parent=11 // pred_check_branch
          %643 = sbr.rel (%p641) target = $region44
        $region43: #{decoder_block.1} parent=11 // pred_region
          _
        $region44: #{decoder_block.1} parent=11 // pred_fallthru
          _
        // Predicated region
        $region45: #{decoder_block.1} parent=11 // pred_check
          %p644 = pneg %p327
        $region46: #{decoder_block.1} parent=11 // pred_check_branch
          %646 = sbr.rel (%p644) target = $region48
        $region47: #{decoder_block.1} parent=11 // pred_region
          _
        $region48: #{decoder_block.1} parent=11 // pred_fallthru
          _
        // Predicated region
        $region49: #{decoder_block.1} parent=11 // pred_check
          %p647 = pneg %p348
        $region50: #{decoder_block.1} parent=11 // pred_check_branch
          %649 = sbr.rel (%p647) target = $region52
        $region51: #{decoder_block.1} parent=11 // pred_region
          _
        $region52: #{decoder_block.1} parent=11 // pred_fallthru
          _
        // Predicated region
        $region53: #{decoder_block.1} parent=11 // pred_check
          %p650 = pneg %p369
        $region54: #{decoder_block.1} parent=11 // pred_check_branch
          %652 = sbr.rel (%p650) target = $region56
        $region55: #{decoder_block.1} parent=11 // pred_region
          _
        $region56: #{decoder_block.1} parent=11 // pred_fallthru
          _
        // Predicated region
        $region57: #{decoder_block.1} parent=11 // pred_check
          %p653 = pneg %p390
        $region58: #{decoder_block.1} parent=11 // pred_check_branch
          %655 = sbr.rel (%p653) target = $region60
        $region59: #{decoder_block.1} parent=11 // pred_region
          _
        $region60: #{decoder_block.1} parent=11 // pred_fallthru
          _
        // Predicated region
        $region61: #{decoder_block.1} parent=11 // pred_check
          %p656 = pneg %p411
        $region62: #{decoder_block.1} parent=11 // pred_check_branch
          %658 = sbr.rel (%p656) target = $region64
        $region63: #{decoder_block.1} parent=11 // pred_region
          _
        $region64: #{decoder_block.1} parent=11 // pred_fallthru
          _
        // Predicated region
        $region65: #{decoder_block.1} parent=11 // pred_check
          %p659 = pneg %p432
        $region66: #{decoder_block.1} parent=11 // pred_check_branch
          %661 = sbr.rel (%p659) target = $region68
        $region67: #{decoder_block.1} parent=11 // pred_region
          _
        $region68: #{decoder_block.1} parent=11 // pred_fallthru
          _
        // Predicated region
        $region69: #{decoder_block.1} parent=11 // pred_check
          %p662 = pneg %p453
        $region70: #{decoder_block.1} parent=11 // pred_check_branch
          %664 = sbr.rel (%p662) target = $region72
        $region71: #{decoder_block.1} parent=11 // pred_region
          _
        $region72: #{decoder_block.1} parent=11 // pred_fallthru
          _
        // Predicated region
        $region73: #{decoder_block.1} parent=11 // pred_check
          %p665 = pneg %p474
        $region74: #{decoder_block.1} parent=11 // pred_check_branch
          %667 = sbr.rel (%p665) target = $region76
        $region75: #{decoder_block.1} parent=11 // pred_region
          _
        $region76: #{decoder_block.1} parent=11 // pred_fallthru
          _
        // Predicated region
        $region77: #{decoder_block.1} parent=11 // pred_check
          %p668 = pneg %p495
        $region78: #{decoder_block.1} parent=11 // pred_check_branch
          %670 = sbr.rel (%p668) target = $region80
        $region79: #{decoder_block.1} parent=11 // pred_region
          _
        $region80: #{decoder_block.1} parent=11 // pred_fallthru
          _
        // Predicated region
        $region81: #{decoder_block.1} parent=11 // pred_check
          %p671 = pneg %p516
        $region82: #{decoder_block.1} parent=11 // pred_check_branch
          %673 = sbr.rel (%p671) target = $region84
        $region83: #{decoder_block.1} parent=11 // pred_region
          _
        $region84: #{decoder_block.1} parent=11 // pred_fallthru
          _
        // Predicated region
        $region85: #{decoder_block.1} parent=11 // pred_check
          %p674 = pneg %p537
        $region86: #{decoder_block.1} parent=11 // pred_check_branch
          %676 = sbr.rel (%p674) target = $region88
        $region87: #{decoder_block.1} parent=11 // pred_region
          _
        $region88: #{decoder_block.1} parent=11 // pred_fallthru
          _
        // Predicated region
        $region89: #{decoder_block.1} parent=11 // pred_check
          %p677 = pneg %p558
        $region90: #{decoder_block.1} parent=11 // pred_check_branch
          %679 = sbr.rel (%p677) target = $region92
        $region91: #{decoder_block.1} parent=11 // pred_region
          _
        $region92: #{decoder_block.1} parent=11 // pred_fallthru
          _
        // Predicated region
        $region93: #{decoder_block.1} parent=11 // pred_check
          %p680 = pneg %p579
        $region94: #{decoder_block.1} parent=11 // pred_check_branch
          %682 = sbr.rel (%p680) target = $region96
        $region95: #{decoder_block.1} parent=11 // pred_region
          _
        $region96: #{decoder_block.1} parent=11 // pred_fallthru
          _
      $region12: #{decoder_block.1} parent=5 // pred_fallthru
        _
      %p683 = scmp.lt.s32.totalorder %s34, 2
      // Predicated region
      $region97: #{decoder_block.1} parent=5 // pred_check
        %p684 = pneg %p683
      $region98: #{decoder_block.1} parent=5 // pred_check_branch
        %686 = sbr.rel (%p684) target = $region100
      $region99: #{decoder_block.1} parent=5 // pred_region
        // Predicated region
        $region101: #{decoder_block.1} parent=99 // pred_check
          %p687 = pneg %p54
        $region102: #{decoder_block.1} parent=99 // pred_check_branch
          %689 = sbr.rel (%p687) target = $region104
        $region103: #{decoder_block.1} parent=99 // pred_region
          %p690 = scmp.lt.s32.totalorder %s34, 1
          %s691 = scalar_select %p690, %s34, 1
          %s692 = smul.addr %s691, 8
          %s693 = scalar_lea.vmem %s0, %s692
        $region104: #{decoder_block.1} parent=99 // pred_fallthru
          _
        // Predicated region
        $region105: #{decoder_block.1} parent=99 // pred_check
          %p694 = pneg %p80
        $region106: #{decoder_block.1} parent=99 // pred_check_branch
          %696 = sbr.rel (%p694) target = $region108
        $region107: #{decoder_block.1} parent=99 // pred_region
          %p697 = scmp.lt.s32.totalorder %s34, 1
          %s698 = scalar_select %p697, %s34, 1
          %s699 = smul.addr %s698, 8
          %s700 = scalar_lea.vmem %s1, %s699
        $region108: #{decoder_block.1} parent=99 // pred_fallthru
          _
        // Predicated region
        $region109: #{decoder_block.1} parent=99 // pred_check
          %p701 = pneg %p106
        $region110: #{decoder_block.1} parent=99 // pred_check_branch
          %703 = sbr.rel (%p701) target = $region112
        $region111: #{decoder_block.1} parent=99 // pred_region
          %p704 = scmp.lt.s32.totalorder %s34, 1
          %s705 = scalar_select %p704, %s34, 1
          %s706 = smul.addr %s705, 8
          %s707 = scalar_lea.vmem %s2, %s706
        $region112: #{decoder_block.1} parent=99 // pred_fallthru
          _
        // Predicated region
        $region113: #{decoder_block.1} parent=99 // pred_check
          %p708 = pneg %p153
        $region114: #{decoder_block.1} parent=99 // pred_check_branch
          %710 = sbr.rel (%p708) target = $region116
        $region115: #{decoder_block.1} parent=99 // pred_region
          %p711 = scmp.lt.s32.totalorder %s34, 1
          %s712 = scalar_select %p711, %s34, 1
          %s713 = scalar_lea.vmem %s4, %s712
        $region116: #{decoder_block.1} parent=99 // pred_fallthru
          _
      $region100: #{decoder_block.1} parent=5 // pred_fallthru
        _
      %p714 = scmp.le.s32.totalorder 1, %s34
      %p715 = scmp.lt.s32.totalorder %s34, 3
      %p716 = pnand %p714, %p715
      %p717 = pneg %p716
      // Predicated region
      $region117: #{decoder_block.1} parent=5 // pred_check
        _
      $region118: #{decoder_block.1} parent=5 // pred_check_branch
        %719 = sbr.rel (%p716) target = $region120
      $region119: #{decoder_block.1} parent=5 // pred_region
        %s720 = ssub.s32 %s34, 1
        %p721 = scmp.lt.s32.totalorder %s39, 1
        %s722 = scalar_select %p721, %s39, 1
        %s723 = smul.addr %s722, 8
        %s724 = scalar_lea.vmem %s0, %s723
        %p725 = pneg %p60
        %p726 = pneg %p57
        %p727 = scmp.lt.s32.totalorder %s39, 1
        %s728 = scalar_select %p727, %s39, 1
        %s729 = smul.addr %s728, 8
        %s730 = scalar_lea.vmem %s1, %s729
        %p731 = pneg %p86
        %p732 = pneg %p83
        %p733 = scmp.lt.s32.totalorder %s39, 1
        %s734 = scalar_select %p733, %s39, 1
        %s735 = smul.addr %s734, 8
        %s736 = scalar_lea.vmem %s2, %s735
        %p737 = pneg %p112
        %p738 = pneg %p109
        %p739 = pneg %p133
        %p740 = pneg %p130
        %p741 = scmp.lt.s32.totalorder %s39, 1
        %s742 = scalar_select %p741, %s39, 1
        %s743 = scalar_lea.vmem %s4, %s742
        %p744 = pneg %p159
        %p745 = pneg %p156
        %p746 = pneg %p180
        %p747 = pneg %p177
        %p748 = pneg %p201
        %p749 = pneg %p198
        %p750 = pneg %p222
        %p751 = pneg %p219
        %p752 = pneg %p243
        %p753 = pneg %p240
        %p754 = pneg %p264
        %p755 = pneg %p261
        %p756 = pneg %p285
        %p757 = pneg %p282
        %p758 = pneg %p306
        %p759 = pneg %p303
        %p760 = pneg %p327
        %p761 = pneg %p324
        %p762 = pneg %p348
        %p763 = pneg %p345
        %p764 = pneg %p369
        %p765 = pneg %p366
        %p766 = pneg %p390
        %p767 = pneg %p387
        %p768 = pneg %p411
        %p769 = pneg %p408
        %p770 = pneg %p432
        %p771 = pneg %p429
        %p772 = pneg %p453
        %p773 = pneg %p450
        %p774 = pneg %p474
        %p775 = pneg %p471
        %p776 = pneg %p495
        %p777 = pneg %p492
        %p778 = pneg %p516
        %p779 = pneg %p513
        %p780 = pneg %p537
        %p781 = pneg %p534
        %p782 = pneg %p558
        %p783 = pneg %p555
        %p784 = pneg %p579
        %p785 = pneg %p576
        %p786 = pneg %p605
        %p787 = pneg %p602
        %s788 = sand.u32 %s592, 1
        %s789 = scalar_lea.sflag [#allocation3], %s788
        %s790 = sand.u32 %s592, 1
        %s791 = smul.addr %s790, 8
        %s792 = scalar_lea.vmem [#allocation2], %s791
        %p793 = scmp.lt.s32.totalorder %s39, 1
        %s794 = scalar_select %p793, %s39, 1
        %s795 = smul.addr %s794, 8
        %s796 = scalar_lea.vmem %s0, %s795
        %p797 = scmp.lt.s32.totalorder %s39, 1
        %s798 = scalar_select %p797, %s39, 1
        %s799 = smul.addr %s798, 8
        %s800 = scalar_lea.vmem %s1, %s799
        %p801 = scmp.lt.s32.totalorder %s39, 1
        %s802 = scalar_select %p801, %s39, 1
        %s803 = smul.addr %s802, 8
        %s804 = scalar_lea.vmem %s2, %s803
        %p805 = scmp.lt.s32.totalorder %s39, 1
        %s806 = scalar_select %p805, %s39, 1
        %s807 = scalar_lea.vmem %s4, %s806
        %v809 = vld [vmem:[%s796] sm:$0xff]
        %v810 = vld [vmem:[%s800] sm:$0xff]
        %v811 = vld [vmem:[%s804] sm:$0xff]
        %v812 = vld [vmem:[%s3] sm:$0xff]
        %v813 = vld [vmem:[%s807] sm:$0x1]
        %v814 = vpack.c.bf16 %v809, %v809
        %v815 = vld [vmem:[%s5] sm:$0xf]
        %v816 = vld [vmem:[%s6] sm:$0xf]
        %v817 = vld [vmem:[%s7] sm:$0xf]
        %v818 = vld [vmem:[%s8] sm:$0xf]
        %v819 = vld [vmem:[%s8 + $0x4] sm:$0xf]
        %v820 = vld [vmem:[%s8 + $0x8] sm:$0xf]
        %v821 = vld [vmem:[%s8 + $0xc] sm:$0xf]
        %vm822 = vcmask 64512
        %v824 = vsel %vm822, %v814, 0
        %vm826 = vcmask 1043456
        %v828 = vsel %vm826, %v815, 0
        %830 = vmatprep.subr.bf16.mxu0 0
        %831 = vmatpush1.bf16.msra.mxu0 0
        %832 = vmatprep.subr.bf16.mxu0 0
        %833 = vmatpush1.bf16.msra.mxu0 0
        %834 = vmatprep.subr.bf16.mxu0 0
        %835 = vmatpush1.bf16.msra.mxu0 0
        %836 = vmatprep.subr.bf16.mxu0 0
        %837 = vmatpush1.bf16.msra.mxu0 0
        %838 = vmatprep.subr.bf16.mxu0 0
        %839 = vmatpush1.bf16.msra.mxu0 0
        %840 = vmatprep.subr.bf16.mxu0 0
        %841 = vmatpush1.bf16.msra.mxu0 0
        %842 = vmatprep.subr.bf16.mxu0 0
        %843 = vmatpush1.bf16.msra.mxu0 0
        %844 = vmatprep.subr.bf16.mxu0 0
        %845 = vmatpush1.bf16.msra.mxu0 %v828
        %846 = vmatprep.subr.bf16.mxu0 0
        %847 = vmatpush2.bf16.msra.mxu0 0
        %848 = vmatprep.subr.bf16.mxu0 0
        %849 = vmatpush2.bf16.msra.mxu0 0
        %850 = vmatprep.subr.bf16.mxu0 0
        %851 = vmatpush2.bf16.msra.mxu0 0
        %852 = vmatprep.subr.bf16.mxu0 0
        %853 = vmatpush2.bf16.msra.mxu0 0
        %854 = vmatprep.subr.bf16.mxu0 0
        %855 = vmatpush2.bf16.msra.mxu0 0
        %856 = vmatprep.subr.bf16.mxu0 0
        %857 = vmatpush2.bf16.msra.mxu0 0
        %858 = vmatprep.subr.bf16.mxu0 0
        %859 = vmatpush2.bf16.msra.mxu0 0
        %860 = vmatprep.subr.bf16.mxu0 0
        %861 = vmatpush2.bf16.msra.mxu0 0
        %862 = vmatprep.mubr.bf16.mxu0 0
        %863 = vmatmul.mubr.bf16.gmra.mxu0 %v824
        %v864 = vpop.f32.mrf.mxu0
        %v865 = vadd.f32 0.0, %v864
        %v866 = vpop.f32.mrf.mxu0
        %v867 = vpop.f32.mrf.mxu0
        %v868 = vpop.f32.mrf.mxu0
        %869 = vdwg.mxu0
        %v870 = vpack.c.bf16 %v865, %v865
        %v872 = vsel %vm826, %v816, 0
        %874 = vmatprep.subr.bf16.mxu0 0
        %875 = vmatpush1.bf16.msra.mxu0 0
        %876 = vmatprep.subr.bf16.mxu0 0
        %877 = vmatpush1.bf16.msra.mxu0 0
        %878 = vmatprep.subr.bf16.mxu0 0
        %879 = vmatpush1.bf16.msra.mxu0 0
        %880 = vmatprep.subr.bf16.mxu0 0
        %881 = vmatpush1.bf16.msra.mxu0 0
        %882 = vmatprep.subr.bf16.mxu0 0
        %883 = vmatpush1.bf16.msra.mxu0 0
        %884 = vmatprep.subr.bf16.mxu0 0
        %885 = vmatpush1.bf16.msra.mxu0 0
        %886 = vmatprep.subr.bf16.mxu0 0
        %887 = vmatpush1.bf16.msra.mxu0 0
        %888 = vmatprep.subr.bf16.mxu0 0
        %889 = vmatpush1.bf16.msra.mxu0 %v872
        %890 = vmatprep.subr.bf16.mxu0 0
        %891 = vmatpush2.bf16.msra.mxu0 0
        %892 = vmatprep.subr.bf16.mxu0 0
        %893 = vmatpush2.bf16.msra.mxu0 0
        %894 = vmatprep.subr.bf16.mxu0 0
        %895 = vmatpush2.bf16.msra.mxu0 0
        %896 = vmatprep.subr.bf16.mxu0 0
        %897 = vmatpush2.bf16.msra.mxu0 0
        %898 = vmatprep.subr.bf16.mxu0 0
        %899 = vmatpush2.bf16.msra.mxu0 0
        %900 = vmatprep.subr.bf16.mxu0 0
        %901 = vmatpush2.bf16.msra.mxu0 0
        %902 = vmatprep.subr.bf16.mxu0 0
        %903 = vmatpush2.bf16.msra.mxu0 0
        %904 = vmatprep.subr.bf16.mxu0 0
        %905 = vmatpush2.bf16.msra.mxu0 0
        %906 = vmatprep.mubr.bf16.mxu0 0
        %907 = vmatmul.mubr.bf16.gmra.mxu0 %v824
        %v908 = vpop.f32.mrf.mxu0
        %v909 = vadd.f32 0.0, %v908
        %v910 = vpop.f32.mrf.mxu0
        %v911 = vpop.f32.mrf.mxu0
        %v912 = vpop.f32.mrf.mxu0
        %913 = vdwg.mxu0
        %v914 = vpack.c.bf16 %v909, %v909
        %v916 = vsel %vm826, %v817, 0
        %918 = vmatprep.subr.bf16.mxu0 0
        %919 = vmatpush1.bf16.msra.mxu0 0
        %920 = vmatprep.subr.bf16.mxu0 0
        %921 = vmatpush1.bf16.msra.mxu0 0
        %922 = vmatprep.subr.bf16.mxu0 0
        %923 = vmatpush1.bf16.msra.mxu0 0
        %924 = vmatprep.subr.bf16.mxu0 0
        %925 = vmatpush1.bf16.msra.mxu0 0
        %926 = vmatprep.subr.bf16.mxu0 0
        %927 = vmatpush1.bf16.msra.mxu0 0
        %928 = vmatprep.subr.bf16.mxu0 0
        %929 = vmatpush1.bf16.msra.mxu0 0
        %930 = vmatprep.subr.bf16.mxu0 0
        %931 = vmatpush1.bf16.msra.mxu0 0
        %932 = vmatprep.subr.bf16.mxu0 0
        %933 = vmatpush1.bf16.msra.mxu0 %v916
        %934 = vmatprep.subr.bf16.mxu0 0
        %935 = vmatpush2.bf16.msra.mxu0 0
        %936 = vmatprep.subr.bf16.mxu0 0
        %937 = vmatpush2.bf16.msra.mxu0 0
        %938 = vmatprep.subr.bf16.mxu0 0
        %939 = vmatpush2.bf16.msra.mxu0 0
        %940 = vmatprep.subr.bf16.mxu0 0
        %941 = vmatpush2.bf16.msra.mxu0 0
        %942 = vmatprep.subr.bf16.mxu0 0
        %943 = vmatpush2.bf16.msra.mxu0 0
        %944 = vmatprep.subr.bf16.mxu0 0
        %945 = vmatpush2.bf16.msra.mxu0 0
        %946 = vmatprep.subr.bf16.mxu0 0
        %947 = vmatpush2.bf16.msra.mxu0 0
        %948 = vmatprep.subr.bf16.mxu0 0
        %949 = vmatpush2.bf16.msra.mxu0 0
        %950 = vmatprep.mubr.bf16.mxu0 0
        %951 = vmatmul.mubr.bf16.gmra.mxu0 %v824
        %v952 = vpop.f32.mrf.mxu0
        %v953 = vadd.f32 0.0, %v952
        %v954 = vpop.f32.mrf.mxu0
        %v955 = vpop.f32.mrf.mxu0
        %v956 = vpop.f32.mrf.mxu0
        %957 = vdwg.mxu0
        %v958 = vpack.c.bf16 %v953, %v953
        %v960 = vsel %vm822, %v870, 0
        %v963 = vsel %vm822, %v914, 0
        %965 = vmatprep.subr.bf16.mxu0 0
        %966 = vmatpush1.bf16.xpose.msra.mxu0 0
        %967 = vmatprep.subr.bf16.mxu0 0
        %968 = vmatpush1.bf16.xpose.msra.mxu0 0
        %969 = vmatprep.subr.bf16.mxu0 0
        %970 = vmatpush1.bf16.xpose.msra.mxu0 0
        %971 = vmatprep.subr.bf16.mxu0 0
        %972 = vmatpush1.bf16.xpose.msra.mxu0 0
        %973 = vmatprep.subr.bf16.mxu0 0
        %974 = vmatpush1.bf16.xpose.msra.mxu0 0
        %975 = vmatprep.subr.bf16.mxu0 0
        %976 = vmatpush1.bf16.xpose.msra.mxu0 0
        %977 = vmatprep.subr.bf16.mxu0 0
        %978 = vmatpush1.bf16.xpose.msra.mxu0 0
        %979 = vmatprep.subr.bf16.mxu0 0
        %980 = vmatpush1.bf16.xpose.msra.mxu0 %v963
        %981 = vmatprep.subr.bf16.mxu0 0
        %982 = vmatpush2.bf16.xpose.msra.mxu0 0
        %983 = vmatprep.subr.bf16.mxu0 0
        %984 = vmatpush2.bf16.xpose.msra.mxu0 0
        %985 = vmatprep.subr.bf16.mxu0 0
        %986 = vmatpush2.bf16.xpose.msra.mxu0 0
        %987 = vmatprep.subr.bf16.mxu0 0
        %988 = vmatpush2.bf16.xpose.msra.mxu0 0
        %989 = vmatprep.subr.bf16.mxu0 0
        %990 = vmatpush2.bf16.xpose.msra.mxu0 0
        %991 = vmatprep.subr.bf16.mxu0 0
        %992 = vmatpush2.bf16.xpose.msra.mxu0 0
        %993 = vmatprep.subr.bf16.mxu0 0
        %994 = vmatpush2.bf16.xpose.msra.mxu0 0
        %995 = vmatprep.subr.bf16.mxu0 0
        %996 = vmatpush2.bf16.xpose.msra.mxu0 0
        %997 = vmatprep.mubr.bf16.mxu0 0
        %998 = vmatmul.mubr.bf16.gmra.mxu0 %v960
        %v999 = vpop.f32.mrf.mxu0
        %v1000 = vadd.f32 %v812, %v999
        %v1001 = vpop.f32.mrf.mxu0
        %v1002 = vpop.f32.mrf.mxu0
        %v1003 = vpop.f32.mrf.mxu0
        %1004 = vdwg.mxu0
        %v1005 = vsel %vm822, %v1000, -inf
        %1006 = vmax.xlane.f32.xlu0 %v1005
        %v1007 = vpop.xlane.xlu0 %1006
        %v1008 = vsub.f32 %v1000, %v1007
        %v1009 = vmul.f32 %v1008, 1.442695
        %v1010 = vpow.pop %v1009
        %v1011 = vsel %vm822, %v1010, 0.0
        %1012 = vadd.xlane.f32.xlu0 %v1011
        %v1013 = vpop.xlane.xlu0 %1012
        %v1014 = vrcp.pop %v1013
        %v1015 = vmul.f32 %v1010, %v1014
        %v1016 = vpack.c.bf16 %v1015, %v1015
        %v1018 = vsel %vm822, %v1016, 0
        %v1021 = vsel %vm826, %v958, 0
        %1023 = vmatprep.subr.bf16.mxu0 0
        %1024 = vmatpush1.bf16.msra.mxu0 0
        %1025 = vmatprep.subr.bf16.mxu0 0
        %1026 = vmatpush1.bf16.msra.mxu0 0
        %1027 = vmatprep.subr.bf16.mxu0 0
        %1028 = vmatpush1.bf16.msra.mxu0 0
        %1029 = vmatprep.subr.bf16.mxu0 0
        %1030 = vmatpush1.bf16.msra.mxu0 0
        %1031 = vmatprep.subr.bf16.mxu0 0
        %1032 = vmatpush1.bf16.msra.mxu0 0
        %1033 = vmatprep.subr.bf16.mxu0 0
        %1034 = vmatpush1.bf16.msra.mxu0 0
        %1035 = vmatprep.subr.bf16.mxu0 0
        %1036 = vmatpush1.bf16.msra.mxu0 0
        %1037 = vmatprep.subr.bf16.mxu0 0
        %1038 = vmatpush1.bf16.msra.mxu0 %v1021
        %1039 = vmatprep.subr.bf16.mxu0 0
        %1040 = vmatpush2.bf16.msra.mxu0 0
        %1041 = vmatprep.subr.bf16.mxu0 0
        %1042 = vmatpush2.bf16.msra.mxu0 0
        %1043 = vmatprep.subr.bf16.mxu0 0
        %1044 = vmatpush2.bf16.msra.mxu0 0
        %1045 = vmatprep.subr.bf16.mxu0 0
        %1046 = vmatpush2.bf16.msra.mxu0 0
        %1047 = vmatprep.subr.bf16.mxu0 0
        %1048 = vmatpush2.bf16.msra.mxu0 0
        %1049 = vmatprep.subr.bf16.mxu0 0
        %1050 = vmatpush2.bf16.msra.mxu0 0
        %1051 = vmatprep.subr.bf16.mxu0 0
        %1052 = vmatpush2.bf16.msra.mxu0 0
        %1053 = vmatprep.subr.bf16.mxu0 0
        %1054 = vmatpush2.bf16.msra.mxu0 0
        %1055 = vmatprep.mubr.bf16.mxu0 0
        %1056 = vmatmul.mubr.bf16.gmra.mxu0 %v1018
        %v1057 = vpop.f32.mrf.mxu0
        %v1058 = vadd.f32 0.0, %v1057
        %v1059 = vpop.f32.mrf.mxu0
        %v1060 = vpop.f32.mrf.mxu0
        %v1061 = vpop.f32.mrf.mxu0
        %1062 = vdwg.mxu0
        %v1063 = vpack.c.bf16 %v1058, %v1058
        %1065 = vrot.lane.b32.xlu0 %v814, 120
        %v1066 = vpop.permute.xlu0 %1065
        %v1068 = vsel %vm822, %v1066, 0
        %1070 = vmatprep.subr.bf16.mxu0 0
        %1071 = vmatpush1.bf16.msra.mxu0 0
        %1072 = vmatprep.subr.bf16.mxu0 0
        %1073 = vmatpush1.bf16.msra.mxu0 0
        %1074 = vmatprep.subr.bf16.mxu0 0
        %1075 = vmatpush1.bf16.msra.mxu0 0
        %1076 = vmatprep.subr.bf16.mxu0 0
        %1077 = vmatpush1.bf16.msra.mxu0 0
        %1078 = vmatprep.subr.bf16.mxu0 0
        %1079 = vmatpush1.bf16.msra.mxu0 0
        %1080 = vmatprep.subr.bf16.mxu0 0
        %1081 = vmatpush1.bf16.msra.mxu0 0
        %1082 = vmatprep.subr.bf16.mxu0 0
        %1083 = vmatpush1.bf16.msra.mxu0 0
        %1084 = vmatprep.subr.bf16.mxu0 0
        %1085 = vmatpush1.bf16.msra.mxu0 %v828
        %1086 = vmatprep.subr.bf16.mxu0 0
        %1087 = vmatpush2.bf16.msra.mxu0 0
        %1088 = vmatprep.subr.bf16.mxu0 0
        %1089 = vmatpush2.bf16.msra.mxu0 0
        %1090 = vmatprep.subr.bf16.mxu0 0
        %1091 = vmatpush2.bf16.msra.mxu0 0
        %1092 = vmatprep.subr.bf16.mxu0 0
        %1093 = vmatpush2.bf16.msra.mxu0 0
        %1094 = vmatprep.subr.bf16.mxu0 0
        %1095 = vmatpush2.bf16.msra.mxu0 0
        %1096 = vmatprep.subr.bf16.mxu0 0
        %1097 = vmatpush2.bf16.msra.mxu0 0
        %1098 = vmatprep.subr.bf16.mxu0 0
        %1099 = vmatpush2.bf16.msra.mxu0 0
        %1100 = vmatprep.subr.bf16.mxu0 0
        %1101 = vmatpush2.bf16.msra.mxu0 0
        %1102 = vmatprep.mubr.bf16.mxu0 0
        %1103 = vmatmul.mubr.bf16.gmra.mxu0 %v1068
        %v1104 = vpop.f32.mrf.mxu0
        %v1105 = vadd.f32 0.0, %v1104
        %v1106 = vpop.f32.mrf.mxu0
        %v1107 = vpop.f32.mrf.mxu0
        %v1108 = vpop.f32.mrf.mxu0
        %1109 = vdwg.mxu0
        %v1110 = vpack.c.bf16 %v1105, %v1105
        %1111 = vmatprep.subr.bf16.mxu0 0
        %1112 = vmatpush1.bf16.msra.mxu0 0
        %1113 = vmatprep.subr.bf16.mxu0 0
        %1114 = vmatpush1.bf16.msra.mxu0 0
        %1115 = vmatprep.subr.bf16.mxu0 0
        %1116 = vmatpush1.bf16.msra.mxu0 0
        %1117 = vmatprep.subr.bf16.mxu0 0
        %1118 = vmatpush1.bf16.msra.mxu0 0
        %1119 = vmatprep.subr.bf16.mxu0 0
        %1120 = vmatpush1.bf16.msra.mxu0 0
        %1121 = vmatprep.subr.bf16.mxu0 0
        %1122 = vmatpush1.bf16.msra.mxu0 0
        %1123 = vmatprep.subr.bf16.mxu0 0
        %1124 = vmatpush1.bf16.msra.mxu0 0
        %1125 = vmatprep.subr.bf16.mxu0 0
        %1126 = vmatpush1.bf16.msra.mxu0 %v872
        %1127 = vmatprep.subr.bf16.mxu0 0
        %1128 = vmatpush2.bf16.msra.mxu0 0
        %1129 = vmatprep.subr.bf16.mxu0 0
        %1130 = vmatpush2.bf16.msra.mxu0 0
        %1131 = vmatprep.subr.bf16.mxu0 0
        %1132 = vmatpush2.bf16.msra.mxu0 0
        %1133 = vmatprep.subr.bf16.mxu0 0
        %1134 = vmatpush2.bf16.msra.mxu0 0
        %1135 = vmatprep.subr.bf16.mxu0 0
        %1136 = vmatpush2.bf16.msra.mxu0 0
        %1137 = vmatprep.subr.bf16.mxu0 0
        %1138 = vmatpush2.bf16.msra.mxu0 0
        %1139 = vmatprep.subr.bf16.mxu0 0
        %1140 = vmatpush2.bf16.msra.mxu0 0
        %1141 = vmatprep.subr.bf16.mxu0 0
        %1142 = vmatpush2.bf16.msra.mxu0 0
        %1143 = vmatprep.mubr.bf16.mxu0 0
        %1144 = vmatmul.mubr.bf16.gmra.mxu0 %v1068
        %v1145 = vpop.f32.mrf.mxu0
        %v1146 = vadd.f32 0.0, %v1145
        %v1147 = vpop.f32.mrf.mxu0
        %v1148 = vpop.f32.mrf.mxu0
        %v1149 = vpop.f32.mrf.mxu0
        %1150 = vdwg.mxu0
        %v1151 = vpack.c.bf16 %v1146, %v1146
        %1152 = vmatprep.subr.bf16.mxu0 0
        %1153 = vmatpush1.bf16.msra.mxu0 0
        %1154 = vmatprep.subr.bf16.mxu0 0
        %1155 = vmatpush1.bf16.msra.mxu0 0
        %1156 = vmatprep.subr.bf16.mxu0 0
        %1157 = vmatpush1.bf16.msra.mxu0 0
        %1158 = vmatprep.subr.bf16.mxu0 0
        %1159 = vmatpush1.bf16.msra.mxu0 0
        %1160 = vmatprep.subr.bf16.mxu0 0
        %1161 = vmatpush1.bf16.msra.mxu0 0
        %1162 = vmatprep.subr.bf16.mxu0 0
        %1163 = vmatpush1.bf16.msra.mxu0 0
        %1164 = vmatprep.subr.bf16.mxu0 0
        %1165 = vmatpush1.bf16.msra.mxu0 0
        %1166 = vmatprep.subr.bf16.mxu0 0
        %1167 = vmatpush1.bf16.msra.mxu0 %v916
        %1168 = vmatprep.subr.bf16.mxu0 0
        %1169 = vmatpush2.bf16.msra.mxu0 0
        %1170 = vmatprep.subr.bf16.mxu0 0
        %1171 = vmatpush2.bf16.msra.mxu0 0
        %1172 = vmatprep.subr.bf16.mxu0 0
        %1173 = vmatpush2.bf16.msra.mxu0 0
        %1174 = vmatprep.subr.bf16.mxu0 0
        %1175 = vmatpush2.bf16.msra.mxu0 0
        %1176 = vmatprep.subr.bf16.mxu0 0
        %1177 = vmatpush2.bf16.msra.mxu0 0
        %1178 = vmatprep.subr.bf16.mxu0 0
        %1179 = vmatpush2.bf16.msra.mxu0 0
        %1180 = vmatprep.subr.bf16.mxu0 0
        %1181 = vmatpush2.bf16.msra.mxu0 0
        %1182 = vmatprep.subr.bf16.mxu0 0
        %1183 = vmatpush2.bf16.msra.mxu0 0
        %1184 = vmatprep.mubr.bf16.mxu0 0
        %1185 = vmatmul.mubr.bf16.gmra.mxu0 %v1068
        %v1186 = vpop.f32.mrf.mxu0
        %v1187 = vadd.f32 0.0, %v1186
        %v1188 = vpop.f32.mrf.mxu0
        %v1189 = vpop.f32.mrf.mxu0
        %v1190 = vpop.f32.mrf.mxu0
        %1191 = vdwg.mxu0
        %v1192 = vpack.c.bf16 %v1187, %v1187
        %v1194 = vsel %vm822, %v1110, 0
        %v1197 = vsel %vm822, %v1151, 0
        %1199 = vmatprep.subr.bf16.mxu0 0
        %1200 = vmatpush1.bf16.xpose.msra.mxu0 0
        %1201 = vmatprep.subr.bf16.mxu0 0
        %1202 = vmatpush1.bf16.xpose.msra.mxu0 0
        %1203 = vmatprep.subr.bf16.mxu0 0
        %1204 = vmatpush1.bf16.xpose.msra.mxu0 0
        %1205 = vmatprep.subr.bf16.mxu0 0
        %1206 = vmatpush1.bf16.xpose.msra.mxu0 0
        %1207 = vmatprep.subr.bf16.mxu0 0
        %1208 = vmatpush1.bf16.xpose.msra.mxu0 0
        %1209 = vmatprep.subr.bf16.mxu0 0
        %1210 = vmatpush1.bf16.xpose.msra.mxu0 0
        %1211 = vmatprep.subr.bf16.mxu0 0
        %1212 = vmatpush1.bf16.xpose.msra.mxu0 0
        %1213 = vmatprep.subr.bf16.mxu0 0
        %1214 = vmatpush1.bf16.xpose.msra.mxu0 %v1197
        %1215 = vmatprep.subr.bf16.mxu0 0
        %1216 = vmatpush2.bf16.xpose.msra.mxu0 0
        %1217 = vmatprep.subr.bf16.mxu0 0
        %1218 = vmatpush2.bf16.xpose.msra.mxu0 0
        %1219 = vmatprep.subr.bf16.mxu0 0
        %1220 = vmatpush2.bf16.xpose.msra.mxu0 0
        %1221 = vmatprep.subr.bf16.mxu0 0
        %1222 = vmatpush2.bf16.xpose.msra.mxu0 0
        %1223 = vmatprep.subr.bf16.mxu0 0
        %1224 = vmatpush2.bf16.xpose.msra.mxu0 0
        %1225 = vmatprep.subr.bf16.mxu0 0
        %1226 = vmatpush2.bf16.xpose.msra.mxu0 0
        %1227 = vmatprep.subr.bf16.mxu0 0
        %1228 = vmatpush2.bf16.xpose.msra.mxu0 0
        %1229 = vmatprep.subr.bf16.mxu0 0
        %1230 = vmatpush2.bf16.xpose.msra.mxu0 0
        %1231 = vmatprep.mubr.bf16.mxu0 0
        %1232 = vmatmul.mubr.bf16.gmra.mxu0 %v1194
        %v1233 = vpop.f32.mrf.mxu0
        %v1234 = vadd.f32 %v812, %v1233
        %v1235 = vpop.f32.mrf.mxu0
        %v1236 = vpop.f32.mrf.mxu0
        %v1237 = vpop.f32.mrf.mxu0
        %1238 = vdwg.mxu0
        %v1239 = vsel %vm822, %v1234, -inf
        %1240 = vmax.xlane.f32.xlu0 %v1239
        %v1241 = vpop.xlane.xlu0 %1240
        %v1242 = vsub.f32 %v1234, %v1241
        %v1243 = vmul.f32 %v1242, 1.442695
        %v1244 = vpow.pop %v1243
        %v1245 = vsel %vm822, %v1244, 0.0
        %1246 = vadd.xlane.f32.xlu0 %v1245
        %v1247 = vpop.xlane.xlu0 %1246
        %v1248 = vrcp.pop %v1247
        %v1249 = vmul.f32 %v1244, %v1248
        %v1250 = vpack.c.bf16 %v1249, %v1249
        %v1252 = vsel %vm822, %v1250, 0
        %v1255 = vsel %vm826, %v1192, 0
        %1257 = vmatprep.subr.bf16.mxu0 0
        %1258 = vmatpush1.bf16.msra.mxu0 0
        %1259 = vmatprep.subr.bf16.mxu0 0
        %1260 = vmatpush1.bf16.msra.mxu0 0
        %1261 = vmatprep.subr.bf16.mxu0 0
        %1262 = vmatpush1.bf16.msra.mxu0 0
        %1263 = vmatprep.subr.bf16.mxu0 0
        %1264 = vmatpush1.bf16.msra.mxu0 0
        %1265 = vmatprep.subr.bf16.mxu0 0
        %1266 = vmatpush1.bf16.msra.mxu0 0
        %1267 = vmatprep.subr.bf16.mxu0 0
        %1268 = vmatpush1.bf16.msra.mxu0 0
        %1269 = vmatprep.subr.bf16.mxu0 0
        %1270 = vmatpush1.bf16.msra.mxu0 0
        %1271 = vmatprep.subr.bf16.mxu0 0
        %1272 = vmatpush1.bf16.msra.mxu0 %v1255
        %1273 = vmatprep.subr.bf16.mxu0 0
        %1274 = vmatpush2.bf16.msra.mxu0 0
        %1275 = vmatprep.subr.bf16.mxu0 0
        %1276 = vmatpush2.bf16.msra.mxu0 0
        %1277 = vmatprep.subr.bf16.mxu0 0
        %1278 = vmatpush2.bf16.msra.mxu0 0
        %1279 = vmatprep.subr.bf16.mxu0 0
        %1280 = vmatpush2.bf16.msra.mxu0 0
        %1281 = vmatprep.subr.bf16.mxu0 0
        %1282 = vmatpush2.bf16.msra.mxu0 0
        %1283 = vmatprep.subr.bf16.mxu0 0
        %1284 = vmatpush2.bf16.msra.mxu0 0
        %1285 = vmatprep.subr.bf16.mxu0 0
        %1286 = vmatpush2.bf16.msra.mxu0 0
        %1287 = vmatprep.subr.bf16.mxu0 0
        %1288 = vmatpush2.bf16.msra.mxu0 0
        %1289 = vmatprep.mubr.bf16.mxu0 0
        %1290 = vmatmul.mubr.bf16.gmra.mxu0 %v1252
        %v1291 = vpop.f32.mrf.mxu0
        %v1292 = vadd.f32 0.0, %v1291
        %v1293 = vpop.f32.mrf.mxu0
        %v1294 = vpop.f32.mrf.mxu0
        %v1295 = vpop.f32.mrf.mxu0
        %1296 = vdwg.mxu0
        %v1297 = vpack.c.bf16 %v1292, %v1292
        %v1299 = vsel %vm822, %v1297, 0
        %v1302 = vsel %vm826, %v819, 0
        %1304 = vmatprep.subr.bf16.mxu0 0
        %1305 = vmatpush1.bf16.msra.mxu0 0
        %1306 = vmatprep.subr.bf16.mxu0 0
        %1307 = vmatpush1.bf16.msra.mxu0 0
        %1308 = vmatprep.subr.bf16.mxu0 0
        %1309 = vmatpush1.bf16.msra.mxu0 0
        %1310 = vmatprep.subr.bf16.mxu0 0
        %1311 = vmatpush1.bf16.msra.mxu0 0
        %1312 = vmatprep.subr.bf16.mxu0 0
        %1313 = vmatpush1.bf16.msra.mxu0 0
        %1314 = vmatprep.subr.bf16.mxu0 0
        %1315 = vmatpush1.bf16.msra.mxu0 0
        %1316 = vmatprep.subr.bf16.mxu0 0
        %1317 = vmatpush1.bf16.msra.mxu0 0
        %1318 = vmatprep.subr.bf16.mxu0 0
        %1319 = vmatpush1.bf16.msra.mxu0 %v1302
        %1320 = vmatprep.subr.bf16.mxu0 0
        %1321 = vmatpush2.bf16.msra.mxu0 0
        %1322 = vmatprep.subr.bf16.mxu0 0
        %1323 = vmatpush2.bf16.msra.mxu0 0
        %1324 = vmatprep.subr.bf16.mxu0 0
        %1325 = vmatpush2.bf16.msra.mxu0 0
        %1326 = vmatprep.subr.bf16.mxu0 0
        %1327 = vmatpush2.bf16.msra.mxu0 0
        %1328 = vmatprep.subr.bf16.mxu0 0
        %1329 = vmatpush2.bf16.msra.mxu0 0
        %1330 = vmatprep.subr.bf16.mxu0 0
        %1331 = vmatpush2.bf16.msra.mxu0 0
        %1332 = vmatprep.subr.bf16.mxu0 0
        %1333 = vmatpush2.bf16.msra.mxu0 0
        %1334 = vmatprep.subr.bf16.mxu0 0
        %1335 = vmatpush2.bf16.msra.mxu0 0
        %1336 = vmatprep.mubr.bf16.mxu0 0
        %1337 = vmatmul.mubr.bf16.gmra.mxu0 %v1299
        %v1338 = vpop.f32.mrf.mxu0
        %v1339 = vadd.f32 0.0, %v1338
        %v1340 = vpop.f32.mrf.mxu0
        %v1341 = vpop.f32.mrf.mxu0
        %v1342 = vpop.f32.mrf.mxu0
        %1343 = vdwg.mxu0
        %v1345 = vsel %vm822, %v1063, 0
        %v1348 = vsel %vm826, %v818, 0
        %1350 = vmatprep.subr.bf16.mxu0 0
        %1351 = vmatpush1.bf16.msra.mxu0 0
        %1352 = vmatprep.subr.bf16.mxu0 0
        %1353 = vmatpush1.bf16.msra.mxu0 0
        %1354 = vmatprep.subr.bf16.mxu0 0
        %1355 = vmatpush1.bf16.msra.mxu0 0
        %1356 = vmatprep.subr.bf16.mxu0 0
        %1357 = vmatpush1.bf16.msra.mxu0 0
        %1358 = vmatprep.subr.bf16.mxu0 0
        %1359 = vmatpush1.bf16.msra.mxu0 0
        %1360 = vmatprep.subr.bf16.mxu0 0
        %1361 = vmatpush1.bf16.msra.mxu0 0
        %1362 = vmatprep.subr.bf16.mxu0 0
        %1363 = vmatpush1.bf16.msra.mxu0 0
        %1364 = vmatprep.subr.bf16.mxu0 0
        %1365 = vmatpush1.bf16.msra.mxu0 %v1348
        %1366 = vmatprep.subr.bf16.mxu0 0
        %1367 = vmatpush2.bf16.msra.mxu0 0
        %1368 = vmatprep.subr.bf16.mxu0 0
        %1369 = vmatpush2.bf16.msra.mxu0 0
        %1370 = vmatprep.subr.bf16.mxu0 0
        %1371 = vmatpush2.bf16.msra.mxu0 0
        %1372 = vmatprep.subr.bf16.mxu0 0
        %1373 = vmatpush2.bf16.msra.mxu0 0
        %1374 = vmatprep.subr.bf16.mxu0 0
        %1375 = vmatpush2.bf16.msra.mxu0 0
        %1376 = vmatprep.subr.bf16.mxu0 0
        %1377 = vmatpush2.bf16.msra.mxu0 0
        %1378 = vmatprep.subr.bf16.mxu0 0
        %1379 = vmatpush2.bf16.msra.mxu0 0
        %1380 = vmatprep.subr.bf16.mxu0 0
        %1381 = vmatpush2.bf16.msra.mxu0 0
        %1382 = vmatprep.mubr.bf16.mxu0 0
        %1383 = vmatmul.mubr.bf16.gmra.mxu0 %v1345
        %v1384 = vpop.f32.mrf.mxu0
        %v1385 = vadd.f32 %v1339, %v1384
        %v1386 = vpop.f32.mrf.mxu0
        %v1387 = vpop.f32.mrf.mxu0
        %v1388 = vpop.f32.mrf.mxu0
        %1389 = vdwg.mxu0
        %1390 = vrot.lane.b32.xlu0 %v814, 112
        %v1391 = vpop.permute.xlu0 %1390
        %v1393 = vsel %vm822, %v1391, 0
        %1395 = vmatprep.subr.bf16.mxu0 0
        %1396 = vmatpush1.bf16.msra.mxu0 0
        %1397 = vmatprep.subr.bf16.mxu0 0
        %1398 = vmatpush1.bf16.msra.mxu0 0
        %1399 = vmatprep.subr.bf16.mxu0 0
        %1400 = vmatpush1.bf16.msra.mxu0 0
        %1401 = vmatprep.subr.bf16.mxu0 0
        %1402 = vmatpush1.bf16.msra.mxu0 0
        %1403 = vmatprep.subr.bf16.mxu0 0
        %1404 = vmatpush1.bf16.msra.mxu0 0
        %1405 = vmatprep.subr.bf16.mxu0 0
        %1406 = vmatpush1.bf16.msra.mxu0 0
        %1407 = vmatprep.subr.bf16.mxu0 0
        %1408 = vmatpush1.bf16.msra.mxu0 0
        %1409 = vmatprep.subr.bf16.mxu0 0
        %1410 = vmatpush1.bf16.msra.mxu0 %v828
        %1411 = vmatprep.subr.bf16.mxu0 0
        %1412 = vmatpush2.bf16.msra.mxu0 0
        %1413 = vmatprep.subr.bf16.mxu0 0
        %1414 = vmatpush2.bf16.msra.mxu0 0
        %1415 = vmatprep.subr.bf16.mxu0 0
        %1416 = vmatpush2.bf16.msra.mxu0 0
        %1417 = vmatprep.subr.bf16.mxu0 0
        %1418 = vmatpush2.bf16.msra.mxu0 0
        %1419 = vmatprep.subr.bf16.mxu0 0
        %1420 = vmatpush2.bf16.msra.mxu0 0
        %1421 = vmatprep.subr.bf16.mxu0 0
        %1422 = vmatpush2.bf16.msra.mxu0 0
        %1423 = vmatprep.subr.bf16.mxu0 0
        %1424 = vmatpush2.bf16.msra.mxu0 0
        %1425 = vmatprep.subr.bf16.mxu0 0
        %1426 = vmatpush2.bf16.msra.mxu0 0
        %1427 = vmatprep.mubr.bf16.mxu0 0
        %1428 = vmatmul.mubr.bf16.gmra.mxu0 %v1393
        %v1429 = vpop.f32.mrf.mxu0
        %v1430 = vadd.f32 0.0, %v1429
        %v1431 = vpop.f32.mrf.mxu0
        %v1432 = vpop.f32.mrf.mxu0
        %v1433 = vpop.f32.mrf.mxu0
        %1434 = vdwg.mxu0
        %v1435 = vpack.c.bf16 %v1430, %v1430
        %1436 = vmatprep.subr.bf16.mxu0 0
        %1437 = vmatpush1.bf16.msra.mxu0 0
        %1438 = vmatprep.subr.bf16.mxu0 0
        %1439 = vmatpush1.bf16.msra.mxu0 0
        %1440 = vmatprep.subr.bf16.mxu0 0
        %1441 = vmatpush1.bf16.msra.mxu0 0
        %1442 = vmatprep.subr.bf16.mxu0 0
        %1443 = vmatpush1.bf16.msra.mxu0 0
        %1444 = vmatprep.subr.bf16.mxu0 0
        %1445 = vmatpush1.bf16.msra.mxu0 0
        %1446 = vmatprep.subr.bf16.mxu0 0
        %1447 = vmatpush1.bf16.msra.mxu0 0
        %1448 = vmatprep.subr.bf16.mxu0 0
        %1449 = vmatpush1.bf16.msra.mxu0 0
        %1450 = vmatprep.subr.bf16.mxu0 0
        %1451 = vmatpush1.bf16.msra.mxu0 %v872
        %1452 = vmatprep.subr.bf16.mxu0 0
        %1453 = vmatpush2.bf16.msra.mxu0 0
        %1454 = vmatprep.subr.bf16.mxu0 0
        %1455 = vmatpush2.bf16.msra.mxu0 0
        %1456 = vmatprep.subr.bf16.mxu0 0
        %1457 = vmatpush2.bf16.msra.mxu0 0
        %1458 = vmatprep.subr.bf16.mxu0 0
        %1459 = vmatpush2.bf16.msra.mxu0 0
        %1460 = vmatprep.subr.bf16.mxu0 0
        %1461 = vmatpush2.bf16.msra.mxu0 0
        %1462 = vmatprep.subr.bf16.mxu0 0
        %1463 = vmatpush2.bf16.msra.mxu0 0
        %1464 = vmatprep.subr.bf16.mxu0 0
        %1465 = vmatpush2.bf16.msra.mxu0 0
        %1466 = vmatprep.subr.bf16.mxu0 0
        %1467 = vmatpush2.bf16.msra.mxu0 0
        %1468 = vmatprep.mubr.bf16.mxu0 0
        %1469 = vmatmul.mubr.bf16.gmra.mxu0 %v1393
        %v1470 = vpop.f32.mrf.mxu0
        %v1471 = vadd.f32 0.0, %v1470
        %v1472 = vpop.f32.mrf.mxu0
        %v1473 = vpop.f32.mrf.mxu0
        %v1474 = vpop.f32.mrf.mxu0
        %1475 = vdwg.mxu0
        %v1476 = vpack.c.bf16 %v1471, %v1471
        %1477 = vmatprep.subr.bf16.mxu0 0
        %1478 = vmatpush1.bf16.msra.mxu0 0
        %1479 = vmatprep.subr.bf16.mxu0 0
        %1480 = vmatpush1.bf16.msra.mxu0 0
        %1481 = vmatprep.subr.bf16.mxu0 0
        %1482 = vmatpush1.bf16.msra.mxu0 0
        %1483 = vmatprep.subr.bf16.mxu0 0
        %1484 = vmatpush1.bf16.msra.mxu0 0
        %1485 = vmatprep.subr.bf16.mxu0 0
        %1486 = vmatpush1.bf16.msra.mxu0 0
        %1487 = vmatprep.subr.bf16.mxu0 0
        %1488 = vmatpush1.bf16.msra.mxu0 0
        %1489 = vmatprep.subr.bf16.mxu0 0
        %1490 = vmatpush1.bf16.msra.mxu0 0
        %1491 = vmatprep.subr.bf16.mxu0 0
        %1492 = vmatpush1.bf16.msra.mxu0 %v916
        %1493 = vmatprep.subr.bf16.mxu0 0
        %1494 = vmatpush2.bf16.msra.mxu0 0
        %1495 = vmatprep.subr.bf16.mxu0 0
        %1496 = vmatpush2.bf16.msra.mxu0 0
        %1497 = vmatprep.subr.bf16.mxu0 0
        %1498 = vmatpush2.bf16.msra.mxu0 0
        %1499 = vmatprep.subr.bf16.mxu0 0
        %1500 = vmatpush2.bf16.msra.mxu0 0
        %1501 = vmatprep.subr.bf16.mxu0 0
        %1502 = vmatpush2.bf16.msra.mxu0 0
        %1503 = vmatprep.subr.bf16.mxu0 0
        %1504 = vmatpush2.bf16.msra.mxu0 0
        %1505 = vmatprep.subr.bf16.mxu0 0
        %1506 = vmatpush2.bf16.msra.mxu0 0
        %1507 = vmatprep.subr.bf16.mxu0 0
        %1508 = vmatpush2.bf16.msra.mxu0 0
        %1509 = vmatprep.mubr.bf16.mxu0 0
        %1510 = vmatmul.mubr.bf16.gmra.mxu0 %v1393
        %v1511 = vpop.f32.mrf.mxu0
        %v1512 = vadd.f32 0.0, %v1511
        %v1513 = vpop.f32.mrf.mxu0
        %v1514 = vpop.f32.mrf.mxu0
        %v1515 = vpop.f32.mrf.mxu0
        %1516 = vdwg.mxu0
        %v1517 = vpack.c.bf16 %v1512, %v1512
        %v1519 = vsel %vm822, %v1435, 0
        %v1522 = vsel %vm822, %v1476, 0
        %1524 = vmatprep.subr.bf16.mxu0 0
        %1525 = vmatpush1.bf16.xpose.msra.mxu0 0
        %1526 = vmatprep.subr.bf16.mxu0 0
        %1527 = vmatpush1.bf16.xpose.msra.mxu0 0
        %1528 = vmatprep.subr.bf16.mxu0 0
        %1529 = vmatpush1.bf16.xpose.msra.mxu0 0
        %1530 = vmatprep.subr.bf16.mxu0 0
        %1531 = vmatpush1.bf16.xpose.msra.mxu0 0
        %1532 = vmatprep.subr.bf16.mxu0 0
        %1533 = vmatpush1.bf16.xpose.msra.mxu0 0
        %1534 = vmatprep.subr.bf16.mxu0 0
        %1535 = vmatpush1.bf16.xpose.msra.mxu0 0
        %1536 = vmatprep.subr.bf16.mxu0 0
        %1537 = vmatpush1.bf16.xpose.msra.mxu0 0
        %1538 = vmatprep.subr.bf16.mxu0 0
        %1539 = vmatpush1.bf16.xpose.msra.mxu0 %v1522
        %1540 = vmatprep.subr.bf16.mxu0 0
        %1541 = vmatpush2.bf16.xpose.msra.mxu0 0
        %1542 = vmatprep.subr.bf16.mxu0 0
        %1543 = vmatpush2.bf16.xpose.msra.mxu0 0
        %1544 = vmatprep.subr.bf16.mxu0 0
        %1545 = vmatpush2.bf16.xpose.msra.mxu0 0
        %1546 = vmatprep.subr.bf16.mxu0 0
        %1547 = vmatpush2.bf16.xpose.msra.mxu0 0
        %1548 = vmatprep.subr.bf16.mxu0 0
        %1549 = vmatpush2.bf16.xpose.msra.mxu0 0
        %1550 = vmatprep.subr.bf16.mxu0 0
        %1551 = vmatpush2.bf16.xpose.msra.mxu0 0
        %1552 = vmatprep.subr.bf16.mxu0 0
        %1553 = vmatpush2.bf16.xpose.msra.mxu0 0
        %1554 = vmatprep.subr.bf16.mxu0 0
        %1555 = vmatpush2.bf16.xpose.msra.mxu0 0
        %1556 = vmatprep.mubr.bf16.mxu0 0
        %1557 = vmatmul.mubr.bf16.gmra.mxu0 %v1519
        %v1558 = vpop.f32.mrf.mxu0
        %v1559 = vadd.f32 %v812, %v1558
        %v1560 = vpop.f32.mrf.mxu0
        %v1561 = vpop.f32.mrf.mxu0
        %v1562 = vpop.f32.mrf.mxu0
        %1563 = vdwg.mxu0
        %v1564 = vsel %vm822, %v1559, -inf
        %1565 = vmax.xlane.f32.xlu0 %v1564
        %v1566 = vpop.xlane.xlu0 %1565
        %v1567 = vsub.f32 %v1559, %v1566
        %v1568 = vmul.f32 %v1567, 1.442695
        %v1569 = vpow.pop %v1568
        %v1570 = vsel %vm822, %v1569, 0.0
        %1571 = vadd.xlane.f32.xlu0 %v1570
        %v1572 = vpop.xlane.xlu0 %1571
        %v1573 = vrcp.pop %v1572
        %v1574 = vmul.f32 %v1569, %v1573
        %v1575 = vpack.c.bf16 %v1574, %v1574
        %v1577 = vsel %vm822, %v1575, 0
        %v1580 = vsel %vm826, %v1517, 0
        %1582 = vmatprep.subr.bf16.mxu0 0
        %1583 = vmatpush1.bf16.msra.mxu0 0
        %1584 = vmatprep.subr.bf16.mxu0 0
        %1585 = vmatpush1.bf16.msra.mxu0 0
        %1586 = vmatprep.subr.bf16.mxu0 0
        %1587 = vmatpush1.bf16.msra.mxu0 0
        %1588 = vmatprep.subr.bf16.mxu0 0
        %1589 = vmatpush1.bf16.msra.mxu0 0
        %1590 = vmatprep.subr.bf16.mxu0 0
        %1591 = vmatpush1.bf16.msra.mxu0 0
        %1592 = vmatprep.subr.bf16.mxu0 0
        %1593 = vmatpush1.bf16.msra.mxu0 0
        %1594 = vmatprep.subr.bf16.mxu0 0
        %1595 = vmatpush1.bf16.msra.mxu0 0
        %1596 = vmatprep.subr.bf16.mxu0 0
        %1597 = vmatpush1.bf16.msra.mxu0 %v1580
        %1598 = vmatprep.subr.bf16.mxu0 0
        %1599 = vmatpush2.bf16.msra.mxu0 0
        %1600 = vmatprep.subr.bf16.mxu0 0
        %1601 = vmatpush2.bf16.msra.mxu0 0
        %1602 = vmatprep.subr.bf16.mxu0 0
        %1603 = vmatpush2.bf16.msra.mxu0 0
        %1604 = vmatprep.subr.bf16.mxu0 0
        %1605 = vmatpush2.bf16.msra.mxu0 0
        %1606 = vmatprep.subr.bf16.mxu0 0
        %1607 = vmatpush2.bf16.msra.mxu0 0
        %1608 = vmatprep.subr.bf16.mxu0 0
        %1609 = vmatpush2.bf16.msra.mxu0 0
        %1610 = vmatprep.subr.bf16.mxu0 0
        %1611 = vmatpush2.bf16.msra.mxu0 0
        %1612 = vmatprep.subr.bf16.mxu0 0
        %1613 = vmatpush2.bf16.msra.mxu0 0
        %1614 = vmatprep.mubr.bf16.mxu0 0
        %1615 = vmatmul.mubr.bf16.gmra.mxu0 %v1577
        %v1616 = vpop.f32.mrf.mxu0
        %v1617 = vadd.f32 0.0, %v1616
        %v1618 = vpop.f32.mrf.mxu0
        %v1619 = vpop.f32.mrf.mxu0
        %v1620 = vpop.f32.mrf.mxu0
        %1621 = vdwg.mxu0
        %v1622 = vpack.c.bf16 %v1617, %v1617
        %v1624 = vsel %vm822, %v1622, 0
        %v1627 = vsel %vm826, %v820, 0
        %1629 = vmatprep.subr.bf16.mxu0 0
        %1630 = vmatpush1.bf16.msra.mxu0 0
        %1631 = vmatprep.subr.bf16.mxu0 0
        %1632 = vmatpush1.bf16.msra.mxu0 0
        %1633 = vmatprep.subr.bf16.mxu0 0
        %1634 = vmatpush1.bf16.msra.mxu0 0
        %1635 = vmatprep.subr.bf16.mxu0 0
        %1636 = vmatpush1.bf16.msra.mxu0 0
        %1637 = vmatprep.subr.bf16.mxu0 0
        %1638 = vmatpush1.bf16.msra.mxu0 0
        %1639 = vmatprep.subr.bf16.mxu0 0
        %1640 = vmatpush1.bf16.msra.mxu0 0
        %1641 = vmatprep.subr.bf16.mxu0 0
        %1642 = vmatpush1.bf16.msra.mxu0 0
        %1643 = vmatprep.subr.bf16.mxu0 0
        %1644 = vmatpush1.bf16.msra.mxu0 %v1627
        %1645 = vmatprep.subr.bf16.mxu0 0
        %1646 = vmatpush2.bf16.msra.mxu0 0
        %1647 = vmatprep.subr.bf16.mxu0 0
        %1648 = vmatpush2.bf16.msra.mxu0 0
        %1649 = vmatprep.subr.bf16.mxu0 0
        %1650 = vmatpush2.bf16.msra.mxu0 0
        %1651 = vmatprep.subr.bf16.mxu0 0
        %1652 = vmatpush2.bf16.msra.mxu0 0
        %1653 = vmatprep.subr.bf16.mxu0 0
        %1654 = vmatpush2.bf16.msra.mxu0 0
        %1655 = vmatprep.subr.bf16.mxu0 0
        %1656 = vmatpush2.bf16.msra.mxu0 0
        %1657 = vmatprep.subr.bf16.mxu0 0
        %1658 = vmatpush2.bf16.msra.mxu0 0
        %1659 = vmatprep.subr.bf16.mxu0 0
        %1660 = vmatpush2.bf16.msra.mxu0 0
        %1661 = vmatprep.mubr.bf16.mxu0 0
        %1662 = vmatmul.mubr.bf16.gmra.mxu0 %v1624
        %v1663 = vpop.f32.mrf.mxu0
        %v1664 = vadd.f32 0.0, %v1663
        %v1665 = vpop.f32.mrf.mxu0
        %v1666 = vpop.f32.mrf.mxu0
        %v1667 = vpop.f32.mrf.mxu0
        %1668 = vdwg.mxu0
        %v1669 = vadd.f32 %v1385, %v1664
        %1670 = vrot.lane.b32.xlu0 %v814, 104
        %v1671 = vpop.permute.xlu0 %1670
        %v1673 = vsel %vm822, %v1671, 0
        %1675 = vmatprep.subr.bf16.mxu0 0
        %1676 = vmatpush1.bf16.msra.mxu0 0
        %1677 = vmatprep.subr.bf16.mxu0 0
        %1678 = vmatpush1.bf16.msra.mxu0 0
        %1679 = vmatprep.subr.bf16.mxu0 0
        %1680 = vmatpush1.bf16.msra.mxu0 0
        %1681 = vmatprep.subr.bf16.mxu0 0
        %1682 = vmatpush1.bf16.msra.mxu0 0
        %1683 = vmatprep.subr.bf16.mxu0 0
        %1684 = vmatpush1.bf16.msra.mxu0 0
        %1685 = vmatprep.subr.bf16.mxu0 0
        %1686 = vmatpush1.bf16.msra.mxu0 0
        %1687 = vmatprep.subr.bf16.mxu0 0
        %1688 = vmatpush1.bf16.msra.mxu0 0
        %1689 = vmatprep.subr.bf16.mxu0 0
        %1690 = vmatpush1.bf16.msra.mxu0 %v828
        %1691 = vmatprep.subr.bf16.mxu0 0
        %1692 = vmatpush2.bf16.msra.mxu0 0
        %1693 = vmatprep.subr.bf16.mxu0 0
        %1694 = vmatpush2.bf16.msra.mxu0 0
        %1695 = vmatprep.subr.bf16.mxu0 0
        %1696 = vmatpush2.bf16.msra.mxu0 0
        %1697 = vmatprep.subr.bf16.mxu0 0
        %1698 = vmatpush2.bf16.msra.mxu0 0
        %1699 = vmatprep.subr.bf16.mxu0 0
        %1700 = vmatpush2.bf16.msra.mxu0 0
        %1701 = vmatprep.subr.bf16.mxu0 0
        %1702 = vmatpush2.bf16.msra.mxu0 0
        %1703 = vmatprep.subr.bf16.mxu0 0
        %1704 = vmatpush2.bf16.msra.mxu0 0
        %1705 = vmatprep.subr.bf16.mxu0 0
        %1706 = vmatpush2.bf16.msra.mxu0 0
        %1707 = vmatprep.mubr.bf16.mxu0 0
        %1708 = vmatmul.mubr.bf16.gmra.mxu0 %v1673
        %v1709 = vpop.f32.mrf.mxu0
        %v1710 = vadd.f32 0.0, %v1709
        %v1711 = vpop.f32.mrf.mxu0
        %v1712 = vpop.f32.mrf.mxu0
        %v1713 = vpop.f32.mrf.mxu0
        %1714 = vdwg.mxu0
        %v1715 = vpack.c.bf16 %v1710, %v1710
        %1716 = vmatprep.subr.bf16.mxu0 0
        %1717 = vmatpush1.bf16.msra.mxu0 0
        %1718 = vmatprep.subr.bf16.mxu0 0
        %1719 = vmatpush1.bf16.msra.mxu0 0
        %1720 = vmatprep.subr.bf16.mxu0 0
        %1721 = vmatpush1.bf16.msra.mxu0 0
        %1722 = vmatprep.subr.bf16.mxu0 0
        %1723 = vmatpush1.bf16.msra.mxu0 0
        %1724 = vmatprep.subr.bf16.mxu0 0
        %1725 = vmatpush1.bf16.msra.mxu0 0
        %1726 = vmatprep.subr.bf16.mxu0 0
        %1727 = vmatpush1.bf16.msra.mxu0 0
        %1728 = vmatprep.subr.bf16.mxu0 0
        %1729 = vmatpush1.bf16.msra.mxu0 0
        %1730 = vmatprep.subr.bf16.mxu0 0
        %1731 = vmatpush1.bf16.msra.mxu0 %v872
        %1732 = vmatprep.subr.bf16.mxu0 0
        %1733 = vmatpush2.bf16.msra.mxu0 0
        %1734 = vmatprep.subr.bf16.mxu0 0
        %1735 = vmatpush2.bf16.msra.mxu0 0
        %1736 = vmatprep.subr.bf16.mxu0 0
        %1737 = vmatpush2.bf16.msra.mxu0 0
        %1738 = vmatprep.subr.bf16.mxu0 0
        %1739 = vmatpush2.bf16.msra.mxu0 0
        %1740 = vmatprep.subr.bf16.mxu0 0
        %1741 = vmatpush2.bf16.msra.mxu0 0
        %1742 = vmatprep.subr.bf16.mxu0 0
        %1743 = vmatpush2.bf16.msra.mxu0 0
        %1744 = vmatprep.subr.bf16.mxu0 0
        %1745 = vmatpush2.bf16.msra.mxu0 0
        %1746 = vmatprep.subr.bf16.mxu0 0
        %1747 = vmatpush2.bf16.msra.mxu0 0
        %1748 = vmatprep.mubr.bf16.mxu0 0
        %1749 = vmatmul.mubr.bf16.gmra.mxu0 %v1673
        %v1750 = vpop.f32.mrf.mxu0
        %v1751 = vadd.f32 0.0, %v1750
        %v1752 = vpop.f32.mrf.mxu0
        %v1753 = vpop.f32.mrf.mxu0
        %v1754 = vpop.f32.mrf.mxu0
        %1755 = vdwg.mxu0
        %v1756 = vpack.c.bf16 %v1751, %v1751
        %1757 = vmatprep.subr.bf16.mxu0 0
        %1758 = vmatpush1.bf16.msra.mxu0 0
        %1759 = vmatprep.subr.bf16.mxu0 0
        %1760 = vmatpush1.bf16.msra.mxu0 0
        %1761 = vmatprep.subr.bf16.mxu0 0
        %1762 = vmatpush1.bf16.msra.mxu0 0
        %1763 = vmatprep.subr.bf16.mxu0 0
        %1764 = vmatpush1.bf16.msra.mxu0 0
        %1765 = vmatprep.subr.bf16.mxu0 0
        %1766 = vmatpush1.bf16.msra.mxu0 0
        %1767 = vmatprep.subr.bf16.mxu0 0
        %1768 = vmatpush1.bf16.msra.mxu0 0
        %1769 = vmatprep.subr.bf16.mxu0 0
        %1770 = vmatpush1.bf16.msra.mxu0 0
        %1771 = vmatprep.subr.bf16.mxu0 0
        %1772 = vmatpush1.bf16.msra.mxu0 %v916
        %1773 = vmatprep.subr.bf16.mxu0 0
        %1774 = vmatpush2.bf16.msra.mxu0 0
        %1775 = vmatprep.subr.bf16.mxu0 0
        %1776 = vmatpush2.bf16.msra.mxu0 0
        %1777 = vmatprep.subr.bf16.mxu0 0
        %1778 = vmatpush2.bf16.msra.mxu0 0
        %1779 = vmatprep.subr.bf16.mxu0 0
        %1780 = vmatpush2.bf16.msra.mxu0 0
        %1781 = vmatprep.subr.bf16.mxu0 0
        %1782 = vmatpush2.bf16.msra.mxu0 0
        %1783 = vmatprep.subr.bf16.mxu0 0
        %1784 = vmatpush2.bf16.msra.mxu0 0
        %1785 = vmatprep.subr.bf16.mxu0 0
        %1786 = vmatpush2.bf16.msra.mxu0 0
        %1787 = vmatprep.subr.bf16.mxu0 0
        %1788 = vmatpush2.bf16.msra.mxu0 0
        %1789 = vmatprep.mubr.bf16.mxu0 0
        %1790 = vmatmul.mubr.bf16.gmra.mxu0 %v1673
        %v1791 = vpop.f32.mrf.mxu0
        %v1792 = vadd.f32 0.0, %v1791
        %v1793 = vpop.f32.mrf.mxu0
        %v1794 = vpop.f32.mrf.mxu0
        %v1795 = vpop.f32.mrf.mxu0
        %1796 = vdwg.mxu0
        %v1797 = vpack.c.bf16 %v1792, %v1792
        %v1799 = vsel %vm822, %v1715, 0
        %v1802 = vsel %vm822, %v1756, 0
        %1804 = vmatprep.subr.bf16.mxu0 0
        %1805 = vmatpush1.bf16.xpose.msra.mxu0 0
        %1806 = vmatprep.subr.bf16.mxu0 0
        %1807 = vmatpush1.bf16.xpose.msra.mxu0 0
        %1808 = vmatprep.subr.bf16.mxu0 0
        %1809 = vmatpush1.bf16.xpose.msra.mxu0 0
        %1810 = vmatprep.subr.bf16.mxu0 0
        %1811 = vmatpush1.bf16.xpose.msra.mxu0 0
        %1812 = vmatprep.subr.bf16.mxu0 0
        %1813 = vmatpush1.bf16.xpose.msra.mxu0 0
        %1814 = vmatprep.subr.bf16.mxu0 0
        %1815 = vmatpush1.bf16.xpose.msra.mxu0 0
        %1816 = vmatprep.subr.bf16.mxu0 0
        %1817 = vmatpush1.bf16.xpose.msra.mxu0 0
        %1818 = vmatprep.subr.bf16.mxu0 0
        %1819 = vmatpush1.bf16.xpose.msra.mxu0 %v1802
        %1820 = vmatprep.subr.bf16.mxu0 0
        %1821 = vmatpush2.bf16.xpose.msra.mxu0 0
        %1822 = vmatprep.subr.bf16.mxu0 0
        %1823 = vmatpush2.bf16.xpose.msra.mxu0 0
        %1824 = vmatprep.subr.bf16.mxu0 0
        %1825 = vmatpush2.bf16.xpose.msra.mxu0 0
        %1826 = vmatprep.subr.bf16.mxu0 0
        %1827 = vmatpush2.bf16.xpose.msra.mxu0 0
        %1828 = vmatprep.subr.bf16.mxu0 0
        %1829 = vmatpush2.bf16.xpose.msra.mxu0 0
        %1830 = vmatprep.subr.bf16.mxu0 0
        %1831 = vmatpush2.bf16.xpose.msra.mxu0 0
        %1832 = vmatprep.subr.bf16.mxu0 0
        %1833 = vmatpush2.bf16.xpose.msra.mxu0 0
        %1834 = vmatprep.subr.bf16.mxu0 0
        %1835 = vmatpush2.bf16.xpose.msra.mxu0 0
        %1836 = vmatprep.mubr.bf16.mxu0 0
        %1837 = vmatmul.mubr.bf16.gmra.mxu0 %v1799
        %v1838 = vpop.f32.mrf.mxu0
        %v1839 = vadd.f32 %v812, %v1838
        %v1840 = vpop.f32.mrf.mxu0
        %v1841 = vpop.f32.mrf.mxu0
        %v1842 = vpop.f32.mrf.mxu0
        %1843 = vdwg.mxu0
        %v1844 = vsel %vm822, %v1839, -inf
        %1845 = vmax.xlane.f32.xlu0 %v1844
        %v1846 = vpop.xlane.xlu0 %1845
        %v1847 = vsub.f32 %v1839, %v1846
        %v1848 = vmul.f32 %v1847, 1.442695
        %v1849 = vpow.pop %v1848
        %v1850 = vsel %vm822, %v1849, 0.0
        %1851 = vadd.xlane.f32.xlu0 %v1850
        %v1852 = vpop.xlane.xlu0 %1851
        %v1853 = vrcp.pop %v1852
        %v1854 = vmul.f32 %v1849, %v1853
        %v1855 = vpack.c.bf16 %v1854, %v1854
        %v1857 = vsel %vm822, %v1855, 0
        %v1860 = vsel %vm826, %v1797, 0
        %1862 = vmatprep.subr.bf16.mxu0 0
        %1863 = vmatpush1.bf16.msra.mxu0 0
        %1864 = vmatprep.subr.bf16.mxu0 0
        %1865 = vmatpush1.bf16.msra.mxu0 0
        %1866 = vmatprep.subr.bf16.mxu0 0
        %1867 = vmatpush1.bf16.msra.mxu0 0
        %1868 = vmatprep.subr.bf16.mxu0 0
        %1869 = vmatpush1.bf16.msra.mxu0 0
        %1870 = vmatprep.subr.bf16.mxu0 0
        %1871 = vmatpush1.bf16.msra.mxu0 0
        %1872 = vmatprep.subr.bf16.mxu0 0
        %1873 = vmatpush1.bf16.msra.mxu0 0
        %1874 = vmatprep.subr.bf16.mxu0 0
        %1875 = vmatpush1.bf16.msra.mxu0 0
        %1876 = vmatprep.subr.bf16.mxu0 0
        %1877 = vmatpush1.bf16.msra.mxu0 %v1860
        %1878 = vmatprep.subr.bf16.mxu0 0
        %1879 = vmatpush2.bf16.msra.mxu0 0
        %1880 = vmatprep.subr.bf16.mxu0 0
        %1881 = vmatpush2.bf16.msra.mxu0 0
        %1882 = vmatprep.subr.bf16.mxu0 0
        %1883 = vmatpush2.bf16.msra.mxu0 0
        %1884 = vmatprep.subr.bf16.mxu0 0
        %1885 = vmatpush2.bf16.msra.mxu0 0
        %1886 = vmatprep.subr.bf16.mxu0 0
        %1887 = vmatpush2.bf16.msra.mxu0 0
        %1888 = vmatprep.subr.bf16.mxu0 0
        %1889 = vmatpush2.bf16.msra.mxu0 0
        %1890 = vmatprep.subr.bf16.mxu0 0
        %1891 = vmatpush2.bf16.msra.mxu0 0
        %1892 = vmatprep.subr.bf16.mxu0 0
        %1893 = vmatpush2.bf16.msra.mxu0 0
        %1894 = vmatprep.mubr.bf16.mxu0 0
        %1895 = vmatmul.mubr.bf16.gmra.mxu0 %v1857
        %v1896 = vpop.f32.mrf.mxu0
        %v1897 = vadd.f32 0.0, %v1896
        %v1898 = vpop.f32.mrf.mxu0
        %v1899 = vpop.f32.mrf.mxu0
        %v1900 = vpop.f32.mrf.mxu0
        %1901 = vdwg.mxu0
        %v1902 = vpack.c.bf16 %v1897, %v1897
        %v1904 = vsel %vm822, %v1902, 0
        %v1907 = vsel %vm826, %v821, 0
        %1909 = vmatprep.subr.bf16.mxu0 0
        %1910 = vmatpush1.bf16.msra.mxu0 0
        %1911 = vmatprep.subr.bf16.mxu0 0
        %1912 = vmatpush1.bf16.msra.mxu0 0
        %1913 = vmatprep.subr.bf16.mxu0 0
        %1914 = vmatpush1.bf16.msra.mxu0 0
        %1915 = vmatprep.subr.bf16.mxu0 0
        %1916 = vmatpush1.bf16.msra.mxu0 0
        %1917 = vmatprep.subr.bf16.mxu0 0
        %1918 = vmatpush1.bf16.msra.mxu0 0
        %1919 = vmatprep.subr.bf16.mxu0 0
        %1920 = vmatpush1.bf16.msra.mxu0 0
        %1921 = vmatprep.subr.bf16.mxu0 0
        %1922 = vmatpush1.bf16.msra.mxu0 0
        %1923 = vmatprep.subr.bf16.mxu0 0
        %1924 = vmatpush1.bf16.msra.mxu0 %v1907
        %1925 = vmatprep.subr.bf16.mxu0 0
        %1926 = vmatpush2.bf16.msra.mxu0 0
        %1927 = vmatprep.subr.bf16.mxu0 0
        %1928 = vmatpush2.bf16.msra.mxu0 0
        %1929 = vmatprep.subr.bf16.mxu0 0
        %1930 = vmatpush2.bf16.msra.mxu0 0
        %1931 = vmatprep.subr.bf16.mxu0 0
        %1932 = vmatpush2.bf16.msra.mxu0 0
        %1933 = vmatprep.subr.bf16.mxu0 0
        %1934 = vmatpush2.bf16.msra.mxu0 0
        %1935 = vmatprep.subr.bf16.mxu0 0
        %1936 = vmatpush2.bf16.msra.mxu0 0
        %1937 = vmatprep.subr.bf16.mxu0 0
        %1938 = vmatpush2.bf16.msra.mxu0 0
        %1939 = vmatprep.subr.bf16.mxu0 0
        %1940 = vmatpush2.bf16.msra.mxu0 0
        %1941 = vmatprep.mubr.bf16.mxu0 0
        %1942 = vmatmul.mubr.bf16.gmra.mxu0 %v1904
        %v1943 = vpop.f32.mrf.mxu0
        %v1944 = vadd.f32 0.0, %v1943
        %v1945 = vpop.f32.mrf.mxu0
        %v1946 = vpop.f32.mrf.mxu0
        %v1947 = vpop.f32.mrf.mxu0
        %1948 = vdwg.mxu0
        %v1949 = vadd.f32 %v1669, %v1944
        %v1950 = vld [vmem:[%s9] sm:$0x1]
        %v1952 = vlaneseq
        %v1953 = vshrl.u32 %v1952, 7
        %v1954 = vsub.s32 0, %v1953
        %v1955 = vrot.slane %v1950, %v1954
        %v1957 = vadd.f32 %v1949, %v1955
        %v1958 = vadd.f32 %v1957, %v809
        %v1959 = vld [vmem:[%s10] sm:$0x1]
        %v1960 = vld [vmem:[%s11] sm:$0x1]
        %vm1961 = vcmask 261120
        %v1962 = vsel %vm1961, %v1958, 0.0
        %1963 = vadd.xlane.f32.xlu0 %v1962
        %v1964 = vpop.xlane.xlu0 %1963
        %v1965 = vrcp.pop 32.0
        %v1966 = vmul.f32 %v1964, %v1965
        %v1967 = vmul.f32 %v1958, %v1958
        %v1968 = vsel %vm1961, %v1967, 0.0
        %1969 = vadd.xlane.f32.xlu0 %v1968
        %v1970 = vpop.xlane.xlu0 %1969
        %v1971 = vmul.f32 %v1970, %v1965
        %v1972 = vmul.f32 %v1966, %v1966
        %v1973 = vsub.f32 %v1971, %v1972
        %v1974 = vsub.f32 %v1958, %v1966
        %v1975 = vadd.f32 %v1973, 1e-05
        %v1976 = vrsqrt.pop %v1975
        %v1977 = vmul.f32 %v1974, %v1976
        %v1979 = vlaneseq
        %v1980 = vshrl.u32 %v1979, 7
        %v1981 = vsub.s32 0, %v1980
        %v1982 = vrot.slane %v1959, %v1981
        %v1984 = vmul.f32 %v1977, %v1982
        %v1986 = vlaneseq
        %v1987 = vshrl.u32 %v1986, 7
        %v1988 = vsub.s32 0, %v1987
        %v1989 = vrot.slane %v1960, %v1988
        %v1991 = vadd.f32 %v1984, %v1989
        %v1992 = vpack.c.bf16 %v1991, %v1991
        %v1993 = vpack.c.bf16 %v811, %v811
        %v1994 = vpack.c.bf16 %v810, %v810
        %v1995 = vld [vmem:[%s12] sm:$0xf]
        %v1996 = vld [vmem:[%s13] sm:$0xf]
        %v1997 = vld [vmem:[%s14] sm:$0xf]
        %v1998 = vld [vmem:[%s15] sm:$0xf]
        %v1999 = vld [vmem:[%s15 + $0x4] sm:$0xf]
        %v2000 = vld [vmem:[%s15 + $0x8] sm:$0xf]
        %v2001 = vld [vmem:[%s15 + $0xc] sm:$0xf]
        %v2003 = vsel %vm822, %v1992, 0
        %v2006 = vsel %vm826, %v1995, 0
        %2008 = vmatprep.subr.bf16.mxu0 0
        %2009 = vmatpush1.bf16.msra.mxu0 0
        %2010 = vmatprep.subr.bf16.mxu0 0
        %2011 = vmatpush1.bf16.msra.mxu0 0
        %2012 = vmatprep.subr.bf16.mxu0 0
        %2013 = vmatpush1.bf16.msra.mxu0 0
        %2014 = vmatprep.subr.bf16.mxu0 0
        %2015 = vmatpush1.bf16.msra.mxu0 0
        %2016 = vmatprep.subr.bf16.mxu0 0
        %2017 = vmatpush1.bf16.msra.mxu0 0
        %2018 = vmatprep.subr.bf16.mxu0 0
        %2019 = vmatpush1.bf16.msra.mxu0 0
        %2020 = vmatprep.subr.bf16.mxu0 0
        %2021 = vmatpush1.bf16.msra.mxu0 0
        %2022 = vmatprep.subr.bf16.mxu0 0
        %2023 = vmatpush1.bf16.msra.mxu0 %v2006
        %2024 = vmatprep.subr.bf16.mxu0 0
        %2025 = vmatpush2.bf16.msra.mxu0 0
        %2026 = vmatprep.subr.bf16.mxu0 0
        %2027 = vmatpush2.bf16.msra.mxu0 0
        %2028 = vmatprep.subr.bf16.mxu0 0
        %2029 = vmatpush2.bf16.msra.mxu0 0
        %2030 = vmatprep.subr.bf16.mxu0 0
        %2031 = vmatpush2.bf16.msra.mxu0 0
        %2032 = vmatprep.subr.bf16.mxu0 0
        %2033 = vmatpush2.bf16.msra.mxu0 0
        %2034 = vmatprep.subr.bf16.mxu0 0
        %2035 = vmatpush2.bf16.msra.mxu0 0
        %2036 = vmatprep.subr.bf16.mxu0 0
        %2037 = vmatpush2.bf16.msra.mxu0 0
        %2038 = vmatprep.subr.bf16.mxu0 0
        %2039 = vmatpush2.bf16.msra.mxu0 0
        %2040 = vmatprep.mubr.bf16.mxu0 0
        %2041 = vmatmul.mubr.bf16.gmra.mxu0 %v2003
        %v2042 = vpop.f32.mrf.mxu0
        %v2043 = vadd.f32 0.0, %v2042
        %v2044 = vpop.f32.mrf.mxu0
        %v2045 = vpop.f32.mrf.mxu0
        %v2046 = vpop.f32.mrf.mxu0
        %2047 = vdwg.mxu0
        %v2048 = vpack.c.bf16 %v2043, %v2043
        %v2050 = vsel %vm822, %v1993, 0
        %v2053 = vsel %vm826, %v1996, 0
        %2055 = vmatprep.subr.bf16.mxu0 0
        %2056 = vmatpush1.bf16.msra.mxu0 0
        %2057 = vmatprep.subr.bf16.mxu0 0
        %2058 = vmatpush1.bf16.msra.mxu0 0
        %2059 = vmatprep.subr.bf16.mxu0 0
        %2060 = vmatpush1.bf16.msra.mxu0 0
        %2061 = vmatprep.subr.bf16.mxu0 0
        %2062 = vmatpush1.bf16.msra.mxu0 0
        %2063 = vmatprep.subr.bf16.mxu0 0
        %2064 = vmatpush1.bf16.msra.mxu0 0
        %2065 = vmatprep.subr.bf16.mxu0 0
        %2066 = vmatpush1.bf16.msra.mxu0 0
        %2067 = vmatprep.subr.bf16.mxu0 0
        %2068 = vmatpush1.bf16.msra.mxu0 0
        %2069 = vmatprep.subr.bf16.mxu0 0
        %2070 = vmatpush1.bf16.msra.mxu0 %v2053
        %2071 = vmatprep.subr.bf16.mxu0 0
        %2072 = vmatpush2.bf16.msra.mxu0 0
        %2073 = vmatprep.subr.bf16.mxu0 0
        %2074 = vmatpush2.bf16.msra.mxu0 0
        %2075 = vmatprep.subr.bf16.mxu0 0
        %2076 = vmatpush2.bf16.msra.mxu0 0
        %2077 = vmatprep.subr.bf16.mxu0 0
        %2078 = vmatpush2.bf16.msra.mxu0 0
        %2079 = vmatprep.subr.bf16.mxu0 0
        %2080 = vmatpush2.bf16.msra.mxu0 0
        %2081 = vmatprep.subr.bf16.mxu0 0
        %2082 = vmatpush2.bf16.msra.mxu0 0
        %2083 = vmatprep.subr.bf16.mxu0 0
        %2084 = vmatpush2.bf16.msra.mxu0 0
        %2085 = vmatprep.subr.bf16.mxu0 0
        %2086 = vmatpush2.bf16.msra.mxu0 0
        %2087 = vmatprep.mubr.bf16.mxu0 0
        %2088 = vmatmul.mubr.bf16.gmra.mxu0 %v2050
        %v2089 = vpop.f32.mrf.mxu0
        %v2090 = vadd.f32 0.0, %v2089
        %v2091 = vpop.f32.mrf.mxu0
        %v2092 = vpop.f32.mrf.mxu0
        %v2093 = vpop.f32.mrf.mxu0
        %2094 = vdwg.mxu0
        %v2095 = vpack.c.bf16 %v2090, %v2090
        %v2097 = vsel %vm822, %v1994, 0
        %v2100 = vsel %vm826, %v1997, 0
        %2102 = vmatprep.subr.bf16.mxu0 0
        %2103 = vmatpush1.bf16.msra.mxu0 0
        %2104 = vmatprep.subr.bf16.mxu0 0
        %2105 = vmatpush1.bf16.msra.mxu0 0
        %2106 = vmatprep.subr.bf16.mxu0 0
        %2107 = vmatpush1.bf16.msra.mxu0 0
        %2108 = vmatprep.subr.bf16.mxu0 0
        %2109 = vmatpush1.bf16.msra.mxu0 0
        %2110 = vmatprep.subr.bf16.mxu0 0
        %2111 = vmatpush1.bf16.msra.mxu0 0
        %2112 = vmatprep.subr.bf16.mxu0 0
        %2113 = vmatpush1.bf16.msra.mxu0 0
        %2114 = vmatprep.subr.bf16.mxu0 0
        %2115 = vmatpush1.bf16.msra.mxu0 0
        %2116 = vmatprep.subr.bf16.mxu0 0
        %2117 = vmatpush1.bf16.msra.mxu0 %v2100
        %2118 = vmatprep.subr.bf16.mxu0 0
        %2119 = vmatpush2.bf16.msra.mxu0 0
        %2120 = vmatprep.subr.bf16.mxu0 0
        %2121 = vmatpush2.bf16.msra.mxu0 0
        %2122 = vmatprep.subr.bf16.mxu0 0
        %2123 = vmatpush2.bf16.msra.mxu0 0
        %2124 = vmatprep.subr.bf16.mxu0 0
        %2125 = vmatpush2.bf16.msra.mxu0 0
        %2126 = vmatprep.subr.bf16.mxu0 0
        %2127 = vmatpush2.bf16.msra.mxu0 0
        %2128 = vmatprep.subr.bf16.mxu0 0
        %2129 = vmatpush2.bf16.msra.mxu0 0
        %2130 = vmatprep.subr.bf16.mxu0 0
        %2131 = vmatpush2.bf16.msra.mxu0 0
        %2132 = vmatprep.subr.bf16.mxu0 0
        %2133 = vmatpush2.bf16.msra.mxu0 0
        %2134 = vmatprep.mubr.bf16.mxu0 0
        %2135 = vmatmul.mubr.bf16.gmra.mxu0 %v2097
        %v2136 = vpop.f32.mrf.mxu0
        %v2137 = vadd.f32 0.0, %v2136
        %v2138 = vpop.f32.mrf.mxu0
        %v2139 = vpop.f32.mrf.mxu0
        %v2140 = vpop.f32.mrf.mxu0
        %2141 = vdwg.mxu0
        %v2142 = vpack.c.bf16 %v2137, %v2137
        %v2144 = vlaneseq
        %v2145 = vshrl.u32 %v2144, 7
        %v2146 = vsub.s32 0, %v2145
        %v2147 = vrot.slane %v813, %v2146
        %v2150 = vsel %vm822, %v2048, 0
        %v2153 = vsel %vm822, %v2095, 0
        %2155 = vmatprep.subr.bf16.mxu0 0
        %2156 = vmatpush1.bf16.xpose.msra.mxu0 0
        %2157 = vmatprep.subr.bf16.mxu0 0
        %2158 = vmatpush1.bf16.xpose.msra.mxu0 0
        %2159 = vmatprep.subr.bf16.mxu0 0
        %2160 = vmatpush1.bf16.xpose.msra.mxu0 0
        %2161 = vmatprep.subr.bf16.mxu0 0
        %2162 = vmatpush1.bf16.xpose.msra.mxu0 0
        %2163 = vmatprep.subr.bf16.mxu0 0
        %2164 = vmatpush1.bf16.xpose.msra.mxu0 0
        %2165 = vmatprep.subr.bf16.mxu0 0
        %2166 = vmatpush1.bf16.xpose.msra.mxu0 0
        %2167 = vmatprep.subr.bf16.mxu0 0
        %2168 = vmatpush1.bf16.xpose.msra.mxu0 0
        %2169 = vmatprep.subr.bf16.mxu0 0
        %2170 = vmatpush1.bf16.xpose.msra.mxu0 %v2153
        %2171 = vmatprep.subr.bf16.mxu0 0
        %2172 = vmatpush2.bf16.xpose.msra.mxu0 0
        %2173 = vmatprep.subr.bf16.mxu0 0
        %2174 = vmatpush2.bf16.xpose.msra.mxu0 0
        %2175 = vmatprep.subr.bf16.mxu0 0
        %2176 = vmatpush2.bf16.xpose.msra.mxu0 0
        %2177 = vmatprep.subr.bf16.mxu0 0
        %2178 = vmatpush2.bf16.xpose.msra.mxu0 0
        %2179 = vmatprep.subr.bf16.mxu0 0
        %2180 = vmatpush2.bf16.xpose.msra.mxu0 0
        %2181 = vmatprep.subr.bf16.mxu0 0
        %2182 = vmatpush2.bf16.xpose.msra.mxu0 0
        %2183 = vmatprep.subr.bf16.mxu0 0
        %2184 = vmatpush2.bf16.xpose.msra.mxu0 0
        %2185 = vmatprep.subr.bf16.mxu0 0
        %2186 = vmatpush2.bf16.xpose.msra.mxu0 0
        %2187 = vmatprep.mubr.bf16.mxu0 0
        %2188 = vmatmul.mubr.bf16.gmra.mxu0 %v2150
        %v2189 = vpop.f32.mrf.mxu0
        %v2190 = vadd.f32 %v2147, %v2189
        %v2191 = vpop.f32.mrf.mxu0
        %v2192 = vpop.f32.mrf.mxu0
        %v2193 = vpop.f32.mrf.mxu0
        %2194 = vdwg.mxu0
        %v2195 = vsel %vm822, %v2190, -inf
        %2196 = vmax.xlane.f32.xlu0 %v2195
        %v2197 = vpop.xlane.xlu0 %2196
        %v2198 = vsub.f32 %v2190, %v2197
        %v2199 = vmul.f32 %v2198, 1.442695
        %v2200 = vpow.pop %v2199
        %v2201 = vsel %vm822, %v2200, 0.0
        %2202 = vadd.xlane.f32.xlu0 %v2201
        %v2203 = vpop.xlane.xlu0 %2202
        %v2204 = vrcp.pop %v2203
        %v2205 = vmul.f32 %v2200, %v2204
        %v2206 = vpack.c.bf16 %v2205, %v2205
        %v2208 = vsel %vm822, %v2206, 0
        %v2211 = vsel %vm826, %v2142, 0
        %2213 = vmatprep.subr.bf16.mxu0 0
        %2214 = vmatpush1.bf16.msra.mxu0 0
        %2215 = vmatprep.subr.bf16.mxu0 0
        %2216 = vmatpush1.bf16.msra.mxu0 0
        %2217 = vmatprep.subr.bf16.mxu0 0
        %2218 = vmatpush1.bf16.msra.mxu0 0
        %2219 = vmatprep.subr.bf16.mxu0 0
        %2220 = vmatpush1.bf16.msra.mxu0 0
        %2221 = vmatprep.subr.bf16.mxu0 0
        %2222 = vmatpush1.bf16.msra.mxu0 0
        %2223 = vmatprep.subr.bf16.mxu0 0
        %2224 = vmatpush1.bf16.msra.mxu0 0
        %2225 = vmatprep.subr.bf16.mxu0 0
        %2226 = vmatpush1.bf16.msra.mxu0 0
        %2227 = vmatprep.subr.bf16.mxu0 0
        %2228 = vmatpush1.bf16.msra.mxu0 %v2211
        %2229 = vmatprep.subr.bf16.mxu0 0
        %2230 = vmatpush2.bf16.msra.mxu0 0
        %2231 = vmatprep.subr.bf16.mxu0 0
        %2232 = vmatpush2.bf16.msra.mxu0 0
        %2233 = vmatprep.subr.bf16.mxu0 0
        %2234 = vmatpush2.bf16.msra.mxu0 0
        %2235 = vmatprep.subr.bf16.mxu0 0
        %2236 = vmatpush2.bf16.msra.mxu0 0
        %2237 = vmatprep.subr.bf16.mxu0 0
        %2238 = vmatpush2.bf16.msra.mxu0 0
        %2239 = vmatprep.subr.bf16.mxu0 0
        %2240 = vmatpush2.bf16.msra.mxu0 0
        %2241 = vmatprep.subr.bf16.mxu0 0
        %2242 = vmatpush2.bf16.msra.mxu0 0
        %2243 = vmatprep.subr.bf16.mxu0 0
        %2244 = vmatpush2.bf16.msra.mxu0 0
        %2245 = vmatprep.mubr.bf16.mxu0 0
        %2246 = vmatmul.mubr.bf16.gmra.mxu0 %v2208
        %v2247 = vpop.f32.mrf.mxu0
        %v2248 = vadd.f32 0.0, %v2247
        %v2249 = vpop.f32.mrf.mxu0
        %v2250 = vpop.f32.mrf.mxu0
        %v2251 = vpop.f32.mrf.mxu0
        %2252 = vdwg.mxu0
        %v2253 = vpack.c.bf16 %v2248, %v2248
        %2255 = vrot.lane.b32.xlu0 %v1992, 120
        %v2256 = vpop.permute.xlu0 %2255
        %v2258 = vsel %vm822, %v2256, 0
        %2260 = vmatprep.subr.bf16.mxu0 0
        %2261 = vmatpush1.bf16.msra.mxu0 0
        %2262 = vmatprep.subr.bf16.mxu0 0
        %2263 = vmatpush1.bf16.msra.mxu0 0
        %2264 = vmatprep.subr.bf16.mxu0 0
        %2265 = vmatpush1.bf16.msra.mxu0 0
        %2266 = vmatprep.subr.bf16.mxu0 0
        %2267 = vmatpush1.bf16.msra.mxu0 0
        %2268 = vmatprep.subr.bf16.mxu0 0
        %2269 = vmatpush1.bf16.msra.mxu0 0
        %2270 = vmatprep.subr.bf16.mxu0 0
        %2271 = vmatpush1.bf16.msra.mxu0 0
        %2272 = vmatprep.subr.bf16.mxu0 0
        %2273 = vmatpush1.bf16.msra.mxu0 0
        %2274 = vmatprep.subr.bf16.mxu0 0
        %2275 = vmatpush1.bf16.msra.mxu0 %v2006
        %2276 = vmatprep.subr.bf16.mxu0 0
        %2277 = vmatpush2.bf16.msra.mxu0 0
        %2278 = vmatprep.subr.bf16.mxu0 0
        %2279 = vmatpush2.bf16.msra.mxu0 0
        %2280 = vmatprep.subr.bf16.mxu0 0
        %2281 = vmatpush2.bf16.msra.mxu0 0
        %2282 = vmatprep.subr.bf16.mxu0 0
        %2283 = vmatpush2.bf16.msra.mxu0 0
        %2284 = vmatprep.subr.bf16.mxu0 0
        %2285 = vmatpush2.bf16.msra.mxu0 0
        %2286 = vmatprep.subr.bf16.mxu0 0
        %2287 = vmatpush2.bf16.msra.mxu0 0
        %2288 = vmatprep.subr.bf16.mxu0 0
        %2289 = vmatpush2.bf16.msra.mxu0 0
        %2290 = vmatprep.subr.bf16.mxu0 0
        %2291 = vmatpush2.bf16.msra.mxu0 0
        %2292 = vmatprep.mubr.bf16.mxu0 0
        %2293 = vmatmul.mubr.bf16.gmra.mxu0 %v2258
        %v2294 = vpop.f32.mrf.mxu0
        %v2295 = vadd.f32 0.0, %v2294
        %v2296 = vpop.f32.mrf.mxu0
        %v2297 = vpop.f32.mrf.mxu0
        %v2298 = vpop.f32.mrf.mxu0
        %2299 = vdwg.mxu0
        %v2300 = vpack.c.bf16 %v2295, %v2295
        %2302 = vrot.lane.b32.xlu0 %v1993, 120
        %v2303 = vpop.permute.xlu0 %2302
        %v2305 = vsel %vm822, %v2303, 0
        %2307 = vmatprep.subr.bf16.mxu0 0
        %2308 = vmatpush1.bf16.msra.mxu0 0
        %2309 = vmatprep.subr.bf16.mxu0 0
        %2310 = vmatpush1.bf16.msra.mxu0 0
        %2311 = vmatprep.subr.bf16.mxu0 0
        %2312 = vmatpush1.bf16.msra.mxu0 0
        %2313 = vmatprep.subr.bf16.mxu0 0
        %2314 = vmatpush1.bf16.msra.mxu0 0
        %2315 = vmatprep.subr.bf16.mxu0 0
        %2316 = vmatpush1.bf16.msra.mxu0 0
        %2317 = vmatprep.subr.bf16.mxu0 0
        %2318 = vmatpush1.bf16.msra.mxu0 0
        %2319 = vmatprep.subr.bf16.mxu0 0
        %2320 = vmatpush1.bf16.msra.mxu0 0
        %2321 = vmatprep.subr.bf16.mxu0 0
        %2322 = vmatpush1.bf16.msra.mxu0 %v2053
        %2323 = vmatprep.subr.bf16.mxu0 0
        %2324 = vmatpush2.bf16.msra.mxu0 0
        %2325 = vmatprep.subr.bf16.mxu0 0
        %2326 = vmatpush2.bf16.msra.mxu0 0
        %2327 = vmatprep.subr.bf16.mxu0 0
        %2328 = vmatpush2.bf16.msra.mxu0 0
        %2329 = vmatprep.subr.bf16.mxu0 0
        %2330 = vmatpush2.bf16.msra.mxu0 0
        %2331 = vmatprep.subr.bf16.mxu0 0
        %2332 = vmatpush2.bf16.msra.mxu0 0
        %2333 = vmatprep.subr.bf16.mxu0 0
        %2334 = vmatpush2.bf16.msra.mxu0 0
        %2335 = vmatprep.subr.bf16.mxu0 0
        %2336 = vmatpush2.bf16.msra.mxu0 0
        %2337 = vmatprep.subr.bf16.mxu0 0
        %2338 = vmatpush2.bf16.msra.mxu0 0
        %2339 = vmatprep.mubr.bf16.mxu0 0
        %2340 = vmatmul.mubr.bf16.gmra.mxu0 %v2305
        %v2341 = vpop.f32.mrf.mxu0
        %v2342 = vadd.f32 0.0, %v2341
        %v2343 = vpop.f32.mrf.mxu0
        %v2344 = vpop.f32.mrf.mxu0
        %v2345 = vpop.f32.mrf.mxu0
        %2346 = vdwg.mxu0
        %v2347 = vpack.c.bf16 %v2342, %v2342
        %2349 = vrot.lane.b32.xlu0 %v1994, 120
        %v2350 = vpop.permute.xlu0 %2349
        %v2352 = vsel %vm822, %v2350, 0
        %2354 = vmatprep.subr.bf16.mxu0 0
        %2355 = vmatpush1.bf16.msra.mxu0 0
        %2356 = vmatprep.subr.bf16.mxu0 0
        %2357 = vmatpush1.bf16.msra.mxu0 0
        %2358 = vmatprep.subr.bf16.mxu0 0
        %2359 = vmatpush1.bf16.msra.mxu0 0
        %2360 = vmatprep.subr.bf16.mxu0 0
        %2361 = vmatpush1.bf16.msra.mxu0 0
        %2362 = vmatprep.subr.bf16.mxu0 0
        %2363 = vmatpush1.bf16.msra.mxu0 0
        %2364 = vmatprep.subr.bf16.mxu0 0
        %2365 = vmatpush1.bf16.msra.mxu0 0
        %2366 = vmatprep.subr.bf16.mxu0 0
        %2367 = vmatpush1.bf16.msra.mxu0 0
        %2368 = vmatprep.subr.bf16.mxu0 0
        %2369 = vmatpush1.bf16.msra.mxu0 %v2100
        %2370 = vmatprep.subr.bf16.mxu0 0
        %2371 = vmatpush2.bf16.msra.mxu0 0
        %2372 = vmatprep.subr.bf16.mxu0 0
        %2373 = vmatpush2.bf16.msra.mxu0 0
        %2374 = vmatprep.subr.bf16.mxu0 0
        %2375 = vmatpush2.bf16.msra.mxu0 0
        %2376 = vmatprep.subr.bf16.mxu0 0
        %2377 = vmatpush2.bf16.msra.mxu0 0
        %2378 = vmatprep.subr.bf16.mxu0 0
        %2379 = vmatpush2.bf16.msra.mxu0 0
        %2380 = vmatprep.subr.bf16.mxu0 0
        %2381 = vmatpush2.bf16.msra.mxu0 0
        %2382 = vmatprep.subr.bf16.mxu0 0
        %2383 = vmatpush2.bf16.msra.mxu0 0
        %2384 = vmatprep.subr.bf16.mxu0 0
        %2385 = vmatpush2.bf16.msra.mxu0 0
        %2386 = vmatprep.mubr.bf16.mxu0 0
        %2387 = vmatmul.mubr.bf16.gmra.mxu0 %v2352
        %v2388 = vpop.f32.mrf.mxu0
        %v2389 = vadd.f32 0.0, %v2388
        %v2390 = vpop.f32.mrf.mxu0
        %v2391 = vpop.f32.mrf.mxu0
        %v2392 = vpop.f32.mrf.mxu0
        %2393 = vdwg.mxu0
        %v2394 = vpack.c.bf16 %v2389, %v2389
        %v2396 = vsel %vm822, %v2300, 0
        %v2399 = vsel %vm822, %v2347, 0
        %2401 = vmatprep.subr.bf16.mxu0 0
        %2402 = vmatpush1.bf16.xpose.msra.mxu0 0
        %2403 = vmatprep.subr.bf16.mxu0 0
        %2404 = vmatpush1.bf16.xpose.msra.mxu0 0
        %2405 = vmatprep.subr.bf16.mxu0 0
        %2406 = vmatpush1.bf16.xpose.msra.mxu0 0
        %2407 = vmatprep.subr.bf16.mxu0 0
        %2408 = vmatpush1.bf16.xpose.msra.mxu0 0
        %2409 = vmatprep.subr.bf16.mxu0 0
        %2410 = vmatpush1.bf16.xpose.msra.mxu0 0
        %2411 = vmatprep.subr.bf16.mxu0 0
        %2412 = vmatpush1.bf16.xpose.msra.mxu0 0
        %2413 = vmatprep.subr.bf16.mxu0 0
        %2414 = vmatpush1.bf16.xpose.msra.mxu0 0
        %2415 = vmatprep.subr.bf16.mxu0 0
        %2416 = vmatpush1.bf16.xpose.msra.mxu0 %v2399
        %2417 = vmatprep.subr.bf16.mxu0 0
        %2418 = vmatpush2.bf16.xpose.msra.mxu0 0
        %2419 = vmatprep.subr.bf16.mxu0 0
        %2420 = vmatpush2.bf16.xpose.msra.mxu0 0
        %2421 = vmatprep.subr.bf16.mxu0 0
        %2422 = vmatpush2.bf16.xpose.msra.mxu0 0
        %2423 = vmatprep.subr.bf16.mxu0 0
        %2424 = vmatpush2.bf16.xpose.msra.mxu0 0
        %2425 = vmatprep.subr.bf16.mxu0 0
        %2426 = vmatpush2.bf16.xpose.msra.mxu0 0
        %2427 = vmatprep.subr.bf16.mxu0 0
        %2428 = vmatpush2.bf16.xpose.msra.mxu0 0
        %2429 = vmatprep.subr.bf16.mxu0 0
        %2430 = vmatpush2.bf16.xpose.msra.mxu0 0
        %2431 = vmatprep.subr.bf16.mxu0 0
        %2432 = vmatpush2.bf16.xpose.msra.mxu0 0
        %2433 = vmatprep.mubr.bf16.mxu0 0
        %2434 = vmatmul.mubr.bf16.gmra.mxu0 %v2396
        %v2435 = vpop.f32.mrf.mxu0
        %v2436 = vadd.f32 %v2147, %v2435
        %v2437 = vpop.f32.mrf.mxu0
        %v2438 = vpop.f32.mrf.mxu0
        %v2439 = vpop.f32.mrf.mxu0
        %2440 = vdwg.mxu0
        %v2441 = vsel %vm822, %v2436, -inf
        %2442 = vmax.xlane.f32.xlu0 %v2441
        %v2443 = vpop.xlane.xlu0 %2442
        %v2444 = vsub.f32 %v2436, %v2443
        %v2445 = vmul.f32 %v2444, 1.442695
        %v2446 = vpow.pop %v2445
        %v2447 = vsel %vm822, %v2446, 0.0
        %2448 = vadd.xlane.f32.xlu0 %v2447
        %v2449 = vpop.xlane.xlu0 %2448
        %v2450 = vrcp.pop %v2449
        %v2451 = vmul.f32 %v2446, %v2450
        %v2452 = vpack.c.bf16 %v2451, %v2451
        %v2454 = vsel %vm822, %v2452, 0
        %v2457 = vsel %vm826, %v2394, 0
        %2459 = vmatprep.subr.bf16.mxu0 0
        %2460 = vmatpush1.bf16.msra.mxu0 0
        %2461 = vmatprep.subr.bf16.mxu0 0
        %2462 = vmatpush1.bf16.msra.mxu0 0
        %2463 = vmatprep.subr.bf16.mxu0 0
        %2464 = vmatpush1.bf16.msra.mxu0 0
        %2465 = vmatprep.subr.bf16.mxu0 0
        %2466 = vmatpush1.bf16.msra.mxu0 0
        %2467 = vmatprep.subr.bf16.mxu0 0
        %2468 = vmatpush1.bf16.msra.mxu0 0
        %2469 = vmatprep.subr.bf16.mxu0 0
        %2470 = vmatpush1.bf16.msra.mxu0 0
        %2471 = vmatprep.subr.bf16.mxu0 0
        %2472 = vmatpush1.bf16.msra.mxu0 0
        %2473 = vmatprep.subr.bf16.mxu0 0
        %2474 = vmatpush1.bf16.msra.mxu0 %v2457
        %2475 = vmatprep.subr.bf16.mxu0 0
        %2476 = vmatpush2.bf16.msra.mxu0 0
        %2477 = vmatprep.subr.bf16.mxu0 0
        %2478 = vmatpush2.bf16.msra.mxu0 0
        %2479 = vmatprep.subr.bf16.mxu0 0
        %2480 = vmatpush2.bf16.msra.mxu0 0
        %2481 = vmatprep.subr.bf16.mxu0 0
        %2482 = vmatpush2.bf16.msra.mxu0 0
        %2483 = vmatprep.subr.bf16.mxu0 0
        %2484 = vmatpush2.bf16.msra.mxu0 0
        %2485 = vmatprep.subr.bf16.mxu0 0
        %2486 = vmatpush2.bf16.msra.mxu0 0
        %2487 = vmatprep.subr.bf16.mxu0 0
        %2488 = vmatpush2.bf16.msra.mxu0 0
        %2489 = vmatprep.subr.bf16.mxu0 0
        %2490 = vmatpush2.bf16.msra.mxu0 0
        %2491 = vmatprep.mubr.bf16.mxu0 0
        %2492 = vmatmul.mubr.bf16.gmra.mxu0 %v2454
        %v2493 = vpop.f32.mrf.mxu0
        %v2494 = vadd.f32 0.0, %v2493
        %v2495 = vpop.f32.mrf.mxu0
        %v2496 = vpop.f32.mrf.mxu0
        %v2497 = vpop.f32.mrf.mxu0
        %2498 = vdwg.mxu0
        %v2499 = vpack.c.bf16 %v2494, %v2494
        %v2501 = vsel %vm822, %v2499, 0
        %v2504 = vsel %vm826, %v1999, 0
        %2506 = vmatprep.subr.bf16.mxu0 0
        %2507 = vmatpush1.bf16.msra.mxu0 0
        %2508 = vmatprep.subr.bf16.mxu0 0
        %2509 = vmatpush1.bf16.msra.mxu0 0
        %2510 = vmatprep.subr.bf16.mxu0 0
        %2511 = vmatpush1.bf16.msra.mxu0 0
        %2512 = vmatprep.subr.bf16.mxu0 0
        %2513 = vmatpush1.bf16.msra.mxu0 0
        %2514 = vmatprep.subr.bf16.mxu0 0
        %2515 = vmatpush1.bf16.msra.mxu0 0
        %2516 = vmatprep.subr.bf16.mxu0 0
        %2517 = vmatpush1.bf16.msra.mxu0 0
        %2518 = vmatprep.subr.bf16.mxu0 0
        %2519 = vmatpush1.bf16.msra.mxu0 0
        %2520 = vmatprep.subr.bf16.mxu0 0
        %2521 = vmatpush1.bf16.msra.mxu0 %v2504
        %2522 = vmatprep.subr.bf16.mxu0 0
        %2523 = vmatpush2.bf16.msra.mxu0 0
        %2524 = vmatprep.subr.bf16.mxu0 0
        %2525 = vmatpush2.bf16.msra.mxu0 0
        %2526 = vmatprep.subr.bf16.mxu0 0
        %2527 = vmatpush2.bf16.msra.mxu0 0
        %2528 = vmatprep.subr.bf16.mxu0 0
        %2529 = vmatpush2.bf16.msra.mxu0 0
        %2530 = vmatprep.subr.bf16.mxu0 0
        %2531 = vmatpush2.bf16.msra.mxu0 0
        %2532 = vmatprep.subr.bf16.mxu0 0
        %2533 = vmatpush2.bf16.msra.mxu0 0
        %2534 = vmatprep.subr.bf16.mxu0 0
        %2535 = vmatpush2.bf16.msra.mxu0 0
        %2536 = vmatprep.subr.bf16.mxu0 0
        %2537 = vmatpush2.bf16.msra.mxu0 0
        %2538 = vmatprep.mubr.bf16.mxu0 0
        %2539 = vmatmul.mubr.bf16.gmra.mxu0 %v2501
        %v2540 = vpop.f32.mrf.mxu0
        %v2541 = vadd.f32 0.0, %v2540
        %v2542 = vpop.f32.mrf.mxu0
        %v2543 = vpop.f32.mrf.mxu0
        %v2544 = vpop.f32.mrf.mxu0
        %2545 = vdwg.mxu0
        %v2547 = vsel %vm822, %v2253, 0
        %v2550 = vsel %vm826, %v1998, 0
        %2552 = vmatprep.subr.bf16.mxu0 0
        %2553 = vmatpush1.bf16.msra.mxu0 0
        %2554 = vmatprep.subr.bf16.mxu0 0
        %2555 = vmatpush1.bf16.msra.mxu0 0
        %2556 = vmatprep.subr.bf16.mxu0 0
        %2557 = vmatpush1.bf16.msra.mxu0 0
        %2558 = vmatprep.subr.bf16.mxu0 0
        %2559 = vmatpush1.bf16.msra.mxu0 0
        %2560 = vmatprep.subr.bf16.mxu0 0
        %2561 = vmatpush1.bf16.msra.mxu0 0
        %2562 = vmatprep.subr.bf16.mxu0 0
        %2563 = vmatpush1.bf16.msra.mxu0 0
        %2564 = vmatprep.subr.bf16.mxu0 0
        %2565 = vmatpush1.bf16.msra.mxu0 0
        %2566 = vmatprep.subr.bf16.mxu0 0
        %2567 = vmatpush1.bf16.msra.mxu0 %v2550
        %2568 = vmatprep.subr.bf16.mxu0 0
        %2569 = vmatpush2.bf16.msra.mxu0 0
        %2570 = vmatprep.subr.bf16.mxu0 0
        %2571 = vmatpush2.bf16.msra.mxu0 0
        %2572 = vmatprep.subr.bf16.mxu0 0
        %2573 = vmatpush2.bf16.msra.mxu0 0
        %2574 = vmatprep.subr.bf16.mxu0 0
        %2575 = vmatpush2.bf16.msra.mxu0 0
        %2576 = vmatprep.subr.bf16.mxu0 0
        %2577 = vmatpush2.bf16.msra.mxu0 0
        %2578 = vmatprep.subr.bf16.mxu0 0
        %2579 = vmatpush2.bf16.msra.mxu0 0
        %2580 = vmatprep.subr.bf16.mxu0 0
        %2581 = vmatpush2.bf16.msra.mxu0 0
        %2582 = vmatprep.subr.bf16.mxu0 0
        %2583 = vmatpush2.bf16.msra.mxu0 0
        %2584 = vmatprep.mubr.bf16.mxu0 0
        %2585 = vmatmul.mubr.bf16.gmra.mxu0 %v2547
        %v2586 = vpop.f32.mrf.mxu0
        %v2587 = vadd.f32 %v2541, %v2586
        %v2588 = vpop.f32.mrf.mxu0
        %v2589 = vpop.f32.mrf.mxu0
        %v2590 = vpop.f32.mrf.mxu0
        %2591 = vdwg.mxu0
        %2592 = vrot.lane.b32.xlu0 %v1992, 112
        %v2593 = vpop.permute.xlu0 %2592
        %v2595 = vsel %vm822, %v2593, 0
        %2597 = vmatprep.subr.bf16.mxu0 0
        %2598 = vmatpush1.bf16.msra.mxu0 0
        %2599 = vmatprep.subr.bf16.mxu0 0
        %2600 = vmatpush1.bf16.msra.mxu0 0
        %2601 = vmatprep.subr.bf16.mxu0 0
        %2602 = vmatpush1.bf16.msra.mxu0 0
        %2603 = vmatprep.subr.bf16.mxu0 0
        %2604 = vmatpush1.bf16.msra.mxu0 0
        %2605 = vmatprep.subr.bf16.mxu0 0
        %2606 = vmatpush1.bf16.msra.mxu0 0
        %2607 = vmatprep.subr.bf16.mxu0 0
        %2608 = vmatpush1.bf16.msra.mxu0 0
        %2609 = vmatprep.subr.bf16.mxu0 0
        %2610 = vmatpush1.bf16.msra.mxu0 0
        %2611 = vmatprep.subr.bf16.mxu0 0
        %2612 = vmatpush1.bf16.msra.mxu0 %v2006
        %2613 = vmatprep.subr.bf16.mxu0 0
        %2614 = vmatpush2.bf16.msra.mxu0 0
        %2615 = vmatprep.subr.bf16.mxu0 0
        %2616 = vmatpush2.bf16.msra.mxu0 0
        %2617 = vmatprep.subr.bf16.mxu0 0
        %2618 = vmatpush2.bf16.msra.mxu0 0
        %2619 = vmatprep.subr.bf16.mxu0 0
        %2620 = vmatpush2.bf16.msra.mxu0 0
        %2621 = vmatprep.subr.bf16.mxu0 0
        %2622 = vmatpush2.bf16.msra.mxu0 0
        %2623 = vmatprep.subr.bf16.mxu0 0
        %2624 = vmatpush2.bf16.msra.mxu0 0
        %2625 = vmatprep.subr.bf16.mxu0 0
        %2626 = vmatpush2.bf16.msra.mxu0 0
        %2627 = vmatprep.subr.bf16.mxu0 0
        %2628 = vmatpush2.bf16.msra.mxu0 0
        %2629 = vmatprep.mubr.bf16.mxu0 0
        %2630 = vmatmul.mubr.bf16.gmra.mxu0 %v2595
        %v2631 = vpop.f32.mrf.mxu0
        %v2632 = vadd.f32 0.0, %v2631
        %v2633 = vpop.f32.mrf.mxu0
        %v2634 = vpop.f32.mrf.mxu0
        %v2635 = vpop.f32.mrf.mxu0
        %2636 = vdwg.mxu0
        %v2637 = vpack.c.bf16 %v2632, %v2632
        %2638 = vrot.lane.b32.xlu0 %v1993, 112
        %v2639 = vpop.permute.xlu0 %2638
        %v2641 = vsel %vm822, %v2639, 0
        %2643 = vmatprep.subr.bf16.mxu0 0
        %2644 = vmatpush1.bf16.msra.mxu0 0
        %2645 = vmatprep.subr.bf16.mxu0 0
        %2646 = vmatpush1.bf16.msra.mxu0 0
        %2647 = vmatprep.subr.bf16.mxu0 0
        %2648 = vmatpush1.bf16.msra.mxu0 0
        %2649 = vmatprep.subr.bf16.mxu0 0
        %2650 = vmatpush1.bf16.msra.mxu0 0
        %2651 = vmatprep.subr.bf16.mxu0 0
        %2652 = vmatpush1.bf16.msra.mxu0 0
        %2653 = vmatprep.subr.bf16.mxu0 0
        %2654 = vmatpush1.bf16.msra.mxu0 0
        %2655 = vmatprep.subr.bf16.mxu0 0
        %2656 = vmatpush1.bf16.msra.mxu0 0
        %2657 = vmatprep.subr.bf16.mxu0 0
        %2658 = vmatpush1.bf16.msra.mxu0 %v2053
        %2659 = vmatprep.subr.bf16.mxu0 0
        %2660 = vmatpush2.bf16.msra.mxu0 0
        %2661 = vmatprep.subr.bf16.mxu0 0
        %2662 = vmatpush2.bf16.msra.mxu0 0
        %2663 = vmatprep.subr.bf16.mxu0 0
        %2664 = vmatpush2.bf16.msra.mxu0 0
        %2665 = vmatprep.subr.bf16.mxu0 0
        %2666 = vmatpush2.bf16.msra.mxu0 0
        %2667 = vmatprep.subr.bf16.mxu0 0
        %2668 = vmatpush2.bf16.msra.mxu0 0
        %2669 = vmatprep.subr.bf16.mxu0 0
        %2670 = vmatpush2.bf16.msra.mxu0 0
        %2671 = vmatprep.subr.bf16.mxu0 0
        %2672 = vmatpush2.bf16.msra.mxu0 0
        %2673 = vmatprep.subr.bf16.mxu0 0
        %2674 = vmatpush2.bf16.msra.mxu0 0
        %2675 = vmatprep.mubr.bf16.mxu0 0
        %2676 = vmatmul.mubr.bf16.gmra.mxu0 %v2641
        %v2677 = vpop.f32.mrf.mxu0
        %v2678 = vadd.f32 0.0, %v2677
        %v2679 = vpop.f32.mrf.mxu0
        %v2680 = vpop.f32.mrf.mxu0
        %v2681 = vpop.f32.mrf.mxu0
        %2682 = vdwg.mxu0
        %v2683 = vpack.c.bf16 %v2678, %v2678
        %2684 = vrot.lane.b32.xlu0 %v1994, 112
        %v2685 = vpop.permute.xlu0 %2684
        %v2687 = vsel %vm822, %v2685, 0
        %2689 = vmatprep.subr.bf16.mxu0 0
        %2690 = vmatpush1.bf16.msra.mxu0 0
        %2691 = vmatprep.subr.bf16.mxu0 0
        %2692 = vmatpush1.bf16.msra.mxu0 0
        %2693 = vmatprep.subr.bf16.mxu0 0
        %2694 = vmatpush1.bf16.msra.mxu0 0
        %2695 = vmatprep.subr.bf16.mxu0 0
        %2696 = vmatpush1.bf16.msra.mxu0 0
        %2697 = vmatprep.subr.bf16.mxu0 0
        %2698 = vmatpush1.bf16.msra.mxu0 0
        %2699 = vmatprep.subr.bf16.mxu0 0
        %2700 = vmatpush1.bf16.msra.mxu0 0
        %2701 = vmatprep.subr.bf16.mxu0 0
        %2702 = vmatpush1.bf16.msra.mxu0 0
        %2703 = vmatprep.subr.bf16.mxu0 0
        %2704 = vmatpush1.bf16.msra.mxu0 %v2100
        %2705 = vmatprep.subr.bf16.mxu0 0
        %2706 = vmatpush2.bf16.msra.mxu0 0
        %2707 = vmatprep.subr.bf16.mxu0 0
        %2708 = vmatpush2.bf16.msra.mxu0 0
        %2709 = vmatprep.subr.bf16.mxu0 0
        %2710 = vmatpush2.bf16.msra.mxu0 0
        %2711 = vmatprep.subr.bf16.mxu0 0
        %2712 = vmatpush2.bf16.msra.mxu0 0
        %2713 = vmatprep.subr.bf16.mxu0 0
        %2714 = vmatpush2.bf16.msra.mxu0 0
        %2715 = vmatprep.subr.bf16.mxu0 0
        %2716 = vmatpush2.bf16.msra.mxu0 0
        %2717 = vmatprep.subr.bf16.mxu0 0
        %2718 = vmatpush2.bf16.msra.mxu0 0
        %2719 = vmatprep.subr.bf16.mxu0 0
        %2720 = vmatpush2.bf16.msra.mxu0 0
        %2721 = vmatprep.mubr.bf16.mxu0 0
        %2722 = vmatmul.mubr.bf16.gmra.mxu0 %v2687
        %v2723 = vpop.f32.mrf.mxu0
        %v2724 = vadd.f32 0.0, %v2723
        %v2725 = vpop.f32.mrf.mxu0
        %v2726 = vpop.f32.mrf.mxu0
        %v2727 = vpop.f32.mrf.mxu0
        %2728 = vdwg.mxu0
        %v2729 = vpack.c.bf16 %v2724, %v2724
        %v2731 = vsel %vm822, %v2637, 0
        %v2734 = vsel %vm822, %v2683, 0
        %2736 = vmatprep.subr.bf16.mxu0 0
        %2737 = vmatpush1.bf16.xpose.msra.mxu0 0
        %2738 = vmatprep.subr.bf16.mxu0 0
        %2739 = vmatpush1.bf16.xpose.msra.mxu0 0
        %2740 = vmatprep.subr.bf16.mxu0 0
        %2741 = vmatpush1.bf16.xpose.msra.mxu0 0
        %2742 = vmatprep.subr.bf16.mxu0 0
        %2743 = vmatpush1.bf16.xpose.msra.mxu0 0
        %2744 = vmatprep.subr.bf16.mxu0 0
        %2745 = vmatpush1.bf16.xpose.msra.mxu0 0
        %2746 = vmatprep.subr.bf16.mxu0 0
        %2747 = vmatpush1.bf16.xpose.msra.mxu0 0
        %2748 = vmatprep.subr.bf16.mxu0 0
        %2749 = vmatpush1.bf16.xpose.msra.mxu0 0
        %2750 = vmatprep.subr.bf16.mxu0 0
        %2751 = vmatpush1.bf16.xpose.msra.mxu0 %v2734
        %2752 = vmatprep.subr.bf16.mxu0 0
        %2753 = vmatpush2.bf16.xpose.msra.mxu0 0
        %2754 = vmatprep.subr.bf16.mxu0 0
        %2755 = vmatpush2.bf16.xpose.msra.mxu0 0
        %2756 = vmatprep.subr.bf16.mxu0 0
        %2757 = vmatpush2.bf16.xpose.msra.mxu0 0
        %2758 = vmatprep.subr.bf16.mxu0 0
        %2759 = vmatpush2.bf16.xpose.msra.mxu0 0
        %2760 = vmatprep.subr.bf16.mxu0 0
        %2761 = vmatpush2.bf16.xpose.msra.mxu0 0
        %2762 = vmatprep.subr.bf16.mxu0 0
        %2763 = vmatpush2.bf16.xpose.msra.mxu0 0
        %2764 = vmatprep.subr.bf16.mxu0 0
        %2765 = vmatpush2.bf16.xpose.msra.mxu0 0
        %2766 = vmatprep.subr.bf16.mxu0 0
        %2767 = vmatpush2.bf16.xpose.msra.mxu0 0
        %2768 = vmatprep.mubr.bf16.mxu0 0
        %2769 = vmatmul.mubr.bf16.gmra.mxu0 %v2731
        %v2770 = vpop.f32.mrf.mxu0
        %v2771 = vadd.f32 %v2147, %v2770
        %v2772 = vpop.f32.mrf.mxu0
        %v2773 = vpop.f32.mrf.mxu0
        %v2774 = vpop.f32.mrf.mxu0
        %2775 = vdwg.mxu0
        %v2776 = vsel %vm822, %v2771, -inf
        %2777 = vmax.xlane.f32.xlu0 %v2776
        %v2778 = vpop.xlane.xlu0 %2777
        %v2779 = vsub.f32 %v2771, %v2778
        %v2780 = vmul.f32 %v2779, 1.442695
        %v2781 = vpow.pop %v2780
        %v2782 = vsel %vm822, %v2781, 0.0
        %2783 = vadd.xlane.f32.xlu0 %v2782
        %v2784 = vpop.xlane.xlu0 %2783
        %v2785 = vrcp.pop %v2784
        %v2786 = vmul.f32 %v2781, %v2785
        %v2787 = vpack.c.bf16 %v2786, %v2786
        %v2789 = vsel %vm822, %v2787, 0
        %v2792 = vsel %vm826, %v2729, 0
        %2794 = vmatprep.subr.bf16.mxu0 0
        %2795 = vmatpush1.bf16.msra.mxu0 0
        %2796 = vmatprep.subr.bf16.mxu0 0
        %2797 = vmatpush1.bf16.msra.mxu0 0
        %2798 = vmatprep.subr.bf16.mxu0 0
        %2799 = vmatpush1.bf16.msra.mxu0 0
        %2800 = vmatprep.subr.bf16.mxu0 0
        %2801 = vmatpush1.bf16.msra.mxu0 0
        %2802 = vmatprep.subr.bf16.mxu0 0
        %2803 = vmatpush1.bf16.msra.mxu0 0
        %2804 = vmatprep.subr.bf16.mxu0 0
        %2805 = vmatpush1.bf16.msra.mxu0 0
        %2806 = vmatprep.subr.bf16.mxu0 0
        %2807 = vmatpush1.bf16.msra.mxu0 0
        %2808 = vmatprep.subr.bf16.mxu0 0
        %2809 = vmatpush1.bf16.msra.mxu0 %v2792
        %2810 = vmatprep.subr.bf16.mxu0 0
        %2811 = vmatpush2.bf16.msra.mxu0 0
        %2812 = vmatprep.subr.bf16.mxu0 0
        %2813 = vmatpush2.bf16.msra.mxu0 0
        %2814 = vmatprep.subr.bf16.mxu0 0
        %2815 = vmatpush2.bf16.msra.mxu0 0
        %2816 = vmatprep.subr.bf16.mxu0 0
        %2817 = vmatpush2.bf16.msra.mxu0 0
        %2818 = vmatprep.subr.bf16.mxu0 0
        %2819 = vmatpush2.bf16.msra.mxu0 0
        %2820 = vmatprep.subr.bf16.mxu0 0
        %2821 = vmatpush2.bf16.msra.mxu0 0
        %2822 = vmatprep.subr.bf16.mxu0 0
        %2823 = vmatpush2.bf16.msra.mxu0 0
        %2824 = vmatprep.subr.bf16.mxu0 0
        %2825 = vmatpush2.bf16.msra.mxu0 0
        %2826 = vmatprep.mubr.bf16.mxu0 0
        %2827 = vmatmul.mubr.bf16.gmra.mxu0 %v2789
        %v2828 = vpop.f32.mrf.mxu0
        %v2829 = vadd.f32 0.0, %v2828
        %v2830 = vpop.f32.mrf.mxu0
        %v2831 = vpop.f32.mrf.mxu0
        %v2832 = vpop.f32.mrf.mxu0
        %2833 = vdwg.mxu0
        %v2834 = vpack.c.bf16 %v2829, %v2829
        %v2836 = vsel %vm822, %v2834, 0
        %v2839 = vsel %vm826, %v2000, 0
        %2841 = vmatprep.subr.bf16.mxu0 0
        %2842 = vmatpush1.bf16.msra.mxu0 0
        %2843 = vmatprep.subr.bf16.mxu0 0
        %2844 = vmatpush1.bf16.msra.mxu0 0
        %2845 = vmatprep.subr.bf16.mxu0 0
        %2846 = vmatpush1.bf16.msra.mxu0 0
        %2847 = vmatprep.subr.bf16.mxu0 0
        %2848 = vmatpush1.bf16.msra.mxu0 0
        %2849 = vmatprep.subr.bf16.mxu0 0
        %2850 = vmatpush1.bf16.msra.mxu0 0
        %2851 = vmatprep.subr.bf16.mxu0 0
        %2852 = vmatpush1.bf16.msra.mxu0 0
        %2853 = vmatprep.subr.bf16.mxu0 0
        %2854 = vmatpush1.bf16.msra.mxu0 0
        %2855 = vmatprep.subr.bf16.mxu0 0
        %2856 = vmatpush1.bf16.msra.mxu0 %v2839
        %2857 = vmatprep.subr.bf16.mxu0 0
        %2858 = vmatpush2.bf16.msra.mxu0 0
        %2859 = vmatprep.subr.bf16.mxu0 0
        %2860 = vmatpush2.bf16.msra.mxu0 0
        %2861 = vmatprep.subr.bf16.mxu0 0
        %2862 = vmatpush2.bf16.msra.mxu0 0
        %2863 = vmatprep.subr.bf16.mxu0 0
        %2864 = vmatpush2.bf16.msra.mxu0 0
        %2865 = vmatprep.subr.bf16.mxu0 0
        %2866 = vmatpush2.bf16.msra.mxu0 0
        %2867 = vmatprep.subr.bf16.mxu0 0
        %2868 = vmatpush2.bf16.msra.mxu0 0
        %2869 = vmatprep.subr.bf16.mxu0 0
        %2870 = vmatpush2.bf16.msra.mxu0 0
        %2871 = vmatprep.subr.bf16.mxu0 0
        %2872 = vmatpush2.bf16.msra.mxu0 0
        %2873 = vmatprep.mubr.bf16.mxu0 0
        %2874 = vmatmul.mubr.bf16.gmra.mxu0 %v2836
        %v2875 = vpop.f32.mrf.mxu0
        %v2876 = vadd.f32 0.0, %v2875
        %v2877 = vpop.f32.mrf.mxu0
        %v2878 = vpop.f32.mrf.mxu0
        %v2879 = vpop.f32.mrf.mxu0
        %2880 = vdwg.mxu0
        %v2881 = vadd.f32 %v2587, %v2876
        %2882 = vrot.lane.b32.xlu0 %v1992, 104
        %v2883 = vpop.permute.xlu0 %2882
        %v2885 = vsel %vm822, %v2883, 0
        %2887 = vmatprep.subr.bf16.mxu0 0
        %2888 = vmatpush1.bf16.msra.mxu0 0
        %2889 = vmatprep.subr.bf16.mxu0 0
        %2890 = vmatpush1.bf16.msra.mxu0 0
        %2891 = vmatprep.subr.bf16.mxu0 0
        %2892 = vmatpush1.bf16.msra.mxu0 0
        %2893 = vmatprep.subr.bf16.mxu0 0
        %2894 = vmatpush1.bf16.msra.mxu0 0
        %2895 = vmatprep.subr.bf16.mxu0 0
        %2896 = vmatpush1.bf16.msra.mxu0 0
        %2897 = vmatprep.subr.bf16.mxu0 0
        %2898 = vmatpush1.bf16.msra.mxu0 0
        %2899 = vmatprep.subr.bf16.mxu0 0
        %2900 = vmatpush1.bf16.msra.mxu0 0
        %2901 = vmatprep.subr.bf16.mxu0 0
        %2902 = vmatpush1.bf16.msra.mxu0 %v2006
        %2903 = vmatprep.subr.bf16.mxu0 0
        %2904 = vmatpush2.bf16.msra.mxu0 0
        %2905 = vmatprep.subr.bf16.mxu0 0
        %2906 = vmatpush2.bf16.msra.mxu0 0
        %2907 = vmatprep.subr.bf16.mxu0 0
        %2908 = vmatpush2.bf16.msra.mxu0 0
        %2909 = vmatprep.subr.bf16.mxu0 0
        %2910 = vmatpush2.bf16.msra.mxu0 0
        %2911 = vmatprep.subr.bf16.mxu0 0
        %2912 = vmatpush2.bf16.msra.mxu0 0
        %2913 = vmatprep.subr.bf16.mxu0 0
        %2914 = vmatpush2.bf16.msra.mxu0 0
        %2915 = vmatprep.subr.bf16.mxu0 0
        %2916 = vmatpush2.bf16.msra.mxu0 0
        %2917 = vmatprep.subr.bf16.mxu0 0
        %2918 = vmatpush2.bf16.msra.mxu0 0
        %2919 = vmatprep.mubr.bf16.mxu0 0
        %2920 = vmatmul.mubr.bf16.gmra.mxu0 %v2885
        %v2921 = vpop.f32.mrf.mxu0
        %v2922 = vadd.f32 0.0, %v2921
        %v2923 = vpop.f32.mrf.mxu0
        %v2924 = vpop.f32.mrf.mxu0
        %v2925 = vpop.f32.mrf.mxu0
        %2926 = vdwg.mxu0
        %v2927 = vpack.c.bf16 %v2922, %v2922
        %2928 = vrot.lane.b32.xlu0 %v1993, 104
        %v2929 = vpop.permute.xlu0 %2928
        %v2931 = vsel %vm822, %v2929, 0
        %2933 = vmatprep.subr.bf16.mxu0 0
        %2934 = vmatpush1.bf16.msra.mxu0 0
        %2935 = vmatprep.subr.bf16.mxu0 0
        %2936 = vmatpush1.bf16.msra.mxu0 0
        %2937 = vmatprep.subr.bf16.mxu0 0
        %2938 = vmatpush1.bf16.msra.mxu0 0
        %2939 = vmatprep.subr.bf16.mxu0 0
        %2940 = vmatpush1.bf16.msra.mxu0 0
        %2941 = vmatprep.subr.bf16.mxu0 0
        %2942 = vmatpush1.bf16.msra.mxu0 0
        %2943 = vmatprep.subr.bf16.mxu0 0
        %2944 = vmatpush1.bf16.msra.mxu0 0
        %2945 = vmatprep.subr.bf16.mxu0 0
        %2946 = vmatpush1.bf16.msra.mxu0 0
        %2947 = vmatprep.subr.bf16.mxu0 0
        %2948 = vmatpush1.bf16.msra.mxu0 %v2053
        %2949 = vmatprep.subr.bf16.mxu0 0
        %2950 = vmatpush2.bf16.msra.mxu0 0
        %2951 = vmatprep.subr.bf16.mxu0 0
        %2952 = vmatpush2.bf16.msra.mxu0 0
        %2953 = vmatprep.subr.bf16.mxu0 0
        %2954 = vmatpush2.bf16.msra.mxu0 0
        %2955 = vmatprep.subr.bf16.mxu0 0
        %2956 = vmatpush2.bf16.msra.mxu0 0
        %2957 = vmatprep.subr.bf16.mxu0 0
        %2958 = vmatpush2.bf16.msra.mxu0 0
        %2959 = vmatprep.subr.bf16.mxu0 0
        %2960 = vmatpush2.bf16.msra.mxu0 0
        %2961 = vmatprep.subr.bf16.mxu0 0
        %2962 = vmatpush2.bf16.msra.mxu0 0
        %2963 = vmatprep.subr.bf16.mxu0 0
        %2964 = vmatpush2.bf16.msra.mxu0 0
        %2965 = vmatprep.mubr.bf16.mxu0 0
        %2966 = vmatmul.mubr.bf16.gmra.mxu0 %v2931
        %v2967 = vpop.f32.mrf.mxu0
        %v2968 = vadd.f32 0.0, %v2967
        %v2969 = vpop.f32.mrf.mxu0
        %v2970 = vpop.f32.mrf.mxu0
        %v2971 = vpop.f32.mrf.mxu0
        %2972 = vdwg.mxu0
        %v2973 = vpack.c.bf16 %v2968, %v2968
        %2974 = vrot.lane.b32.xlu0 %v1994, 104
        %v2975 = vpop.permute.xlu0 %2974
        %v2977 = vsel %vm822, %v2975, 0
        %2979 = vmatprep.subr.bf16.mxu0 0
        %2980 = vmatpush1.bf16.msra.mxu0 0
        %2981 = vmatprep.subr.bf16.mxu0 0
        %2982 = vmatpush1.bf16.msra.mxu0 0
        %2983 = vmatprep.subr.bf16.mxu0 0
        %2984 = vmatpush1.bf16.msra.mxu0 0
        %2985 = vmatprep.subr.bf16.mxu0 0
        %2986 = vmatpush1.bf16.msra.mxu0 0
        %2987 = vmatprep.subr.bf16.mxu0 0
        %2988 = vmatpush1.bf16.msra.mxu0 0
        %2989 = vmatprep.subr.bf16.mxu0 0
        %2990 = vmatpush1.bf16.msra.mxu0 0
        %2991 = vmatprep.subr.bf16.mxu0 0
        %2992 = vmatpush1.bf16.msra.mxu0 0
        %2993 = vmatprep.subr.bf16.mxu0 0
        %2994 = vmatpush1.bf16.msra.mxu0 %v2100
        %2995 = vmatprep.subr.bf16.mxu0 0
        %2996 = vmatpush2.bf16.msra.mxu0 0
        %2997 = vmatprep.subr.bf16.mxu0 0
        %2998 = vmatpush2.bf16.msra.mxu0 0
        %2999 = vmatprep.subr.bf16.mxu0 0
        %3000 = vmatpush2.bf16.msra.mxu0 0
        %3001 = vmatprep.subr.bf16.mxu0 0
        %3002 = vmatpush2.bf16.msra.mxu0 0
        %3003 = vmatprep.subr.bf16.mxu0 0
        %3004 = vmatpush2.bf16.msra.mxu0 0
        %3005 = vmatprep.subr.bf16.mxu0 0
        %3006 = vmatpush2.bf16.msra.mxu0 0
        %3007 = vmatprep.subr.bf16.mxu0 0
        %3008 = vmatpush2.bf16.msra.mxu0 0
        %3009 = vmatprep.subr.bf16.mxu0 0
        %3010 = vmatpush2.bf16.msra.mxu0 0
        %3011 = vmatprep.mubr.bf16.mxu0 0
        %3012 = vmatmul.mubr.bf16.gmra.mxu0 %v2977
        %v3013 = vpop.f32.mrf.mxu0
        %v3014 = vadd.f32 0.0, %v3013
        %v3015 = vpop.f32.mrf.mxu0
        %v3016 = vpop.f32.mrf.mxu0
        %v3017 = vpop.f32.mrf.mxu0
        %3018 = vdwg.mxu0
        %v3019 = vpack.c.bf16 %v3014, %v3014
        %v3021 = vsel %vm822, %v2927, 0
        %v3024 = vsel %vm822, %v2973, 0
        %3026 = vmatprep.subr.bf16.mxu0 0
        %3027 = vmatpush1.bf16.xpose.msra.mxu0 0
        %3028 = vmatprep.subr.bf16.mxu0 0
        %3029 = vmatpush1.bf16.xpose.msra.mxu0 0
        %3030 = vmatprep.subr.bf16.mxu0 0
        %3031 = vmatpush1.bf16.xpose.msra.mxu0 0
        %3032 = vmatprep.subr.bf16.mxu0 0
        %3033 = vmatpush1.bf16.xpose.msra.mxu0 0
        %3034 = vmatprep.subr.bf16.mxu0 0
        %3035 = vmatpush1.bf16.xpose.msra.mxu0 0
        %3036 = vmatprep.subr.bf16.mxu0 0
        %3037 = vmatpush1.bf16.xpose.msra.mxu0 0
        %3038 = vmatprep.subr.bf16.mxu0 0
        %3039 = vmatpush1.bf16.xpose.msra.mxu0 0
        %3040 = vmatprep.subr.bf16.mxu0 0
        %3041 = vmatpush1.bf16.xpose.msra.mxu0 %v3024
        %3042 = vmatprep.subr.bf16.mxu0 0
        %3043 = vmatpush2.bf16.xpose.msra.mxu0 0
        %3044 = vmatprep.subr.bf16.mxu0 0
        %3045 = vmatpush2.bf16.xpose.msra.mxu0 0
        %3046 = vmatprep.subr.bf16.mxu0 0
        %3047 = vmatpush2.bf16.xpose.msra.mxu0 0
        %3048 = vmatprep.subr.bf16.mxu0 0
        %3049 = vmatpush2.bf16.xpose.msra.mxu0 0
        %3050 = vmatprep.subr.bf16.mxu0 0
        %3051 = vmatpush2.bf16.xpose.msra.mxu0 0
        %3052 = vmatprep.subr.bf16.mxu0 0
        %3053 = vmatpush2.bf16.xpose.msra.mxu0 0
        %3054 = vmatprep.subr.bf16.mxu0 0
        %3055 = vmatpush2.bf16.xpose.msra.mxu0 0
        %3056 = vmatprep.subr.bf16.mxu0 0
        %3057 = vmatpush2.bf16.xpose.msra.mxu0 0
        %3058 = vmatprep.mubr.bf16.mxu0 0
        %3059 = vmatmul.mubr.bf16.gmra.mxu0 %v3021
        %v3060 = vpop.f32.mrf.mxu0
        %v3061 = vadd.f32 %v2147, %v3060
        %v3062 = vpop.f32.mrf.mxu0
        %v3063 = vpop.f32.mrf.mxu0
        %v3064 = vpop.f32.mrf.mxu0
        %3065 = vdwg.mxu0
        %v3066 = vsel %vm822, %v3061, -inf
        %3067 = vmax.xlane.f32.xlu0 %v3066
        %v3068 = vpop.xlane.xlu0 %3067
        %v3069 = vsub.f32 %v3061, %v3068
        %v3070 = vmul.f32 %v3069, 1.442695
        %v3071 = vpow.pop %v3070
        %v3072 = vsel %vm822, %v3071, 0.0
        %3073 = vadd.xlane.f32.xlu0 %v3072
        %v3074 = vpop.xlane.xlu0 %3073
        %v3075 = vrcp.pop %v3074
        %v3076 = vmul.f32 %v3071, %v3075
        %v3077 = vpack.c.bf16 %v3076, %v3076
        %v3079 = vsel %vm822, %v3077, 0
        %v3082 = vsel %vm826, %v3019, 0
        %3084 = vmatprep.subr.bf16.mxu0 0
        %3085 = vmatpush1.bf16.msra.mxu0 0
        %3086 = vmatprep.subr.bf16.mxu0 0
        %3087 = vmatpush1.bf16.msra.mxu0 0
        %3088 = vmatprep.subr.bf16.mxu0 0
        %3089 = vmatpush1.bf16.msra.mxu0 0
        %3090 = vmatprep.subr.bf16.mxu0 0
        %3091 = vmatpush1.bf16.msra.mxu0 0
        %3092 = vmatprep.subr.bf16.mxu0 0
        %3093 = vmatpush1.bf16.msra.mxu0 0
        %3094 = vmatprep.subr.bf16.mxu0 0
        %3095 = vmatpush1.bf16.msra.mxu0 0
        %3096 = vmatprep.subr.bf16.mxu0 0
        %3097 = vmatpush1.bf16.msra.mxu0 0
        %3098 = vmatprep.subr.bf16.mxu0 0
        %3099 = vmatpush1.bf16.msra.mxu0 %v3082
        %3100 = vmatprep.subr.bf16.mxu0 0
        %3101 = vmatpush2.bf16.msra.mxu0 0
        %3102 = vmatprep.subr.bf16.mxu0 0
        %3103 = vmatpush2.bf16.msra.mxu0 0
        %3104 = vmatprep.subr.bf16.mxu0 0
        %3105 = vmatpush2.bf16.msra.mxu0 0
        %3106 = vmatprep.subr.bf16.mxu0 0
        %3107 = vmatpush2.bf16.msra.mxu0 0
        %3108 = vmatprep.subr.bf16.mxu0 0
        %3109 = vmatpush2.bf16.msra.mxu0 0
        %3110 = vmatprep.subr.bf16.mxu0 0
        %3111 = vmatpush2.bf16.msra.mxu0 0
        %3112 = vmatprep.subr.bf16.mxu0 0
        %3113 = vmatpush2.bf16.msra.mxu0 0
        %3114 = vmatprep.subr.bf16.mxu0 0
        %3115 = vmatpush2.bf16.msra.mxu0 0
        %3116 = vmatprep.mubr.bf16.mxu0 0
        %3117 = vmatmul.mubr.bf16.gmra.mxu0 %v3079
        %v3118 = vpop.f32.mrf.mxu0
        %v3119 = vadd.f32 0.0, %v3118
        %v3120 = vpop.f32.mrf.mxu0
        %v3121 = vpop.f32.mrf.mxu0
        %v3122 = vpop.f32.mrf.mxu0
        %3123 = vdwg.mxu0
        %v3124 = vpack.c.bf16 %v3119, %v3119
        %v3126 = vsel %vm822, %v3124, 0
        %v3129 = vsel %vm826, %v2001, 0
        %3131 = vmatprep.subr.bf16.mxu0 0
        %3132 = vmatpush1.bf16.msra.mxu0 0
        %3133 = vmatprep.subr.bf16.mxu0 0
        %3134 = vmatpush1.bf16.msra.mxu0 0
        %3135 = vmatprep.subr.bf16.mxu0 0
        %3136 = vmatpush1.bf16.msra.mxu0 0
        %3137 = vmatprep.subr.bf16.mxu0 0
        %3138 = vmatpush1.bf16.msra.mxu0 0
        %3139 = vmatprep.subr.bf16.mxu0 0
        %3140 = vmatpush1.bf16.msra.mxu0 0
        %3141 = vmatprep.subr.bf16.mxu0 0
        %3142 = vmatpush1.bf16.msra.mxu0 0
        %3143 = vmatprep.subr.bf16.mxu0 0
        %3144 = vmatpush1.bf16.msra.mxu0 0
        %3145 = vmatprep.subr.bf16.mxu0 0
        %3146 = vmatpush1.bf16.msra.mxu0 %v3129
        %3147 = vmatprep.subr.bf16.mxu0 0
        %3148 = vmatpush2.bf16.msra.mxu0 0
        %3149 = vmatprep.subr.bf16.mxu0 0
        %3150 = vmatpush2.bf16.msra.mxu0 0
        %3151 = vmatprep.subr.bf16.mxu0 0
        %3152 = vmatpush2.bf16.msra.mxu0 0
        %3153 = vmatprep.subr.bf16.mxu0 0
        %3154 = vmatpush2.bf16.msra.mxu0 0
        %3155 = vmatprep.subr.bf16.mxu0 0
        %3156 = vmatpush2.bf16.msra.mxu0 0
        %3157 = vmatprep.subr.bf16.mxu0 0
        %3158 = vmatpush2.bf16.msra.mxu0 0
        %3159 = vmatprep.subr.bf16.mxu0 0
        %3160 = vmatpush2.bf16.msra.mxu0 0
        %3161 = vmatprep.subr.bf16.mxu0 0
        %3162 = vmatpush2.bf16.msra.mxu0 0
        %3163 = vmatprep.mubr.bf16.mxu0 0
        %3164 = vmatmul.mubr.bf16.gmra.mxu0 %v3126
        %v3165 = vpop.f32.mrf.mxu0
        %v3166 = vadd.f32 0.0, %v3165
        %v3167 = vpop.f32.mrf.mxu0
        %v3168 = vpop.f32.mrf.mxu0
        %v3169 = vpop.f32.mrf.mxu0
        %3170 = vdwg.mxu0
        %v3171 = vadd.f32 %v2881, %v3166
        %v3172 = vld [vmem:[%s16] sm:$0x1]
        %v3174 = vlaneseq
        %v3175 = vshrl.u32 %v3174, 7
        %v3176 = vsub.s32 0, %v3175
        %v3177 = vrot.slane %v3172, %v3176
        %v3179 = vadd.f32 %v3171, %v3177
        %v3180 = vadd.f32 %v3179, %v1991
        %v3181 = vld [vmem:[%s17] sm:$0x1]
        %v3182 = vld [vmem:[%s18] sm:$0x1]
        %v3183 = vsel %vm1961, %v3180, 0.0
        %3184 = vadd.xlane.f32.xlu0 %v3183
        %v3185 = vpop.xlane.xlu0 %3184
        %v3186 = vmul.f32 %v3185, %v1965
        %v3187 = vmul.f32 %v3180, %v3180
        %v3188 = vsel %vm1961, %v3187, 0.0
        %3189 = vadd.xlane.f32.xlu0 %v3188
        %v3190 = vpop.xlane.xlu0 %3189
        %v3191 = vmul.f32 %v3190, %v1965
        %v3192 = vmul.f32 %v3186, %v3186
        %v3193 = vsub.f32 %v3191, %v3192
        %v3194 = vsub.f32 %v3180, %v3186
        %v3195 = vadd.f32 %v3193, 1e-05
        %v3196 = vrsqrt.pop %v3195
        %v3197 = vmul.f32 %v3194, %v3196
        %v3199 = vlaneseq
        %v3200 = vshrl.u32 %v3199, 7
        %v3201 = vsub.s32 0, %v3200
        %v3202 = vrot.slane %v3181, %v3201
        %v3204 = vmul.f32 %v3197, %v3202
        %v3206 = vlaneseq
        %v3207 = vshrl.u32 %v3206, 7
        %v3208 = vsub.s32 0, %v3207
        %v3209 = vrot.slane %v3182, %v3208
        %v3211 = vadd.f32 %v3204, %v3209
        %v3212 = vpack.c.bf16 %v3211, %v3211
        %v3213 = vld [vmem:[%s19] sm:$0xf]
        %v3214 = vld [vmem:[%s19 + $0x4] sm:$0xf]
        %v3215 = vld [vmem:[%s19 + $0x8] sm:$0xf]
        %v3216 = vld [vmem:[%s19 + $0xc] sm:$0xf]
        %v3217 = vld [vmem:[%s20] sm:$0x1]
        %v3219 = vlaneseq
        %v3220 = vshrl.u32 %v3219, 7
        %v3221 = vsub.s32 0, %v3220
        %v3222 = vrot.slane %v3217, %v3221
        %v3228 = vunpack.c.l.b16 %v3213
        %v3229 = vunpack.c.l.b16 %v3214
        %v3230 = vunpack.c.l.b16 %v3215
        %v3231 = vunpack.c.l.b16 %v3216
        %v3232 = vpack.c.b16 %v3229, %v3228
        %v3233 = vpack.c.b16 %v3231, %v3230
        %v3237 = vsel %vm1961, %v3212, 0
        %3239 = vmatprep.subr.bf16.mxu0 0
        %3240 = vmatpush1.bf16.msra.mxu0 0
        %3241 = vmatprep.subr.bf16.mxu0 0
        %3242 = vmatpush1.bf16.msra.mxu0 0
        %3243 = vmatprep.subr.bf16.mxu0 0
        %3244 = vmatpush1.bf16.msra.mxu0 0
        %3245 = vmatprep.subr.bf16.mxu0 0
        %3246 = vmatpush1.bf16.msra.mxu0 0
        %3247 = vmatprep.subr.bf16.mxu0 0
        %3248 = vmatpush1.bf16.msra.mxu0 0
        %3249 = vmatprep.subr.bf16.mxu0 0
        %3250 = vmatpush1.bf16.msra.mxu0 0
        %3251 = vmatprep.subr.bf16.mxu0 0
        %3252 = vmatpush1.bf16.msra.mxu0 %v3233
        %3253 = vmatprep.subr.bf16.mxu0 0
        %3254 = vmatpush1.bf16.msra.mxu0 %v3232
        %3255 = vmatprep.subr.bf16.mxu0 0
        %3256 = vmatpush2.bf16.msra.mxu0 0
        %3257 = vmatprep.subr.bf16.mxu0 0
        %3258 = vmatpush2.bf16.msra.mxu0 0
        %3259 = vmatprep.subr.bf16.mxu0 0
        %3260 = vmatpush2.bf16.msra.mxu0 0
        %3261 = vmatprep.subr.bf16.mxu0 0
        %3262 = vmatpush2.bf16.msra.mxu0 0
        %3263 = vmatprep.subr.bf16.mxu0 0
        %3264 = vmatpush2.bf16.msra.mxu0 0
        %3265 = vmatprep.subr.bf16.mxu0 0
        %3266 = vmatpush2.bf16.msra.mxu0 0
        %3267 = vmatprep.subr.bf16.mxu0 0
        %3268 = vmatpush2.bf16.msra.mxu0 0
        %3269 = vmatprep.subr.bf16.mxu0 0
        %3270 = vmatpush2.bf16.msra.mxu0 0
        %3271 = vmatprep.mubr.bf16.mxu0 0
        %3272 = vmatmul.mubr.bf16.gmra.mxu0 %v3237
        %v3273 = vpop.f32.mrf.mxu0
        %v3274 = vadd.f32 %v3222, %v3273
        %v3275 = vpop.f32.mrf.mxu0
        %v3276 = vpop.f32.mrf.mxu0
        %v3277 = vpop.f32.mrf.mxu0
        %3278 = vdwg.mxu0
        %v3279 = vmax.f32 %v3274, 0.0
        %v3280 = vpack.c.bf16 %v3279, %v3279
        %v3281 = vld [vmem:[%s21] sm:$0xf]
        %v3282 = vld [vmem:[%s21 + $0x4] sm:$0xf]
        %v3283 = vld [vmem:[%s21 + $0x8] sm:$0xf]
        %v3284 = vld [vmem:[%s21 + $0xc] sm:$0xf]
        %v3285 = vld [vmem:[%s21 + $0x10] sm:$0xf]
        %v3286 = vld [vmem:[%s21 + $0x14] sm:$0xf]
        %v3287 = vld [vmem:[%s21 + $0x18] sm:$0xf]
        %v3288 = vld [vmem:[%s21 + $0x1c] sm:$0xf]
        %v3289 = vld [vmem:[%s21 + $0x20] sm:$0xf]
        %v3290 = vld [vmem:[%s21 + $0x24] sm:$0xf]
        %v3291 = vld [vmem:[%s21 + $0x28] sm:$0xf]
        %v3292 = vld [vmem:[%s21 + $0x2c] sm:$0xf]
        %v3293 = vld [vmem:[%s21 + $0x30] sm:$0xf]
        %v3294 = vld [vmem:[%s21 + $0x34] sm:$0xf]
        %v3295 = vld [vmem:[%s21 + $0x38] sm:$0xf]
        %v3296 = vld [vmem:[%s21 + $0x3c] sm:$0xf]
        %v3297 = vld [vmem:[%s22] sm:$0x1]
        %v3299 = vlaneseq
        %v3300 = vshrl.u32 %v3299, 7
        %v3301 = vsub.s32 0, %v3300
        %v3302 = vrot.slane %v3297, %v3301
        %v3320 = vunpack.c.l.b16 %v3281
        %v3321 = vunpack.c.l.b16 %v3282
        %v3322 = vunpack.c.l.b16 %v3283
        %v3323 = vunpack.c.l.b16 %v3284
        %v3324 = vunpack.c.l.b16 %v3285
        %v3325 = vunpack.c.l.b16 %v3286
        %v3326 = vunpack.c.l.b16 %v3287
        %v3327 = vunpack.c.l.b16 %v3288
        %v3328 = vunpack.c.l.b16 %v3289
        %v3329 = vunpack.c.l.b16 %v3290
        %v3330 = vunpack.c.l.b16 %v3291
        %v3331 = vunpack.c.l.b16 %v3292
        %v3332 = vunpack.c.l.b16 %v3293
        %v3333 = vunpack.c.l.b16 %v3294
        %v3334 = vunpack.c.l.b16 %v3295
        %v3335 = vunpack.c.l.b16 %v3296
        %v3336 = vpack.c.b16 %v3321, %v3320
        %v3337 = vpack.c.b16 %v3323, %v3322
        %v3338 = vpack.c.b16 %v3325, %v3324
        %v3339 = vpack.c.b16 %v3327, %v3326
        %v3340 = vpack.c.b16 %v3329, %v3328
        %v3341 = vpack.c.b16 %v3331, %v3330
        %v3342 = vpack.c.b16 %v3333, %v3332
        %v3343 = vpack.c.b16 %v3335, %v3334
        %3352 = vmatprep.subr.bf16.mxu0 0
        %3353 = vmatpush1.bf16.msra.mxu0 %v3343
        %3354 = vmatprep.subr.bf16.mxu0 0
        %3355 = vmatpush1.bf16.msra.mxu0 %v3342
        %3356 = vmatprep.subr.bf16.mxu0 0
        %3357 = vmatpush1.bf16.msra.mxu0 %v3341
        %3358 = vmatprep.subr.bf16.mxu0 0
        %3359 = vmatpush1.bf16.msra.mxu0 %v3340
        %3360 = vmatprep.subr.bf16.mxu0 0
        %3361 = vmatpush1.bf16.msra.mxu0 %v3339
        %3362 = vmatprep.subr.bf16.mxu0 0
        %3363 = vmatpush1.bf16.msra.mxu0 %v3338
        %3364 = vmatprep.subr.bf16.mxu0 0
        %3365 = vmatpush1.bf16.msra.mxu0 %v3337
        %3366 = vmatprep.subr.bf16.mxu0 0
        %3367 = vmatpush1.bf16.msra.mxu0 %v3336
        %3368 = vmatprep.subr.bf16.mxu0 0
        %3369 = vmatpush2.bf16.msra.mxu0 0
        %3370 = vmatprep.subr.bf16.mxu0 0
        %3371 = vmatpush2.bf16.msra.mxu0 0
        %3372 = vmatprep.subr.bf16.mxu0 0
        %3373 = vmatpush2.bf16.msra.mxu0 0
        %3374 = vmatprep.subr.bf16.mxu0 0
        %3375 = vmatpush2.bf16.msra.mxu0 0
        %3376 = vmatprep.subr.bf16.mxu0 0
        %3377 = vmatpush2.bf16.msra.mxu0 0
        %3378 = vmatprep.subr.bf16.mxu0 0
        %3379 = vmatpush2.bf16.msra.mxu0 0
        %3380 = vmatprep.subr.bf16.mxu0 0
        %3381 = vmatpush2.bf16.msra.mxu0 0
        %3382 = vmatprep.subr.bf16.mxu0 0
        %3383 = vmatpush2.bf16.msra.mxu0 0
        %3384 = vmatprep.mubr.bf16.mxu0 0
        %3385 = vmatmul.mubr.bf16.gmra.mxu0 %v3280
        %v3386 = vpop.f32.mrf.mxu0
        %v3387 = vadd.f32 %v3302, %v3386
        %v3388 = vpop.f32.mrf.mxu0
        %v3389 = vpop.f32.mrf.mxu0
        %v3390 = vpop.f32.mrf.mxu0
        %3391 = vdwg.mxu0
        %v3392 = vadd.f32 %v3387, %v3211
        %v3393 = vld [vmem:[%s23] sm:$0x1]
        %v3394 = vld [vmem:[%s24] sm:$0x1]
        %v3395 = vsel %vm1961, %v3392, 0.0
        %3396 = vadd.xlane.f32.xlu0 %v3395
        %v3397 = vpop.xlane.xlu0 %3396
        %v3398 = vmul.f32 %v3397, %v1965
        %v3399 = vmul.f32 %v3392, %v3392
        %v3400 = vsel %vm1961, %v3399, 0.0
        %3401 = vadd.xlane.f32.xlu0 %v3400
        %v3402 = vpop.xlane.xlu0 %3401
        %v3403 = vmul.f32 %v3402, %v1965
        %v3404 = vmul.f32 %v3398, %v3398
        %v3405 = vsub.f32 %v3403, %v3404
        %v3406 = vsub.f32 %v3392, %v3398
        %v3407 = vadd.f32 %v3405, 1e-05
        %v3408 = vrsqrt.pop %v3407
        %v3409 = vmul.f32 %v3406, %v3408
        %v3411 = vlaneseq
        %v3412 = vshrl.u32 %v3411, 7
        %v3413 = vsub.s32 0, %v3412
        %v3414 = vrot.slane %v3393, %v3413
        %v3416 = vmul.f32 %v3409, %v3414
        %v3418 = vlaneseq
        %v3419 = vshrl.u32 %v3418, 7
        %v3420 = vsub.s32 0, %v3419
        %v3421 = vrot.slane %v3394, %v3420
        %v3423 = vadd.f32 %v3416, %v3421
        %3424 = vst.msk [vmem:[%s792] sm:$0xff] %vm1961, %v3423
        %s3425 = sand.u32 %s592, 1
        %s3426 = scalar_lea.sflag [#allocation3], %s3425
        %s3427 = sand.u32 %s592, 1
        %s3428 = smul.addr %s3427, 8
        %s3429 = scalar_lea.vmem [#allocation2], %s3428
        // Predicated region
        $region121: #{decoder_block.1} parent=119 // pred_check
          %p3430 = pneg %p602
        $region122: #{decoder_block.1} parent=119 // pred_check_branch
          %3432 = sbr.rel (%p3430) target = $region124
        $region123: #{decoder_block.1} parent=119 // pred_region
          %s3434 = ssub.s32 128, 128
          %3435 = vsyncadd %s3426, %s3434
          %s3436 = smul.addr %s39, 128
          %s3437 = scalar_lea.hbm %s25, %s3436
          %s3439 = sshll.u32 %s3429, 4
          %s3440 = int_to_ptr.vmem [resolvable:$true] %s3439
          %3442 = dma.vmem_to_hbm [thread:$0]  %s3440, 128, %s3437, %s3426
        $region124: #{decoder_block.1} parent=119 // pred_fallthru
          _
      $region120: #{decoder_block.1} parent=5 // pred_fallthru
        _
      %p3443 = scmp.le.s32.totalorder 2, %s34
      // Predicated region
      $region125: #{decoder_block.1} parent=5 // pred_check
        %p3444 = pneg %p3443
      $region126: #{decoder_block.1} parent=5 // pred_check_branch
        %3446 = sbr.rel (%p3444) target = $region128
      $region127: #{decoder_block.1} parent=5 // pred_region
        %s3447 = ssub.s32 %s34, 2
        // Predicated region
        $region129: #{decoder_block.1} parent=127 // pred_check
          %p3448 = pneg %p608
        $region130: #{decoder_block.1} parent=127 // pred_check_branch
          %3450 = sbr.rel (%p3448) target = $region132
        $region131: #{decoder_block.1} parent=127 // pred_region
          %s3451 = sand.u32 %s593, 1
          %s3452 = scalar_lea.sflag [#allocation3], %s3451
          %s3453 = sand.u32 %s593, 1
          %s3454 = smul.addr %s3453, 8
          %s3455 = scalar_lea.vmem [#allocation2], %s3454
          %3456 = dma.done %s3452, 128
        $region132: #{decoder_block.1} parent=127 // pred_fallthru
          _
      $region128: #{decoder_block.1} parent=5 // pred_fallthru
        _
    $region6: #{decoder_block.1} parent=1 // loop_footer
      %s38 = sadd.s32 1, %s34
    $region7: #{decoder_block.1} parent=1 // loop_footer_branch
      %33 = sbr.rel target = $region3
    $region8: #{decoder_block.1} parent=1 // loop_exit
      _
    %3457 = vsyncpa [#allocation3], 1
    %s3458 = scalar_lea.sflag [#allocation3], 1
    %3459 = vsyncpa %s3458, 1

</llo_original>
